<compile_context>
chip_gen: v5e
topology: v5e:2x2
jax: 0.10.0
libtpu: 0.0.40
codegen_flags: <defaults>
</compile_context>

<pallas_src>
import functools
import math

import jax
import jax.numpy as jnp
from jax import lax
from jax.experimental import pallas as pl
from jax.experimental.pallas import tpu as pltpu

_VMEM_LIMIT = 48 * 1024 * 1024   # explicit scoped-VMEM budget (< v7x 64 MiB)


# ----------------------------------------------------------------------------
# Tiling helpers
# ----------------------------------------------------------------------------
def _round_up(x, m):
    return -(-x // m) * m


def _tile(dim, target, align):
    """Largest multiple of `align`, <= target, dividing round_up(dim, align)."""
    da = _round_up(dim, align)
    if da <= target:
        return da
    c = (target // align) * align
    while c >= align:
        if da % c == 0:
            return c
        c -= align
    return align


def _pad2(a, rows, cols):
    pr, pc = rows - a.shape[0], cols - a.shape[1]
    if pr or pc:
        a = jnp.pad(a, ((0, pr), (0, pc)))
    return a


# ----------------------------------------------------------------------------
# Fused [RMSNorm] + matmul + [bias] + [GELU] + [residual] kernel.
# Grid: (M/tm, N/tn, K/tk) with an f32 accumulator in VMEM scratch.
# Norm path: K untiled, norm computed once per row tile (j==0) and cached
# bf16 in VMEM scratch, reused across the N tiles.
# ----------------------------------------------------------------------------
def _make_linear_kernel(has_norm, has_bias, has_res, activation, out_dtype,
                        norm_k):
    def kernel(*refs):
        it = iter(refs)
        x_ref = next(it)
        g_ref = next(it) if has_norm else None
        w_ref = next(it)
        b_ref = next(it) if has_bias else None
        r_ref = next(it) if has_res else None
        o_ref = next(it)
        acc_ref = next(it)
        xn_ref = next(it) if has_norm else None

        @pl.when(pl.program_id(2) == 0)
        def _():
            acc_ref[...] = jnp.zeros_like(acc_ref)

        if has_norm:
            # RMSNorm computed once per row tile (j == 0), cached bf16.
            @pl.when(pl.program_id(1) == 0)
            def _():
                xf = x_ref[...].astype(jnp.float32)
                ssq = jnp.sum(xf * xf, axis=-1, keepdims=True)
                # divide by the REAL feature count (zero-padded cols are 0)
                xn = xf * lax.rsqrt(ssq * (1.0 / norm_k) + 1e-5) * g_ref[...]
                xn_ref[...] = xn.astype(jnp.bfloat16)
            x = xn_ref[...]
        else:
            x = x_ref[...].astype(jnp.bfloat16)

        # bf16 operands, f32 MXU accumulation.
        acc_ref[...] += jnp.dot(x, w_ref[...],
                                preferred_element_type=jnp.float32)

        @pl.when(pl.program_id(2) == pl.num_programs(2) - 1)
        def _():
            out = acc_ref[...]
            if has_bias:
                out = out + b_ref[...]
            if activation == "gelu":
                out = jax.nn.gelu(out)
            if has_res:
                out = out + r_ref[...].astype(jnp.float32)
            o_ref[...] = out.astype(out_dtype)

    return kernel


def pallas_linear(x, w, *, norm_gamma=None, bias=None, residual=None,
                  activation=None, out_dtype=jnp.float32,
                  tm=512, tn=256, tk=512):
    """y = act(rmsnorm(x) @ w + b) + residual, tiled + K-accumulated.

    Non-aligned M/N/K are zero-padded to aligned tiles (exact) instead of
    falling back to whole-operand blocks.
    NOTE: on v5e (16 MiB scoped default) very large dims may want tm=128 on
    the norm path; the explicit vmem_limit below covers typical sizes.
    """
    M, K = x.shape
    Kw, N = w.shape
    assert K == Kw

    itemsizes = [jnp.dtype(x.dtype).itemsize, jnp.dtype(out_dtype).itemsize]
    if residual is not None:
        itemsizes.append(jnp.dtype(residual.dtype).itemsize)
    align_m = max(8, 32 // min(itemsizes))          # sublane align (bf16 -> 16)

    tm = _tile(M, tm, align_m)
    tn = _tile(N, tn, 128)
    Mp, Np, Kp = _round_up(M, align_m), _round_up(N, 128), _round_up(K, 128)
    tk = Kp if norm_gamma is not None else _tile(K, tk, 128)
    grid = (Mp // tm, Np // tn, Kp // tk)

    in_specs = [pl.BlockSpec((tm, tk), lambda i, j, k: (i, k))]
    args = [_pad2(x, Mp, Kp)]
    if norm_gamma is not None:
        in_specs.append(pl.BlockSpec((1, Kp), lambda i, j, k: (0, 0)))
        args.append(_pad2(norm_gamma.reshape(1, K).astype(jnp.float32), 1, Kp))
    in_specs.append(pl.BlockSpec((tk, tn), lambda i, j, k: (k, j)))
    args.append(_pad2(w, Kp, Np))
    if bias is not None:
        in_specs.append(pl.BlockSpec((1, tn), lambda i, j, k: (0, j)))
        args.append(_pad2(bias.reshape(1, N).astype(jnp.float32), 1, Np))
    if residual is not None:
        in_specs.append(pl.BlockSpec((tm, tn), lambda i, j, k: (i, j)))
        args.append(_pad2(residual, Mp, Np))

    scratch = [pltpu.VMEM((tm, tn), jnp.float32)]
    if norm_gamma is not None:
        scratch.append(pltpu.VMEM((tm, Kp), jnp.bfloat16))

    kern = _make_linear_kernel(norm_gamma is not None, bias is not None,
                               residual is not None, activation, out_dtype, K)
    # Norm path: keep j sequential ("arbitrary") so the cached norm scratch
    # written at j==0 is always valid (megacore only splits the i axis).
    dims = (("parallel", "arbitrary", "arbitrary") if norm_gamma is not None
            else ("parallel", "parallel", "arbitrary"))

    out = pl.pallas_call(
        kern,
        out_shape=jax.ShapeDtypeStruct((Mp, Np), out_dtype),
        grid=grid,
        in_specs=in_specs,
        out_specs=pl.BlockSpec((tm, tn), lambda i, j, k: (i, j)),
        scratch_shapes=scratch,
        compiler_params=pltpu.CompilerParams(
            dimension_semantics=dims, vmem_limit_bytes=_VMEM_LIMIT),
    )(*args)

    if Mp != M or Np != N:
        out = out[:M, :N]
    return out


# ----------------------------------------------------------------------------
# Attention kernel: one (batch, q-tile) per grid step, all heads in-kernel,
# lane-dense (tq, H*Dh) layout, single full-width wo matmul + residual fused.
# Q/K/V are selected from the fused qkv / kv tensors via BlockSpec last-dim
# block indices — no JAX-level split copies.
# ----------------------------------------------------------------------------
def _attn_kernel(q_ref, k_ref, v_ref, wo_ref, res_ref, o_ref, oh_ref, *,
                 causal, scale, num_heads):
    tq, D = q_ref.shape
    Sk = k_ref.shape[0]
    Dh = D // num_heads

    if causal:
        q0 = pl.program_id(1) * tq                      # global q offset
        qi = q0 + lax.broadcasted_iota(jnp.int32, (tq, Sk), 0)
        ki = lax.broadcasted_iota(jnp.int32, (tq, Sk), 1)
        neg = jnp.where(ki <= qi, 0.0, -1e30).astype(jnp.float32)

    for h in range(num_heads):
        lo = h * Dh
        qh = q_ref[:, lo:lo + Dh]                       # bf16 (tq, Dh)
        kh = k_ref[:, lo:lo + Dh]                       # bf16 (Sk, Dh)
        vh = v_ref[:, lo:lo + Dh]                       # bf16 (Sk, Dh)
        # QK^T by contracting last dims — no explicit transpose of K.
        s = lax.dot_general(qh, kh, (((1,), (1,)), ((), ())),
                            preferred_element_type=jnp.float32) * scale
        if causal:
            s = s + neg
        m = jnp.max(s, axis=-1, keepdims=True)
        p = jnp.exp(s - m)
        p = p * pl.reciprocal(jnp.sum(p, axis=-1, keepdims=True), approx=True)
        oh = jnp.dot(p.astype(jnp.bfloat16), vh,
                     preferred_element_type=jnp.float32)             # (tq, Dh)
        oh_ref[:, lo:lo + Dh] = oh.astype(jnp.bfloat16)  # stage head output

    # One full-width (tq,D)@(D,D) output projection + residual add.
    o_ref[...] = (res_ref[...].astype(jnp.float32) +
                  jnp.dot(oh_ref[...], wo_ref[...],
                          preferred_element_type=jnp.float32)
                  ).astype(o_ref.dtype)


def pallas_attention(q_src, k_src, v_src, wo, residual, *, causal, num_heads,
                     q_col=0, k_col=0, v_col=0, tq=256):
    """residual + attn(Q,K,V) @ wo.

    q_src/k_src/v_src may be (and usually are) the SAME fused tensor
    ((B,S,3D) qkv or (B,Tc,2D) kv); q_col/k_col/v_col select the D-wide
    column block via the BlockSpec index_map.
    """
    B, Sq, D = residual.shape
    Sk = k_src.shape[1]
    assert D % num_heads == 0
    for src, col in ((q_src, q_col), (k_src, k_col), (v_src, v_col)):
        assert src.shape[-1] == D or D % 128 == 0, "fused cols need D % 128 == 0"

    # Tile over Sq so per-step VMEM is bounded and the pipeline has depth
    # even at small B; pad Sq (query side only) if it doesn't divide tq.
    if Sq <= tq:
        tq = Sq
        Sq_pad = Sq
    else:
        Sq_pad = _round_up(Sq, tq)
    if Sq_pad != Sq:
        pad = Sq_pad - Sq
        q_src = jnp.pad(q_src, ((0, 0), (0, pad), (0, 0)))
        residual = jnp.pad(residual, ((0, 0), (0, pad), (0, 0)))

    kern = functools.partial(_attn_kernel, causal=causal,
                             scale=1.0 / math.sqrt(D // num_heads),
                             num_heads=num_heads)
    out = pl.pallas_call(
        kern,
        out_shape=jax.ShapeDtypeStruct((B, Sq_pad, D), jnp.float32),
        grid=(B, Sq_pad // tq),
        in_specs=[
            pl.BlockSpec((None, tq, D), lambda b, qi: (b, qi, q_col)),
            pl.BlockSpec((None, Sk, D), lambda b, qi: (b, 0, k_col)),
            pl.BlockSpec((None, Sk, D), lambda b, qi: (b, 0, v_col)),
            pl.BlockSpec((D, D), lambda b, qi: (0, 0)),
            pl.BlockSpec((None, tq, D), lambda b, qi: (b, qi, 0)),
        ],
        out_specs=pl.BlockSpec((None, tq, D), lambda b, qi: (b, qi, 0)),
        scratch_shapes=[pltpu.VMEM((tq, D), jnp.bfloat16)],
        compiler_params=pltpu.CompilerParams(
            dimension_semantics=("parallel", "parallel"),
            vmem_limit_bytes=_VMEM_LIMIT),
    )(q_src, k_src, v_src, wo, residual)

    if Sq_pad != Sq:
        out = out[:, :Sq, :]
    return out


# ----------------------------------------------------------------------------
# Parameters (synthetic, deterministic). Matmul weights stored in bf16.
# ----------------------------------------------------------------------------
def init_params(key, *, vocab_size, dim, hidden_dim, num_layers, num_heads,
                max_pos):
    del num_heads
    keys = jax.random.split(key, 3 + num_layers)
    scale = 0.02

    def mk_w(k, shape):
        return (scale * jax.random.normal(k, shape, jnp.float32)).astype(jnp.bfloat16)

    params = {
        "tok_emb": scale * jax.random.normal(keys[0], (vocab_size, dim), jnp.float32),
        "pos_emb": scale * jax.random.normal(keys[1], (max_pos, dim), jnp.float32),
        "final_norm": jnp.ones((dim,), jnp.float32),
        "w_out": mk_w(keys[2], (dim, vocab_size)),
        "b_out": jnp.zeros((vocab_size,), jnp.float32),
        "layers": [],
    }
    for li in range(num_layers):
        lk = jax.random.split(keys[3 + li], 8)
        layer = {
            "attn_norm": jnp.ones((dim,), jnp.float32),
            "w_qkv": mk_w(lk[0], (dim, 3 * dim)),       # fused Q|K|V
            "wo": mk_w(lk[1], (dim, dim)),
            "xattn_norm": jnp.ones((dim,), jnp.float32),
            "wq_x": mk_w(lk[2], (dim, dim)),
            "w_kv_x": mk_w(lk[3], (dim, 2 * dim)),      # fused K|V for context
            "wo_x": mk_w(lk[4], (dim, dim)),
            "ffn_norm": jnp.ones((dim,), jnp.float32),
            "w1": mk_w(lk[5], (dim, hidden_dim)),
            "b1": jnp.zeros((hidden_dim,), jnp.float32),
            "w2": mk_w(lk[6], (hidden_dim, dim)),
            "b2": jnp.zeros((dim,), jnp.float32),
        }
        params["layers"].append(layer)
    return params


# ----------------------------------------------------------------------------
# Forward (mirrors MelodyGenerator.forward -> self.generator.forward(...)).
# ----------------------------------------------------------------------------
def melody_generator_forward(params, all_tokens, context, labels=None,
                             start_pos=0, pos_bias=0, pos_bias_k=0,
                             *, num_heads, pad_id=0):
    B, S = all_tokens.shape
    _, Tc, D = context.shape
    H = num_heads

    # Embedding gathers + positional embeddings with pos_bias offsets (glue).
    # Note: positions are not range-checked against max_pos (JAX clamps OOB).
    h = params["tok_emb"][all_tokens]                                  # (B,S,D)
    tok_pos = start_pos + pos_bias + jnp.arange(S)
    h = h + params["pos_emb"][tok_pos][None, :, :]
    ctx = context + params["pos_emb"][pos_bias_k + jnp.arange(Tc)][None, :, :]

    h = h.reshape(B * S, D)                     # f32 residual stream
    ctx_bf16 = ctx.reshape(B * Tc, D).astype(jnp.bfloat16)   # halve x DMA

    fuse_cols = (D % 128 == 0)                  # BlockSpec col-select needs it

    for layer in params["layers"]:
        # --- causal self-attention: fused RMSNorm+QKV, fused attn+Wo+residual
        qkv3 = pallas_linear(h, layer["w_qkv"], norm_gamma=layer["attn_norm"],
                             out_dtype=jnp.bfloat16).reshape(B, S, 3 * D)
        if fuse_cols:
            qs, ks, vs, qc, kc, vc = qkv3, qkv3, qkv3, 0, 1, 2
        else:
            # Fallback (extra HBM copies) when D is not lane-aligned.
            qs, ks, vs = qkv3[..., :D], qkv3[..., D:2 * D], qkv3[..., 2 * D:]
            qc = kc = vc = 0
        h = pallas_attention(qs, ks, vs, layer["wo"], h.reshape(B, S, D),
                             causal=True, num_heads=H,
                             q_col=qc, k_col=kc, v_col=vc).reshape(B * S, D)

        # --- cross-attention to context ------------------------------------
        qx = pallas_linear(h, layer["wq_x"], norm_gamma=layer["xattn_norm"],
                           out_dtype=jnp.bfloat16).reshape(B, S, D)
        kv3 = pallas_linear(ctx_bf16, layer["w_kv_x"],
                            out_dtype=jnp.bfloat16).reshape(B, Tc, 2 * D)
        if fuse_cols:
            ks, vs, kc, vc = kv3, kv3, 0, 1
        else:
            ks, vs, kc, vc = kv3[..., :D], kv3[..., D:], 0, 0
        h = pallas_attention(qx, ks, vs, layer["wo_x"], h.reshape(B, S, D),
                             causal=False, num_heads=H,
                             q_col=0, k_col=kc, v_col=vc).reshape(B * S, D)

        # --- feed-forward: fused norm+W1+bias+GELU, then W2+bias+residual ---
        f = pallas_linear(h, layer["w1"], norm_gamma=layer["ffn_norm"],
                          bias=layer["b1"], activation="gelu",
                          out_dtype=jnp.bfloat16)
        h = pallas_linear(f, layer["w2"], bias=layer["b2"], residual=h,
                          out_dtype=jnp.float32)

    # --- final RMSNorm fused into the vocab projection ----------------------
    logits = pallas_linear(h, params["w_out"], norm_gamma=params["final_norm"],
                           bias=params["b_out"], out_dtype=jnp.float32)
    vocab = logits.shape[-1]
    logits = logits.reshape(B, S, vocab)

    out = {"logits": logits}
    if labels is not None:
        # Cross-entropy over vocab, ignoring pad positions (glue in JAX).
        logp = jax.nn.log_softmax(logits, axis=-1)
        nll = -jnp.take_along_axis(logp, labels[..., None], axis=-1)[..., 0]
        mask = (labels != pad_id).astype(jnp.float32)
        out["loss"] = jnp.sum(nll * mask) / jnp.maximum(jnp.sum(mask), 1.0)
    return out


# ----------------------------------------------------------------------------
if __name__ == "__main__":
    # Small synthetic configuration consistent with the module's forward():
    #   all_tokens: (B, S) int, context: (B, Tc, dim) float, labels: (B, S).
    # dim=128 keeps D lane-aligned so the fused qkv/kv column-select path runs.
    B, S, Tc = 2, 8, 8
    DIM, HIDDEN, HEADS, LAYERS = 128, 256, 4, 2
    VOCAB, MAX_POS = 64, 128

    key = jax.random.PRNGKey(0)
    kp, kt, kc, kl = jax.random.split(key, 4)

    params = init_params(kp, vocab_size=VOCAB, dim=DIM, hidden_dim=HIDDEN,
                         num_layers=LAYERS, num_heads=HEADS, max_pos=MAX_POS)

    all_tokens = jax.random.randint(kt, (B, S), 0, VOCAB, dtype=jnp.int32)
    context = jax.random.normal(kc, (B, Tc, DIM), jnp.float32)
    labels = jax.random.randint(kl, (B, S), 0, VOCAB, dtype=jnp.int32)

    fwd = jax.jit(functools.partial(melody_generator_forward,
                                    num_heads=HEADS, pad_id=0))
    out = fwd(params, all_tokens, context, labels, 0, 4, 2)

    jax.block_until_ready(out["logits"])
    jax.block_until_ready(out["loss"])
    assert out["logits"].shape == (B, S, VOCAB)
    print("KERNEL_OK")
</pallas_src>

<mosaic_0001>
module attributes {stable_mosaic.version = 11 : i64} {
  func.func @kernel(%arg0: i32, %arg1: i32, %arg2: i32, %arg3: memref<16x128xf32, #tpu.memory_space<vmem>>, %arg4: memref<1x128xf32, #tpu.memory_space<vmem>>, %arg5: memref<128x128xbf16, #tpu.memory_space<vmem>>, %arg6: memref<16x128xbf16, #tpu.memory_space<vmem>>, %arg7: memref<16x128xf32, #tpu.memory_space<vmem>>, %arg8: memref<16x128xbf16, #tpu.memory_space<vmem>>) attributes {dimension_semantics = [#tpu.dimension_semantics<parallel>, #tpu.dimension_semantics<arbitrary>, #tpu.dimension_semantics<arbitrary>], iteration_bounds = array<i64: 1, 3, 1>, scalar_prefetch = 0 : i64, scratch_operands = 2 : i64, tpu.core_type = #tpu.core_type<tc>, window_params = [{transform_indices = @transform_0, window_bounds = array<i64: 16, 128>}, {pipeline_mode = #tpu.pipeline_mode<synchronous>, transform_indices = @transform_1, window_bounds = array<i64: 1, 128>}, {transform_indices = @transform_2, window_bounds = array<i64: 128, 128>}, {transform_indices = @transform_3, window_bounds = array<i64: 16, 128>}]} {
    %c0_i32 = arith.constant 0 : i32
    %0 = arith.cmpi eq, %arg2, %c0_i32 : i32
    %1 = arith.extui %0 : i1 to i32
    %c0_i32_0 = arith.constant 0 : i32
    %2 = arith.cmpi ne, %1, %c0_i32_0 : i32
    scf.if %2 {
      %cst_12 = arith.constant 0.000000e+00 : f32
      %15 = vector.broadcast %cst_12 : f32 to vector<16x128xf32>
      %c0_13 = arith.constant 0 : index
      %c0_14 = arith.constant 0 : index
      %16 = vector.load %arg7[%c0_13, %c0_14] : memref<16x128xf32, #tpu.memory_space<vmem>>, vector<16x128xf32>
      tpu.vector_store %arg7[%c0_13, %c0_14], %15 {strides = array<i32>} : memref<16x128xf32, #tpu.memory_space<vmem>>, vector<16x128xf32>,
    } else {
    }
    %c0_i32_1 = arith.constant 0 : i32
    %3 = arith.cmpi eq, %arg1, %c0_i32_1 : i32
    %4 = arith.extui %3 : i1 to i32
    %c0_i32_2 = arith.constant 0 : i32
    %5 = arith.cmpi ne, %4, %c0_i32_2 : i32
    scf.if %5 {
      %c0_12 = arith.constant 0 : index
      %c0_13 = arith.constant 0 : index
      %15 = vector.load %arg3[%c0_12, %c0_13] : memref<16x128xf32, #tpu.memory_space<vmem>>, vector<16x128xf32>
      %16 = arith.mulf %15, %15 : vector<16x128xf32>
      %cst_14 = arith.constant dense<0.000000e+00> : vector<16xf32>
      %17 = vector.multi_reduction <add>, %16, %cst_14 [1] : vector<16x128xf32> to vector<16xf32>
      %18 = vector.shape_cast %17 : vector<16xf32> to vector<16x1xf32>
      %cst_15 = arith.constant 7.812500e-03 : f32
      %19 = vector.broadcast %cst_15 : f32 to vector<16x1xf32>
      %20 = arith.mulf %18, %19 : vector<16x1xf32>
      %cst_16 = arith.constant 9.99999974E-6 : f32
      %21 = vector.broadcast %cst_16 : f32 to vector<16x1xf32>
      %22 = arith.addf %20, %21 : vector<16x1xf32>
      %23 = math.rsqrt %22 : vector<16x1xf32>
      %24 = vector.broadcast %23 : vector<16x1xf32> to vector<16x128xf32>
      %25 = arith.mulf %15, %24 : vector<16x128xf32>
      %c0_17 = arith.constant 0 : index
      %c0_18 = arith.constant 0 : index
      %26 = vector.load %arg4[%c0_17, %c0_18] : memref<1x128xf32, #tpu.memory_space<vmem>>, vector<1x128xf32>
      %27 = vector.broadcast %26 : vector<1x128xf32> to vector<16x128xf32>
      %28 = arith.mulf %25, %27 : vector<16x128xf32>
      %29 = arith.truncf %28 : vector<16x128xf32> to vector<16x128xbf16>
      %c0_19 = arith.constant 0 : index
      %c0_20 = arith.constant 0 : index
      %30 = vector.load %arg8[%c0_19, %c0_20] : memref<16x128xbf16, #tpu.memory_space<vmem>>, vector<16x128xbf16>
      tpu.vector_store %arg8[%c0_19, %c0_20], %29 {strides = array<i32>} : memref<16x128xbf16, #tpu.memory_space<vmem>>, vector<16x128xbf16>,
    } else {
    }
    %c0 = arith.constant 0 : index
    %c0_3 = arith.constant 0 : index
    %6 = vector.load %arg8[%c0, %c0_3] : memref<16x128xbf16, #tpu.memory_space<vmem>>, vector<16x128xbf16>
    %c0_4 = arith.constant 0 : index
    %c0_5 = arith.constant 0 : index
    %7 = vector.load %arg7[%c0_4, %c0_5] : memref<16x128xf32, #tpu.memory_space<vmem>>, vector<16x128xf32>
    %c0_6 = arith.constant 0 : index
    %c0_7 = arith.constant 0 : index
    %8 = vector.load %arg5[%c0_6, %c0_7] : memref<128x128xbf16, #tpu.memory_space<vmem>>, vector<128x128xbf16>
    %cst = arith.constant dense<0.000000e+00> : vector<16x128xf32>
    %9 = tpu.matmul %6, %8, %cst {dimension_numbers = #tpu.dot_dimension_numbers<[1], [0], [0], [1], [0, 0, 1, 1], [], []>} : vector<16x128xbf16>, vector<128x128xbf16>, vector<16x128xf32> -> vector<16x128xf32>
    %10 = arith.addf %7, %9 : vector<16x128xf32>
    %c0_8 = arith.constant 0 : index
    %c0_9 = arith.constant 0 : index
    %11 = vector.load %arg7[%c0_8, %c0_9] : memref<16x128xf32, #tpu.memory_space<vmem>>, vector<16x128xf32>
    tpu.vector_store %arg7[%c0_8, %c0_9], %10 {strides = array<i32>} : memref<16x128xf32, #tpu.memory_space<vmem>>, vector<16x128xf32>,
    %c0_i32_10 = arith.constant 0 : i32
    %12 = arith.cmpi eq, %arg2, %c0_i32_10 : i32
    %13 = arith.extui %12 : i1 to i32
    %c0_i32_11 = arith.constant 0 : i32
    %14 = arith.cmpi ne, %13, %c0_i32_11 : i32
    scf.if %14 {
      %c0_12 = arith.constant 0 : index
      %c0_13 = arith.constant 0 : index
      %15 = vector.load %arg7[%c0_12, %c0_13] : memref<16x128xf32, #tpu.memory_space<vmem>>, vector<16x128xf32>
      %16 = arith.truncf %15 : vector<16x128xf32> to vector<16x128xbf16>
      %c0_14 = arith.constant 0 : index
      %c0_15 = arith.constant 0 : index
      %17 = vector.load %arg6[%c0_14, %c0_15] : memref<16x128xbf16, #tpu.memory_space<vmem>>, vector<16x128xbf16>
      tpu.vector_store %arg6[%c0_14, %c0_15], %16 {strides = array<i32>} : memref<16x128xbf16, #tpu.memory_space<vmem>>, vector<16x128xbf16>,
    } else {
    }
    return
  }
  func.func @transform_0(%arg0: i32, %arg1: i32, %arg2: i32) -> (i32, i32) {
    %c0_i32 = arith.constant 0 : i32
    return %arg0, %arg2 : i32, i32
  }
  func.func @transform_1(%arg0: i32, %arg1: i32, %arg2: i32) -> (i32, i32) {
    %c0_i32 = arith.constant 0 : i32
    %c0_i32_0 = arith.constant 0 : i32
    %c0_i32_1 = arith.constant 0 : i32
    return %c0_i32, %c0_i32_0 : i32, i32
  }
  func.func @transform_2(%arg0: i32, %arg1: i32, %arg2: i32) -> (i32, i32) {
    %c0_i32 = arith.constant 0 : i32
    return %arg2, %arg1 : i32, i32
  }
  func.func @transform_3(%arg0: i32, %arg1: i32, %arg2: i32) -> (i32, i32) {
    %c0_i32 = arith.constant 0 : i32
    return %arg0, %arg1 : i32, i32
  }
}

module attributes {stable_mosaic.version = 11 : i64} {
  func.func @_attn_kernel(%arg0: i32, %arg1: i32, %arg2: memref<1x8x128xbf16, #tpu.memory_space<vmem>>, %arg3: memref<1x8x128xbf16, #tpu.memory_space<vmem>>, %arg4: memref<1x8x128xbf16, #tpu.memory_space<vmem>>, %arg5: memref<128x128xbf16, #tpu.memory_space<vmem>>, %arg6: memref<1x8x128xf32, #tpu.memory_space<vmem>>, %arg7: memref<1x8x128xf32, #tpu.memory_space<vmem>>, %arg8: memref<8x128xbf16, #tpu.memory_space<vmem>>) attributes {dimension_semantics = [#tpu.dimension_semantics<parallel>, #tpu.dimension_semantics<parallel>], iteration_bounds = array<i64: 2, 1>, scalar_prefetch = 0 : i64, scratch_operands = 1 : i64, tpu.core_type = #tpu.core_type<tc>, window_params = [{transform_indices = @transform_0, window_bounds = array<i64: 1, 8, 128>}, {transform_indices = @transform_1, window_bounds = array<i64: 1, 8, 128>}, {transform_indices = @transform_2, window_bounds = array<i64: 1, 8, 128>}, {pipeline_mode = #tpu.pipeline_mode<synchronous>, transform_indices = @transform_3, window_bounds = array<i64: 128, 128>}, {transform_indices = @transform_4, window_bounds = array<i64: 1, 8, 128>}, {transform_indices = @transform_5, window_bounds = array<i64: 1, 8, 128>}]} {
    %c8_i32 = arith.constant 8 : i32
    %0 = arith.muli %arg1, %c8_i32 : i32
    %1 = tpu.iota {dimensions = array<i32: 0>} : vector<8x8xi32>
    %2 = vector.broadcast %0 : i32 to vector<8x8xi32>
    %3 = arith.addi %2, %1 : vector<8x8xi32>
    %4 = tpu.iota {dimensions = array<i32: 1>} : vector<8x8xi32>
    %5 = arith.cmpi sle, %4, %3 : vector<8x8xi32>
    %cst = arith.constant 0.000000e+00 : f32
    %cst_0 = arith.constant -1.000000e+30 : f32
    %6 = vector.broadcast %cst : f32 to vector<8x8xf32>
    %7 = vector.broadcast %cst_0 : f32 to vector<8x8xf32>
    %8 = arith.select %5, %6, %7 : vector<8x8xi1>, vector<8x8xf32>
    %c0 = arith.constant 0 : index
    %c0_1 = arith.constant 0 : index
    %c0_2 = arith.constant 0 : index
    %9 = vector.load %arg2[%c0, %c0_1, %c0_2] : memref<1x8x128xbf16, #tpu.memory_space<vmem>>, vector<1x8x32xbf16>
    %10 = vector.shape_cast %9 : vector<1x8x32xbf16> to vector<8x32xbf16>
    %c0_3 = arith.constant 0 : index
    %c0_4 = arith.constant 0 : index
    %c0_5 = arith.constant 0 : index
    %11 = vector.load %arg3[%c0_3, %c0_4, %c0_5] : memref<1x8x128xbf16, #tpu.memory_space<vmem>>, vector<1x8x32xbf16>
    %12 = vector.shape_cast %11 : vector<1x8x32xbf16> to vector<8x32xbf16>
    %c0_6 = arith.constant 0 : index
    %c0_7 = arith.constant 0 : index
    %c0_8 = arith.constant 0 : index
    %13 = vector.load %arg4[%c0_6, %c0_7, %c0_8] : memref<1x8x128xbf16, #tpu.memory_space<vmem>>, vector<1x8x32xbf16>
    %14 = vector.shape_cast %13 : vector<1x8x32xbf16> to vector<8x32xbf16>
    %cst_9 = arith.constant dense<0.000000e+00> : vector<8x8xf32>
    %15 = tpu.matmul %10, %12, %cst_9 {dimension_numbers = #tpu.dot_dimension_numbers<[1], [1], [0], [0], [0, 0, 1, 0], [], []>} : vector<8x32xbf16>, vector<8x32xbf16>, vector<8x8xf32> -> vector<8x8xf32>
    %cst_10 = arith.constant 0.176776692 : f32
    %16 = vector.broadcast %cst_10 : f32 to vector<8x8xf32>
    %17 = arith.mulf %15, %16 : vector<8x8xf32>
    %18 = arith.addf %17, %8 : vector<8x8xf32>
    %cst_11 = arith.constant dense<0xFF800000> : vector<8xf32>
    %19 = vector.multi_reduction <maximumf>, %18, %cst_11 [1] : vector<8x8xf32> to vector<8xf32>
    %20 = vector.shape_cast %19 : vector<8xf32> to vector<8x1xf32>
    %21 = vector.broadcast %20 : vector<8x1xf32> to vector<8x8xf32>
    %22 = arith.subf %18, %21 : vector<8x8xf32>
    %23 = math.exp %22 : vector<8x8xf32>
    %cst_12 = arith.constant dense<0.000000e+00> : vector<8xf32>
    %24 = vector.multi_reduction <add>, %23, %cst_12 [1] : vector<8x8xf32> to vector<8xf32>
    %25 = vector.shape_cast %24 : vector<8xf32> to vector<8x1xf32>
    %26 = tpu.reciprocal %25 {approx = true} : vector<8x1xf32> -> vector<8x1xf32>
    %27 = vector.broadcast %26 : vector<8x1xf32> to vector<8x8xf32>
    %28 = arith.mulf %23, %27 : vector<8x8xf32>
    %29 = arith.truncf %28 : vector<8x8xf32> to vector<8x8xbf16>
    %cst_13 = arith.constant dense<0.000000e+00> : vector<8x32xf32>
    %30 = tpu.matmul %29, %14, %cst_13 {dimension_numbers = #tpu.dot_dimension_numbers<[1], [0], [0], [1], [0, 0, 1, 1], [], []>} : vector<8x8xbf16>, vector<8x32xbf16>, vector<8x32xf32> -> vector<8x32xf32>
    %31 = arith.truncf %30 : vector<8x32xf32> to vector<8x32xbf16>
    %c0_14 = arith.constant 0 : index
    %c0_15 = arith.constant 0 : index
    %32 = vector.load %arg8[%c0_14, %c0_15] : memref<8x128xbf16, #tpu.memory_space<vmem>>, vector<8x32xbf16>
    tpu.vector_store %arg8[%c0_14, %c0_15], %31 {strides = array<i32>} : memref<8x128xbf16, #tpu.memory_space<vmem>>, vector<8x32xbf16>,
    %c0_16 = arith.constant 0 : index
    %c0_17 = arith.constant 0 : index
    %c32 = arith.constant 32 : index
    %33 = vector.load %arg2[%c0_16, %c0_17, %c32] : memref<1x8x128xbf16, #tpu.memory_space<vmem>>, vector<1x8x32xbf16>
    %34 = vector.shape_cast %33 : vector<1x8x32xbf16> to vector<8x32xbf16>
    %c0_18 = arith.constant 0 : index
    %c0_19 = arith.constant 0 : index
    %c32_20 = arith.constant 32 : index
    %35 = vector.load %arg3[%c0_18, %c0_19, %c32_20] : memref<1x8x128xbf16, #tpu.memory_space<vmem>>, vector<1x8x32xbf16>
    %36 = vector.shape_cast %35 : vector<1x8x32xbf16> to vector<8x32xbf16>
    %c0_21 = arith.constant 0 : index
    %c0_22 = arith.constant 0 : index
    %c32_23 = arith.constant 32 : index
    %37 = vector.load %arg4[%c0_21, %c0_22, %c32_23] : memref<1x8x128xbf16, #tpu.memory_space<vmem>>, vector<1x8x32xbf16>
    %38 = vector.shape_cast %37 : vector<1x8x32xbf16> to vector<8x32xbf16>
    %cst_24 = arith.constant dense<0.000000e+00> : vector<8x8xf32>
    %39 = tpu.matmul %34, %36, %cst_24 {dimension_numbers = #tpu.dot_dimension_numbers<[1], [1], [0], [0], [0, 0, 1, 0], [], []>} : vector<8x32xbf16>, vector<8x32xbf16>, vector<8x8xf32> -> vector<8x8xf32>
    %cst_25 = arith.constant 0.176776692 : f32
    %40 = vector.broadcast %cst_25 : f32 to vector<8x8xf32>
    %41 = arith.mulf %39, %40 : vector<8x8xf32>
    %42 = arith.addf %41, %8 : vector<8x8xf32>
    %cst_26 = arith.constant dense<0xFF800000> : vector<8xf32>
    %43 = vector.multi_reduction <maximumf>, %42, %cst_26 [1] : vector<8x8xf32> to vector<8xf32>
    %44 = vector.shape_cast %43 : vector<8xf32> to vector<8x1xf32>
    %45 = vector.broadcast %44 : vector<8x1xf32> to vector<8x8xf32>
    %46 = arith.subf %42, %45 : vector<8x8xf32>
    %47 = math.exp %46 : vector<8x8xf32>
    %cst_27 = arith.constant dense<0.000000e+00> : vector<8xf32>
    %48 = vector.multi_reduction <add>, %47, %cst_27 [1] : vector<8x8xf32> to vector<8xf32>
    %49 = vector.shape_cast %48 : vector<8xf32> to vector<8x1xf32>
    %50 = tpu.reciprocal %49 {approx = true} : vector<8x1xf32> -> vector<8x1xf32>
    %51 = vector.broadcast %50 : vector<8x1xf32> to vector<8x8xf32>
    %52 = arith.mulf %47, %51 : vector<8x8xf32>
    %53 = arith.truncf %52 : vector<8x8xf32> to vector<8x8xbf16>
    %cst_28 = arith.constant dense<0.000000e+00> : vector<8x32xf32>
    %54 = tpu.matmul %53, %38, %cst_28 {dimension_numbers = #tpu.dot_dimension_numbers<[1], [0], [0], [1], [0, 0, 1, 1], [], []>} : vector<8x8xbf16>, vector<8x32xbf16>, vector<8x32xf32> -> vector<8x32xf32>
    %55 = arith.truncf %54 : vector<8x32xf32> to vector<8x32xbf16>
    %c0_29 = arith.constant 0 : index
    %c32_30 = arith.constant 32 : index
    %56 = vector.load %arg8[%c0_29, %c32_30] : memref<8x128xbf16, #tpu.memory_space<vmem>>, vector<8x32xbf16>
    tpu.vector_store %arg8[%c0_29, %c32_30], %55 {strides = array<i32>} : memref<8x128xbf16, #tpu.memory_space<vmem>>, vector<8x32xbf16>,
    %c0_31 = arith.constant 0 : index
    %c0_32 = arith.constant 0 : index
    %c64 = arith.constant 64 : index
    %57 = vector.load %arg2[%c0_31, %c0_32, %c64] : memref<1x8x128xbf16, #tpu.memory_space<vmem>>, vector<1x8x32xbf16>
    %58 = vector.shape_cast %57 : vector<1x8x32xbf16> to vector<8x32xbf16>
    %c0_33 = arith.constant 0 : index
    %c0_34 = arith.constant 0 : index
    %c64_35 = arith.constant 64 : index
    %59 = vector.load %arg3[%c0_33, %c0_34, %c64_35] : memref<1x8x128xbf16, #tpu.memory_space<vmem>>, vector<1x8x32xbf16>
    %60 = vector.shape_cast %59 : vector<1x8x32xbf16> to vector<8x32xbf16>
    %c0_36 = arith.constant 0 : index
    %c0_37 = arith.constant 0 : index
    %c64_38 = arith.constant 64 : index
    %61 = vector.load %arg4[%c0_36, %c0_37, %c64_38] : memref<1x8x128xbf16, #tpu.memory_space<vmem>>, vector<1x8x32xbf16>
    %62 = vector.shape_cast %61 : vector<1x8x32xbf16> to vector<8x32xbf16>
    %cst_39 = arith.constant dense<0.000000e+00> : vector<8x8xf32>
    %63 = tpu.matmul %58, %60, %cst_39 {dimension_numbers = #tpu.dot_dimension_numbers<[1], [1], [0], [0], [0, 0, 1, 0], [], []>} : vector<8x32xbf16>, vector<8x32xbf16>, vector<8x8xf32> -> vector<8x8xf32>
    %cst_40 = arith.constant 0.176776692 : f32
    %64 = vector.broadcast %cst_40 : f32 to vector<8x8xf32>
    %65 = arith.mulf %63, %64 : vector<8x8xf32>
    %66 = arith.addf %65, %8 : vector<8x8xf32>
    %cst_41 = arith.constant dense<0xFF800000> : vector<8xf32>
    %67 = vector.multi_reduction <maximumf>, %66, %cst_41 [1] : vector<8x8xf32> to vector<8xf32>
    %68 = vector.shape_cast %67 : vector<8xf32> to vector<8x1xf32>
    %69 = vector.broadcast %68 : vector<8x1xf32> to vector<8x8xf32>
    %70 = arith.subf %66, %69 : vector<8x8xf32>
    %71 = math.exp %70 : vector<8x8xf32>
    %cst_42 = arith.constant dense<0.000000e+00> : vector<8xf32>
    %72 = vector.multi_reduction <add>, %71, %cst_42 [1] : vector<8x8xf32> to vector<8xf32>
    %73 = vector.shape_cast %72 : vector<8xf32> to vector<8x1xf32>
    %74 = tpu.reciprocal %73 {approx = true} : vector<8x1xf32> -> vector<8x1xf32>
    %75 = vector.broadcast %74 : vector<8x1xf32> to vector<8x8xf32>
    %76 = arith.mulf %71, %75 : vector<8x8xf32>
    %77 = arith.truncf %76 : vector<8x8xf32> to vector<8x8xbf16>
    %cst_43 = arith.constant dense<0.000000e+00> : vector<8x32xf32>
    %78 = tpu.matmul %77, %62, %cst_43 {dimension_numbers = #tpu.dot_dimension_numbers<[1], [0], [0], [1], [0, 0, 1, 1], [], []>} : vector<8x8xbf16>, vector<8x32xbf16>, vector<8x32xf32> -> vector<8x32xf32>
    %79 = arith.truncf %78 : vector<8x32xf32> to vector<8x32xbf16>
    %c0_44 = arith.constant 0 : index
    %c64_45 = arith.constant 64 : index
    %80 = vector.load %arg8[%c0_44, %c64_45] : memref<8x128xbf16, #tpu.memory_space<vmem>>, vector<8x32xbf16>
    tpu.vector_store %arg8[%c0_44, %c64_45], %79 {strides = array<i32>} : memref<8x128xbf16, #tpu.memory_space<vmem>>, vector<8x32xbf16>,
    %c0_46 = arith.constant 0 : index
    %c0_47 = arith.constant 0 : index
    %c96 = arith.constant 96 : index
    %81 = vector.load %arg2[%c0_46, %c0_47, %c96] : memref<1x8x128xbf16, #tpu.memory_space<vmem>>, vector<1x8x32xbf16>
    %82 = vector.shape_cast %81 : vector<1x8x32xbf16> to vector<8x32xbf16>
    %c0_48 = arith.constant 0 : index
    %c0_49 = arith.constant 0 : index
    %c96_50 = arith.constant 96 : index
    %83 = vector.load %arg3[%c0_48, %c0_49, %c96_50] : memref<1x8x128xbf16, #tpu.memory_space<vmem>>, vector<1x8x32xbf16>
    %84 = vector.shape_cast %83 : vector<1x8x32xbf16> to vector<8x32xbf16>
    %c0_51 = arith.constant 0 : index
    %c0_52 = arith.constant 0 : index
    %c96_53 = arith.constant 96 : index
    %85 = vector.load %arg4[%c0_51, %c0_52, %c96_53] : memref<1x8x128xbf16, #tpu.memory_space<vmem>>, vector<1x8x32xbf16>
    %86 = vector.shape_cast %85 : vector<1x8x32xbf16> to vector<8x32xbf16>
    %cst_54 = arith.constant dense<0.000000e+00> : vector<8x8xf32>
    %87 = tpu.matmul %82, %84, %cst_54 {dimension_numbers = #tpu.dot_dimension_numbers<[1], [1], [0], [0], [0, 0, 1, 0], [], []>} : vector<8x32xbf16>, vector<8x32xbf16>, vector<8x8xf32> -> vector<8x8xf32>
    %cst_55 = arith.constant 0.176776692 : f32
    %88 = vector.broadcast %cst_55 : f32 to vector<8x8xf32>
    %89 = arith.mulf %87, %88 : vector<8x8xf32>
    %90 = arith.addf %89, %8 : vector<8x8xf32>
    %cst_56 = arith.constant dense<0xFF800000> : vector<8xf32>
    %91 = vector.multi_reduction <maximumf>, %90, %cst_56 [1] : vector<8x8xf32> to vector<8xf32>
    %92 = vector.shape_cast %91 : vector<8xf32> to vector<8x1xf32>
    %93 = vector.broadcast %92 : vector<8x1xf32> to vector<8x8xf32>
    %94 = arith.subf %90, %93 : vector<8x8xf32>
    %95 = math.exp %94 : vector<8x8xf32>
    %cst_57 = arith.constant dense<0.000000e+00> : vector<8xf32>
    %96 = vector.multi_reduction <add>, %95, %cst_57 [1] : vector<8x8xf32> to vector<8xf32>
    %97 = vector.shape_cast %96 : vector<8xf32> to vector<8x1xf32>
    %98 = tpu.reciprocal %97 {approx = true} : vector<8x1xf32> -> vector<8x1xf32>
    %99 = vector.broadcast %98 : vector<8x1xf32> to vector<8x8xf32>
    %100 = arith.mulf %95, %99 : vector<8x8xf32>
    %101 = arith.truncf %100 : vector<8x8xf32> to vector<8x8xbf16>
    %cst_58 = arith.constant dense<0.000000e+00> : vector<8x32xf32>
    %102 = tpu.matmul %101, %86, %cst_58 {dimension_numbers = #tpu.dot_dimension_numbers<[1], [0], [0], [1], [0, 0, 1, 1], [], []>} : vector<8x8xbf16>, vector<8x32xbf16>, vector<8x32xf32> -> vector<8x32xf32>
    %103 = arith.truncf %102 : vector<8x32xf32> to vector<8x32xbf16>
    %c0_59 = arith.constant 0 : index
    %c96_60 = arith.constant 96 : index
    %104 = vector.load %arg8[%c0_59, %c96_60] : memref<8x128xbf16, #tpu.memory_space<vmem>>, vector<8x32xbf16>
    tpu.vector_store %arg8[%c0_59, %c96_60], %103 {strides = array<i32>} : memref<8x128xbf16, #tpu.memory_space<vmem>>, vector<8x32xbf16>,
    %c0_61 = arith.constant 0 : index
    %c0_62 = arith.constant 0 : index
    %c0_63 = arith.constant 0 : index
    %105 = vector.load %arg6[%c0_61, %c0_62, %c0_63] : memref<1x8x128xf32, #tpu.memory_space<vmem>>, vector<1x8x128xf32>
    %106 = vector.shape_cast %105 : vector<1x8x128xf32> to vector<8x128xf32>
    %c0_64 = arith.constant 0 : index
    %c0_65 = arith.constant 0 : index
    %107 = vector.load %arg8[%c0_64, %c0_65] : memref<8x128xbf16, #tpu.memory_space<vmem>>, vector<8x128xbf16>
    %c0_66 = arith.constant 0 : index
    %c0_67 = arith.constant 0 : index
    %108 = vector.load %arg5[%c0_66, %c0_67] : memref<128x128xbf16, #tpu.memory_space<vmem>>, vector<128x128xbf16>
    %cst_68 = arith.constant dense<0.000000e+00> : vector<8x128xf32>
    %109 = tpu.matmul %107, %108, %cst_68 {dimension_numbers = #tpu.dot_dimension_numbers<[1], [0], [0], [1], [0, 0, 1, 1], [], []>} : vector<8x128xbf16>, vector<128x128xbf16>, vector<8x128xf32> -> vector<8x128xf32>
    %110 = arith.addf %106, %109 : vector<8x128xf32>
    %c0_69 = arith.constant 0 : index
    %c0_70 = arith.constant 0 : index
    %c0_71 = arith.constant 0 : index
    %111 = vector.load %arg7[%c0_69, %c0_70, %c0_71] : memref<1x8x128xf32, #tpu.memory_space<vmem>>, vector<1x8x128xf32>
    %112 = vector.shape_cast %111 : vector<1x8x128xf32> to vector<8x128xf32>
    %113 = vector.shape_cast %110 : vector<8x128xf32> to vector<1x8x128xf32>
    tpu.vector_store %arg7[%c0_69, %c0_70, %c0_71], %113 {strides = array<i32>} : memref<1x8x128xf32, #tpu.memory_space<vmem>>, vector<1x8x128xf32>,
    return
  }
  func.func @transform_0(%arg0: i32, %arg1: i32) -> (i32, i32, i32) {
    %c0_i32 = arith.constant 0 : i32
    %c0_i32_0 = arith.constant 0 : i32
    return %arg0, %arg1, %c0_i32 : i32, i32, i32
  }
  func.func @transform_1(%arg0: i32, %arg1: i32) -> (i32, i32, i32) {
    %c0_i32 = arith.constant 0 : i32
    %c1_i32 = arith.constant 1 : i32
    %c0_i32_0 = arith.constant 0 : i32
    return %arg0, %c0_i32, %c1_i32 : i32, i32, i32
  }
  func.func @transform_2(%arg0: i32, %arg1: i32) -> (i32, i32, i32) {
    %c0_i32 = arith.constant 0 : i32
    %c2_i32 = arith.constant 2 : i32
    %c0_i32_0 = arith.constant 0 : i32
    return %arg0, %c0_i32, %c2_i32 : i32, i32, i32
  }
  func.func @transform_3(%arg0: i32, %arg1: i32) -> (i32, i32) {
    %c0_i32 = arith.constant 0 : i32
    %c0_i32_0 = arith.constant 0 : i32
    %c0_i32_1 = arith.constant 0 : i32
    return %c0_i32, %c0_i32_0 : i32, i32
  }
  func.func @transform_4(%arg0: i32, %arg1: i32) -> (i32, i32, i32) {
    %c0_i32 = arith.constant 0 : i32
    %c0_i32_0 = arith.constant 0 : i32
    return %arg0, %arg1, %c0_i32 : i32, i32, i32
  }
  func.func @transform_5(%arg0: i32, %arg1: i32) -> (i32, i32, i32) {
    %c0_i32 = arith.constant 0 : i32
    %c0_i32_0 = arith.constant 0 : i32
    return %arg0, %arg1, %c0_i32 : i32, i32, i32
  }
}

module attributes {stable_mosaic.version = 11 : i64} {
  func.func @kernel(%arg0: i32, %arg1: i32, %arg2: i32, %arg3: memref<16x128xf32, #tpu.memory_space<vmem>>, %arg4: memref<1x128xf32, #tpu.memory_space<vmem>>, %arg5: memref<128x128xbf16, #tpu.memory_space<vmem>>, %arg6: memref<16x128xbf16, #tpu.memory_space<vmem>>, %arg7: memref<16x128xf32, #tpu.memory_space<vmem>>, %arg8: memref<16x128xbf16, #tpu.memory_space<vmem>>) attributes {dimension_semantics = [#tpu.dimension_semantics<parallel>, #tpu.dimension_semantics<arbitrary>, #tpu.dimension_semantics<arbitrary>], iteration_bounds = array<i64: 1, 1, 1>, scalar_prefetch = 0 : i64, scratch_operands = 2 : i64, tpu.core_type = #tpu.core_type<tc>, window_params = [{transform_indices = @transform_0, window_bounds = array<i64: 16, 128>}, {pipeline_mode = #tpu.pipeline_mode<synchronous>, transform_indices = @transform_1, window_bounds = array<i64: 1, 128>}, {transform_indices = @transform_2, window_bounds = array<i64: 128, 128>}, {transform_indices = @transform_3, window_bounds = array<i64: 16, 128>}]} {
    %c0_i32 = arith.constant 0 : i32
    %0 = arith.cmpi eq, %arg2, %c0_i32 : i32
    %1 = arith.extui %0 : i1 to i32
    %c0_i32_0 = arith.constant 0 : i32
    %2 = arith.cmpi ne, %1, %c0_i32_0 : i32
    scf.if %2 {
      %cst_12 = arith.constant 0.000000e+00 : f32
      %15 = vector.broadcast %cst_12 : f32 to vector<16x128xf32>
      %c0_13 = arith.constant 0 : index
      %c0_14 = arith.constant 0 : index
      %16 = vector.load %arg7[%c0_13, %c0_14] : memref<16x128xf32, #tpu.memory_space<vmem>>, vector<16x128xf32>
      tpu.vector_store %arg7[%c0_13, %c0_14], %15 {strides = array<i32>} : memref<16x128xf32, #tpu.memory_space<vmem>>, vector<16x128xf32>,
    } else {
    }
    %c0_i32_1 = arith.constant 0 : i32
    %3 = arith.cmpi eq, %arg1, %c0_i32_1 : i32
    %4 = arith.extui %3 : i1 to i32
    %c0_i32_2 = arith.constant 0 : i32
    %5 = arith.cmpi ne, %4, %c0_i32_2 : i32
    scf.if %5 {
      %c0_12 = arith.constant 0 : index
      %c0_13 = arith.constant 0 : index
      %15 = vector.load %arg3[%c0_12, %c0_13] : memref<16x128xf32, #tpu.memory_space<vmem>>, vector<16x128xf32>
      %16 = arith.mulf %15, %15 : vector<16x128xf32>
      %cst_14 = arith.constant dense<0.000000e+00> : vector<16xf32>
      %17 = vector.multi_reduction <add>, %16, %cst_14 [1] : vector<16x128xf32> to vector<16xf32>
      %18 = vector.shape_cast %17 : vector<16xf32> to vector<16x1xf32>
      %cst_15 = arith.constant 7.812500e-03 : f32
      %19 = vector.broadcast %cst_15 : f32 to vector<16x1xf32>
      %20 = arith.mulf %18, %19 : vector<16x1xf32>
      %cst_16 = arith.constant 9.99999974E-6 : f32
      %21 = vector.broadcast %cst_16 : f32 to vector<16x1xf32>
      %22 = arith.addf %20, %21 : vector<16x1xf32>
      %23 = math.rsqrt %22 : vector<16x1xf32>
      %24 = vector.broadcast %23 : vector<16x1xf32> to vector<16x128xf32>
      %25 = arith.mulf %15, %24 : vector<16x128xf32>
      %c0_17 = arith.constant 0 : index
      %c0_18 = arith.constant 0 : index
      %26 = vector.load %arg4[%c0_17, %c0_18] : memref<1x128xf32, #tpu.memory_space<vmem>>, vector<1x128xf32>
      %27 = vector.broadcast %26 : vector<1x128xf32> to vector<16x128xf32>
      %28 = arith.mulf %25, %27 : vector<16x128xf32>
      %29 = arith.truncf %28 : vector<16x128xf32> to vector<16x128xbf16>
      %c0_19 = arith.constant 0 : index
      %c0_20 = arith.constant 0 : index
      %30 = vector.load %arg8[%c0_19, %c0_20] : memref<16x128xbf16, #tpu.memory_space<vmem>>, vector<16x128xbf16>
      tpu.vector_store %arg8[%c0_19, %c0_20], %29 {strides = array<i32>} : memref<16x128xbf16, #tpu.memory_space<vmem>>, vector<16x128xbf16>,
    } else {
    }
    %c0 = arith.constant 0 : index
    %c0_3 = arith.constant 0 : index
    %6 = vector.load %arg8[%c0, %c0_3] : memref<16x128xbf16, #tpu.memory_space<vmem>>, vector<16x128xbf16>
    %c0_4 = arith.constant 0 : index
    %c0_5 = arith.constant 0 : index
    %7 = vector.load %arg7[%c0_4, %c0_5] : memref<16x128xf32, #tpu.memory_space<vmem>>, vector<16x128xf32>
    %c0_6 = arith.constant 0 : index
    %c0_7 = arith.constant 0 : index
    %8 = vector.load %arg5[%c0_6, %c0_7] : memref<128x128xbf16, #tpu.memory_space<vmem>>, vector<128x128xbf16>
    %cst = arith.constant dense<0.000000e+00> : vector<16x128xf32>
    %9 = tpu.matmul %6, %8, %cst {dimension_numbers = #tpu.dot_dimension_numbers<[1], [0], [0], [1], [0, 0, 1, 1], [], []>} : vector<16x128xbf16>, vector<128x128xbf16>, vector<16x128xf32> -> vector<16x128xf32>
    %10 = arith.addf %7, %9 : vector<16x128xf32>
    %c0_8 = arith.constant 0 : index
    %c0_9 = arith.constant 0 : index
    %11 = vector.load %arg7[%c0_8, %c0_9] : memref<16x128xf32, #tpu.memory_space<vmem>>, vector<16x128xf32>
    tpu.vector_store %arg7[%c0_8, %c0_9], %10 {strides = array<i32>} : memref<16x128xf32, #tpu.memory_space<vmem>>, vector<16x128xf32>,
    %c0_i32_10 = arith.constant 0 : i32
    %12 = arith.cmpi eq, %arg2, %c0_i32_10 : i32
    %13 = arith.extui %12 : i1 to i32
    %c0_i32_11 = arith.constant 0 : i32
    %14 = arith.cmpi ne, %13, %c0_i32_11 : i32
    scf.if %14 {
      %c0_12 = arith.constant 0 : index
      %c0_13 = arith.constant 0 : index
      %15 = vector.load %arg7[%c0_12, %c0_13] : memref<16x128xf32, #tpu.memory_space<vmem>>, vector<16x128xf32>
      %16 = arith.truncf %15 : vector<16x128xf32> to vector<16x128xbf16>
      %c0_14 = arith.constant 0 : index
      %c0_15 = arith.constant 0 : index
      %17 = vector.load %arg6[%c0_14, %c0_15] : memref<16x128xbf16, #tpu.memory_space<vmem>>, vector<16x128xbf16>
      tpu.vector_store %arg6[%c0_14, %c0_15], %16 {strides = array<i32>} : memref<16x128xbf16, #tpu.memory_space<vmem>>, vector<16x128xbf16>,
    } else {
    }
    return
  }
  func.func @transform_0(%arg0: i32, %arg1: i32, %arg2: i32) -> (i32, i32) {
    %c0_i32 = arith.constant 0 : i32
    return %arg0, %arg2 : i32, i32
  }
  func.func @transform_1(%arg0: i32, %arg1: i32, %arg2: i32) -> (i32, i32) {
    %c0_i32 = arith.constant 0 : i32
    %c0_i32_0 = arith.constant 0 : i32
    %c0_i32_1 = arith.constant 0 : i32
    return %c0_i32, %c0_i32_0 : i32, i32
  }
  func.func @transform_2(%arg0: i32, %arg1: i32, %arg2: i32) -> (i32, i32) {
    %c0_i32 = arith.constant 0 : i32
    return %arg2, %arg1 : i32, i32
  }
  func.func @transform_3(%arg0: i32, %arg1: i32, %arg2: i32) -> (i32, i32) {
    %c0_i32 = arith.constant 0 : i32
    return %arg0, %arg1 : i32, i32
  }
}

module attributes {stable_mosaic.version = 11 : i64} {
  func.func @kernel(%arg0: i32, %arg1: i32, %arg2: i32, %arg3: memref<16x128xbf16, #tpu.memory_space<vmem>>, %arg4: memref<128x256xbf16, #tpu.memory_space<vmem>>, %arg5: memref<16x256xbf16, #tpu.memory_space<vmem>>, %arg6: memref<16x256xf32, #tpu.memory_space<vmem>>) attributes {dimension_semantics = [#tpu.dimension_semantics<parallel>, #tpu.dimension_semantics<parallel>, #tpu.dimension_semantics<arbitrary>], iteration_bounds = array<i64: 1, 1, 1>, scalar_prefetch = 0 : i64, scratch_operands = 1 : i64, tpu.core_type = #tpu.core_type<tc>, window_params = [{transform_indices = @transform_0, window_bounds = array<i64: 16, 128>}, {transform_indices = @transform_1, window_bounds = array<i64: 128, 256>}, {transform_indices = @transform_2, window_bounds = array<i64: 16, 256>}]} {
    %c0_i32 = arith.constant 0 : i32
    %0 = arith.cmpi eq, %arg2, %c0_i32 : i32
    %1 = arith.extui %0 : i1 to i32
    %c0_i32_0 = arith.constant 0 : i32
    %2 = arith.cmpi ne, %1, %c0_i32_0 : i32
    scf.if %2 {
      %cst_10 = arith.constant 0.000000e+00 : f32
      %12 = vector.broadcast %cst_10 : f32 to vector<16x256xf32>
      %c0_11 = arith.constant 0 : index
      %c0_12 = arith.constant 0 : index
      %13 = vector.load %arg6[%c0_11, %c0_12] : memref<16x256xf32, #tpu.memory_space<vmem>>, vector<16x256xf32>
      tpu.vector_store %arg6[%c0_11, %c0_12], %12 {strides = array<i32>} : memref<16x256xf32, #tpu.memory_space<vmem>>, vector<16x256xf32>,
    } else {
    }
    %c0 = arith.constant 0 : index
    %c0_1 = arith.constant 0 : index
    %3 = vector.load %arg3[%c0, %c0_1] : memref<16x128xbf16, #tpu.memory_space<vmem>>, vector<16x128xbf16>
    %c0_2 = arith.constant 0 : index
    %c0_3 = arith.constant 0 : index
    %4 = vector.load %arg6[%c0_2, %c0_3] : memref<16x256xf32, #tpu.memory_space<vmem>>, vector<16x256xf32>
    %c0_4 = arith.constant 0 : index
    %c0_5 = arith.constant 0 : index
    %5 = vector.load %arg4[%c0_4, %c0_5] : memref<128x256xbf16, #tpu.memory_space<vmem>>, vector<128x256xbf16>
    %cst = arith.constant dense<0.000000e+00> : vector<16x256xf32>
    %6 = tpu.matmul %3, %5, %cst {dimension_numbers = #tpu.dot_dimension_numbers<[1], [0], [0], [1], [0, 0, 1, 1], [], []>} : vector<16x128xbf16>, vector<128x256xbf16>, vector<16x256xf32> -> vector<16x256xf32>
    %7 = arith.addf %4, %6 : vector<16x256xf32>
    %c0_6 = arith.constant 0 : index
    %c0_7 = arith.constant 0 : index
    %8 = vector.load %arg6[%c0_6, %c0_7] : memref<16x256xf32, #tpu.memory_space<vmem>>, vector<16x256xf32>
    tpu.vector_store %arg6[%c0_6, %c0_7], %7 {strides = array<i32>} : memref<16x256xf32, #tpu.memory_space<vmem>>, vector<16x256xf32>,
    %c0_i32_8 = arith.constant 0 : i32
    %9 = arith.cmpi eq, %arg2, %c0_i32_8 : i32
    %10 = arith.extui %9 : i1 to i32
    %c0_i32_9 = arith.constant 0 : i32
    %11 = arith.cmpi ne, %10, %c0_i32_9 : i32
    scf.if %11 {
      %c0_10 = arith.constant 0 : index
      %c0_11 = arith.constant 0 : index
      %12 = vector.load %arg6[%c0_10, %c0_11] : memref<16x256xf32, #tpu.memory_space<vmem>>, vector<16x256xf32>
      %13 = arith.truncf %12 : vector<16x256xf32> to vector<16x256xbf16>
      %c0_12 = arith.constant 0 : index
      %c0_13 = arith.constant 0 : index
      %14 = vector.load %arg5[%c0_12, %c0_13] : memref<16x256xbf16, #tpu.memory_space<vmem>>, vector<16x256xbf16>
      tpu.vector_store %arg5[%c0_12, %c0_13], %13 {strides = array<i32>} : memref<16x256xbf16, #tpu.memory_space<vmem>>, vector<16x256xbf16>,
    } else {
    }
    return
  }
  func.func @transform_0(%arg0: i32, %arg1: i32, %arg2: i32) -> (i32, i32) {
    %c0_i32 = arith.constant 0 : i32
    return %arg0, %arg2 : i32, i32
  }
  func.func @transform_1(%arg0: i32, %arg1: i32, %arg2: i32) -> (i32, i32) {
    %c0_i32 = arith.constant 0 : i32
    return %arg2, %arg1 : i32, i32
  }
  func.func @transform_2(%arg0: i32, %arg1: i32, %arg2: i32) -> (i32, i32) {
    %c0_i32 = arith.constant 0 : i32
    return %arg0, %arg1 : i32, i32
  }
}

module attributes {stable_mosaic.version = 11 : i64} {
  func.func @_attn_kernel(%arg0: i32, %arg1: i32, %arg2: memref<1x8x128xbf16, #tpu.memory_space<vmem>>, %arg3: memref<1x8x128xbf16, #tpu.memory_space<vmem>>, %arg4: memref<1x8x128xbf16, #tpu.memory_space<vmem>>, %arg5: memref<128x128xbf16, #tpu.memory_space<vmem>>, %arg6: memref<1x8x128xf32, #tpu.memory_space<vmem>>, %arg7: memref<1x8x128xf32, #tpu.memory_space<vmem>>, %arg8: memref<8x128xbf16, #tpu.memory_space<vmem>>) attributes {dimension_semantics = [#tpu.dimension_semantics<parallel>, #tpu.dimension_semantics<parallel>], iteration_bounds = array<i64: 2, 1>, scalar_prefetch = 0 : i64, scratch_operands = 1 : i64, tpu.core_type = #tpu.core_type<tc>, window_params = [{transform_indices = @transform_0, window_bounds = array<i64: 1, 8, 128>}, {transform_indices = @transform_1, window_bounds = array<i64: 1, 8, 128>}, {transform_indices = @transform_2, window_bounds = array<i64: 1, 8, 128>}, {pipeline_mode = #tpu.pipeline_mode<synchronous>, transform_indices = @transform_3, window_bounds = array<i64: 128, 128>}, {transform_indices = @transform_4, window_bounds = array<i64: 1, 8, 128>}, {transform_indices = @transform_5, window_bounds = array<i64: 1, 8, 128>}]} {
    %c0 = arith.constant 0 : index
    %c0_0 = arith.constant 0 : index
    %c0_1 = arith.constant 0 : index
    %0 = vector.load %arg2[%c0, %c0_0, %c0_1] : memref<1x8x128xbf16, #tpu.memory_space<vmem>>, vector<1x8x32xbf16>
    %1 = vector.shape_cast %0 : vector<1x8x32xbf16> to vector<8x32xbf16>
    %c0_2 = arith.constant 0 : index
    %c0_3 = arith.constant 0 : index
    %c0_4 = arith.constant 0 : index
    %2 = vector.load %arg3[%c0_2, %c0_3, %c0_4] : memref<1x8x128xbf16, #tpu.memory_space<vmem>>, vector<1x8x32xbf16>
    %3 = vector.shape_cast %2 : vector<1x8x32xbf16> to vector<8x32xbf16>
    %c0_5 = arith.constant 0 : index
    %c0_6 = arith.constant 0 : index
    %c0_7 = arith.constant 0 : index
    %4 = vector.load %arg4[%c0_5, %c0_6, %c0_7] : memref<1x8x128xbf16, #tpu.memory_space<vmem>>, vector<1x8x32xbf16>
    %5 = vector.shape_cast %4 : vector<1x8x32xbf16> to vector<8x32xbf16>
    %cst = arith.constant dense<0.000000e+00> : vector<8x8xf32>
    %6 = tpu.matmul %1, %3, %cst {dimension_numbers = #tpu.dot_dimension_numbers<[1], [1], [0], [0], [0, 0, 1, 0], [], []>} : vector<8x32xbf16>, vector<8x32xbf16>, vector<8x8xf32> -> vector<8x8xf32>
    %cst_8 = arith.constant 0.176776692 : f32
    %7 = vector.broadcast %cst_8 : f32 to vector<8x8xf32>
    %8 = arith.mulf %6, %7 : vector<8x8xf32>
    %cst_9 = arith.constant dense<0xFF800000> : vector<8xf32>
    %9 = vector.multi_reduction <maximumf>, %8, %cst_9 [1] : vector<8x8xf32> to vector<8xf32>
    %10 = vector.shape_cast %9 : vector<8xf32> to vector<8x1xf32>
    %11 = vector.broadcast %10 : vector<8x1xf32> to vector<8x8xf32>
    %12 = arith.subf %8, %11 : vector<8x8xf32>
    %13 = math.exp %12 : vector<8x8xf32>
    %cst_10 = arith.constant dense<0.000000e+00> : vector<8xf32>
    %14 = vector.multi_reduction <add>, %13, %cst_10 [1] : vector<8x8xf32> to vector<8xf32>
    %15 = vector.shape_cast %14 : vector<8xf32> to vector<8x1xf32>
    %16 = tpu.reciprocal %15 {approx = true} : vector<8x1xf32> -> vector<8x1xf32>
    %17 = vector.broadcast %16 : vector<8x1xf32> to vector<8x8xf32>
    %18 = arith.mulf %13, %17 : vector<8x8xf32>
    %19 = arith.truncf %18 : vector<8x8xf32> to vector<8x8xbf16>
    %cst_11 = arith.constant dense<0.000000e+00> : vector<8x32xf32>
    %20 = tpu.matmul %19, %5, %cst_11 {dimension_numbers = #tpu.dot_dimension_numbers<[1], [0], [0], [1], [0, 0, 1, 1], [], []>} : vector<8x8xbf16>, vector<8x32xbf16>, vector<8x32xf32> -> vector<8x32xf32>
    %21 = arith.truncf %20 : vector<8x32xf32> to vector<8x32xbf16>
    %c0_12 = arith.constant 0 : index
    %c0_13 = arith.constant 0 : index
    %22 = vector.load %arg8[%c0_12, %c0_13] : memref<8x128xbf16, #tpu.memory_space<vmem>>, vector<8x32xbf16>
    tpu.vector_store %arg8[%c0_12, %c0_13], %21 {strides = array<i32>} : memref<8x128xbf16, #tpu.memory_space<vmem>>, vector<8x32xbf16>,
    %c0_14 = arith.constant 0 : index
    %c0_15 = arith.constant 0 : index
    %c32 = arith.constant 32 : index
    %23 = vector.load %arg2[%c0_14, %c0_15, %c32] : memref<1x8x128xbf16, #tpu.memory_space<vmem>>, vector<1x8x32xbf16>
    %24 = vector.shape_cast %23 : vector<1x8x32xbf16> to vector<8x32xbf16>
    %c0_16 = arith.constant 0 : index
    %c0_17 = arith.constant 0 : index
    %c32_18 = arith.constant 32 : index
    %25 = vector.load %arg3[%c0_16, %c0_17, %c32_18] : memref<1x8x128xbf16, #tpu.memory_space<vmem>>, vector<1x8x32xbf16>
    %26 = vector.shape_cast %25 : vector<1x8x32xbf16> to vector<8x32xbf16>
    %c0_19 = arith.constant 0 : index
    %c0_20 = arith.constant 0 : index
    %c32_21 = arith.constant 32 : index
    %27 = vector.load %arg4[%c0_19, %c0_20, %c32_21] : memref<1x8x128xbf16, #tpu.memory_space<vmem>>, vector<1x8x32xbf16>
    %28 = vector.shape_cast %27 : vector<1x8x32xbf16> to vector<8x32xbf16>
    %cst_22 = arith.constant dense<0.000000e+00> : vector<8x8xf32>
    %29 = tpu.matmul %24, %26, %cst_22 {dimension_numbers = #tpu.dot_dimension_numbers<[1], [1], [0], [0], [0, 0, 1, 0], [], []>} : vector<8x32xbf16>, vector<8x32xbf16>, vector<8x8xf32> -> vector<8x8xf32>
    %cst_23 = arith.constant 0.176776692 : f32
    %30 = vector.broadcast %cst_23 : f32 to vector<8x8xf32>
    %31 = arith.mulf %29, %30 : vector<8x8xf32>
    %cst_24 = arith.constant dense<0xFF800000> : vector<8xf32>
    %32 = vector.multi_reduction <maximumf>, %31, %cst_24 [1] : vector<8x8xf32> to vector<8xf32>
    %33 = vector.shape_cast %32 : vector<8xf32> to vector<8x1xf32>
    %34 = vector.broadcast %33 : vector<8x1xf32> to vector<8x8xf32>
    %35 = arith.subf %31, %34 : vector<8x8xf32>
    %36 = math.exp %35 : vector<8x8xf32>
    %cst_25 = arith.constant dense<0.000000e+00> : vector<8xf32>
    %37 = vector.multi_reduction <add>, %36, %cst_25 [1] : vector<8x8xf32> to vector<8xf32>
    %38 = vector.shape_cast %37 : vector<8xf32> to vector<8x1xf32>
    %39 = tpu.reciprocal %38 {approx = true} : vector<8x1xf32> -> vector<8x1xf32>
    %40 = vector.broadcast %39 : vector<8x1xf32> to vector<8x8xf32>
    %41 = arith.mulf %36, %40 : vector<8x8xf32>
    %42 = arith.truncf %41 : vector<8x8xf32> to vector<8x8xbf16>
    %cst_26 = arith.constant dense<0.000000e+00> : vector<8x32xf32>
    %43 = tpu.matmul %42, %28, %cst_26 {dimension_numbers = #tpu.dot_dimension_numbers<[1], [0], [0], [1], [0, 0, 1, 1], [], []>} : vector<8x8xbf16>, vector<8x32xbf16>, vector<8x32xf32> -> vector<8x32xf32>
    %44 = arith.truncf %43 : vector<8x32xf32> to vector<8x32xbf16>
    %c0_27 = arith.constant 0 : index
    %c32_28 = arith.constant 32 : index
    %45 = vector.load %arg8[%c0_27, %c32_28] : memref<8x128xbf16, #tpu.memory_space<vmem>>, vector<8x32xbf16>
    tpu.vector_store %arg8[%c0_27, %c32_28], %44 {strides = array<i32>} : memref<8x128xbf16, #tpu.memory_space<vmem>>, vector<8x32xbf16>,
    %c0_29 = arith.constant 0 : index
    %c0_30 = arith.constant 0 : index
    %c64 = arith.constant 64 : index
    %46 = vector.load %arg2[%c0_29, %c0_30, %c64] : memref<1x8x128xbf16, #tpu.memory_space<vmem>>, vector<1x8x32xbf16>
    %47 = vector.shape_cast %46 : vector<1x8x32xbf16> to vector<8x32xbf16>
    %c0_31 = arith.constant 0 : index
    %c0_32 = arith.constant 0 : index
    %c64_33 = arith.constant 64 : index
    %48 = vector.load %arg3[%c0_31, %c0_32, %c64_33] : memref<1x8x128xbf16, #tpu.memory_space<vmem>>, vector<1x8x32xbf16>
    %49 = vector.shape_cast %48 : vector<1x8x32xbf16> to vector<8x32xbf16>
    %c0_34 = arith.constant 0 : index
    %c0_35 = arith.constant 0 : index
    %c64_36 = arith.constant 64 : index
    %50 = vector.load %arg4[%c0_34, %c0_35, %c64_36] : memref<1x8x128xbf16, #tpu.memory_space<vmem>>, vector<1x8x32xbf16>
    %51 = vector.shape_cast %50 : vector<1x8x32xbf16> to vector<8x32xbf16>
    %cst_37 = arith.constant dense<0.000000e+00> : vector<8x8xf32>
    %52 = tpu.matmul %47, %49, %cst_37 {dimension_numbers = #tpu.dot_dimension_numbers<[1], [1], [0], [0], [0, 0, 1, 0], [], []>} : vector<8x32xbf16>, vector<8x32xbf16>, vector<8x8xf32> -> vector<8x8xf32>
    %cst_38 = arith.constant 0.176776692 : f32
    %53 = vector.broadcast %cst_38 : f32 to vector<8x8xf32>
    %54 = arith.mulf %52, %53 : vector<8x8xf32>
    %cst_39 = arith.constant dense<0xFF800000> : vector<8xf32>
    %55 = vector.multi_reduction <maximumf>, %54, %cst_39 [1] : vector<8x8xf32> to vector<8xf32>
    %56 = vector.shape_cast %55 : vector<8xf32> to vector<8x1xf32>
    %57 = vector.broadcast %56 : vector<8x1xf32> to vector<8x8xf32>
    %58 = arith.subf %54, %57 : vector<8x8xf32>
    %59 = math.exp %58 : vector<8x8xf32>
    %cst_40 = arith.constant dense<0.000000e+00> : vector<8xf32>
    %60 = vector.multi_reduction <add>, %59, %cst_40 [1] : vector<8x8xf32> to vector<8xf32>
    %61 = vector.shape_cast %60 : vector<8xf32> to vector<8x1xf32>
    %62 = tpu.reciprocal %61 {approx = true} : vector<8x1xf32> -> vector<8x1xf32>
    %63 = vector.broadcast %62 : vector<8x1xf32> to vector<8x8xf32>
    %64 = arith.mulf %59, %63 : vector<8x8xf32>
    %65 = arith.truncf %64 : vector<8x8xf32> to vector<8x8xbf16>
    %cst_41 = arith.constant dense<0.000000e+00> : vector<8x32xf32>
    %66 = tpu.matmul %65, %51, %cst_41 {dimension_numbers = #tpu.dot_dimension_numbers<[1], [0], [0], [1], [0, 0, 1, 1], [], []>} : vector<8x8xbf16>, vector<8x32xbf16>, vector<8x32xf32> -> vector<8x32xf32>
    %67 = arith.truncf %66 : vector<8x32xf32> to vector<8x32xbf16>
    %c0_42 = arith.constant 0 : index
    %c64_43 = arith.constant 64 : index
    %68 = vector.load %arg8[%c0_42, %c64_43] : memref<8x128xbf16, #tpu.memory_space<vmem>>, vector<8x32xbf16>
    tpu.vector_store %arg8[%c0_42, %c64_43], %67 {strides = array<i32>} : memref<8x128xbf16, #tpu.memory_space<vmem>>, vector<8x32xbf16>,
    %c0_44 = arith.constant 0 : index
    %c0_45 = arith.constant 0 : index
    %c96 = arith.constant 96 : index
    %69 = vector.load %arg2[%c0_44, %c0_45, %c96] : memref<1x8x128xbf16, #tpu.memory_space<vmem>>, vector<1x8x32xbf16>
    %70 = vector.shape_cast %69 : vector<1x8x32xbf16> to vector<8x32xbf16>
    %c0_46 = arith.constant 0 : index
    %c0_47 = arith.constant 0 : index
    %c96_48 = arith.constant 96 : index
    %71 = vector.load %arg3[%c0_46, %c0_47, %c96_48] : memref<1x8x128xbf16, #tpu.memory_space<vmem>>, vector<1x8x32xbf16>
    %72 = vector.shape_cast %71 : vector<1x8x32xbf16> to vector<8x32xbf16>
    %c0_49 = arith.constant 0 : index
    %c0_50 = arith.constant 0 : index
    %c96_51 = arith.constant 96 : index
    %73 = vector.load %arg4[%c0_49, %c0_50, %c96_51] : memref<1x8x128xbf16, #tpu.memory_space<vmem>>, vector<1x8x32xbf16>
    %74 = vector.shape_cast %73 : vector<1x8x32xbf16> to vector<8x32xbf16>
    %cst_52 = arith.constant dense<0.000000e+00> : vector<8x8xf32>
    %75 = tpu.matmul %70, %72, %cst_52 {dimension_numbers = #tpu.dot_dimension_numbers<[1], [1], [0], [0], [0, 0, 1, 0], [], []>} : vector<8x32xbf16>, vector<8x32xbf16>, vector<8x8xf32> -> vector<8x8xf32>
    %cst_53 = arith.constant 0.176776692 : f32
    %76 = vector.broadcast %cst_53 : f32 to vector<8x8xf32>
    %77 = arith.mulf %75, %76 : vector<8x8xf32>
    %cst_54 = arith.constant dense<0xFF800000> : vector<8xf32>
    %78 = vector.multi_reduction <maximumf>, %77, %cst_54 [1] : vector<8x8xf32> to vector<8xf32>
    %79 = vector.shape_cast %78 : vector<8xf32> to vector<8x1xf32>
    %80 = vector.broadcast %79 : vector<8x1xf32> to vector<8x8xf32>
    %81 = arith.subf %77, %80 : vector<8x8xf32>
    %82 = math.exp %81 : vector<8x8xf32>
    %cst_55 = arith.constant dense<0.000000e+00> : vector<8xf32>
    %83 = vector.multi_reduction <add>, %82, %cst_55 [1] : vector<8x8xf32> to vector<8xf32>
    %84 = vector.shape_cast %83 : vector<8xf32> to vector<8x1xf32>
    %85 = tpu.reciprocal %84 {approx = true} : vector<8x1xf32> -> vector<8x1xf32>
    %86 = vector.broadcast %85 : vector<8x1xf32> to vector<8x8xf32>
    %87 = arith.mulf %82, %86 : vector<8x8xf32>
    %88 = arith.truncf %87 : vector<8x8xf32> to vector<8x8xbf16>
    %cst_56 = arith.constant dense<0.000000e+00> : vector<8x32xf32>
    %89 = tpu.matmul %88, %74, %cst_56 {dimension_numbers = #tpu.dot_dimension_numbers<[1], [0], [0], [1], [0, 0, 1, 1], [], []>} : vector<8x8xbf16>, vector<8x32xbf16>, vector<8x32xf32> -> vector<8x32xf32>
    %90 = arith.truncf %89 : vector<8x32xf32> to vector<8x32xbf16>
    %c0_57 = arith.constant 0 : index
    %c96_58 = arith.constant 96 : index
    %91 = vector.load %arg8[%c0_57, %c96_58] : memref<8x128xbf16, #tpu.memory_space<vmem>>, vector<8x32xbf16>
    tpu.vector_store %arg8[%c0_57, %c96_58], %90 {strides = array<i32>} : memref<8x128xbf16, #tpu.memory_space<vmem>>, vector<8x32xbf16>,
    %c0_59 = arith.constant 0 : index
    %c0_60 = arith.constant 0 : index
    %c0_61 = arith.constant 0 : index
    %92 = vector.load %arg6[%c0_59, %c0_60, %c0_61] : memref<1x8x128xf32, #tpu.memory_space<vmem>>, vector<1x8x128xf32>
    %93 = vector.shape_cast %92 : vector<1x8x128xf32> to vector<8x128xf32>
    %c0_62 = arith.constant 0 : index
    %c0_63 = arith.constant 0 : index
    %94 = vector.load %arg8[%c0_62, %c0_63] : memref<8x128xbf16, #tpu.memory_space<vmem>>, vector<8x128xbf16>
    %c0_64 = arith.constant 0 : index
    %c0_65 = arith.constant 0 : index
    %95 = vector.load %arg5[%c0_64, %c0_65] : memref<128x128xbf16, #tpu.memory_space<vmem>>, vector<128x128xbf16>
    %cst_66 = arith.constant dense<0.000000e+00> : vector<8x128xf32>
    %96 = tpu.matmul %94, %95, %cst_66 {dimension_numbers = #tpu.dot_dimension_numbers<[1], [0], [0], [1], [0, 0, 1, 1], [], []>} : vector<8x128xbf16>, vector<128x128xbf16>, vector<8x128xf32> -> vector<8x128xf32>
    %97 = arith.addf %93, %96 : vector<8x128xf32>
    %c0_67 = arith.constant 0 : index
    %c0_68 = arith.constant 0 : index
    %c0_69 = arith.constant 0 : index
    %98 = vector.load %arg7[%c0_67, %c0_68, %c0_69] : memref<1x8x128xf32, #tpu.memory_space<vmem>>, vector<1x8x128xf32>
    %99 = vector.shape_cast %98 : vector<1x8x128xf32> to vector<8x128xf32>
    %100 = vector.shape_cast %97 : vector<8x128xf32> to vector<1x8x128xf32>
    tpu.vector_store %arg7[%c0_67, %c0_68, %c0_69], %100 {strides = array<i32>} : memref<1x8x128xf32, #tpu.memory_space<vmem>>, vector<1x8x128xf32>,
    return
  }
  func.func @transform_0(%arg0: i32, %arg1: i32) -> (i32, i32, i32) {
    %c0_i32 = arith.constant 0 : i32
    %c0_i32_0 = arith.constant 0 : i32
    return %arg0, %arg1, %c0_i32 : i32, i32, i32
  }
  func.func @transform_1(%arg0: i32, %arg1: i32) -> (i32, i32, i32) {
    %c0_i32 = arith.constant 0 : i32
    %c0_i32_0 = arith.constant 0 : i32
    %c0_i32_1 = arith.constant 0 : i32
    return %arg0, %c0_i32, %c0_i32_0 : i32, i32, i32
  }
  func.func @transform_2(%arg0: i32, %arg1: i32) -> (i32, i32, i32) {
    %c0_i32 = arith.constant 0 : i32
    %c1_i32 = arith.constant 1 : i32
    %c0_i32_0 = arith.constant 0 : i32
    return %arg0, %c0_i32, %c1_i32 : i32, i32, i32
  }
  func.func @transform_3(%arg0: i32, %arg1: i32) -> (i32, i32) {
    %c0_i32 = arith.constant 0 : i32
    %c0_i32_0 = arith.constant 0 : i32
    %c0_i32_1 = arith.constant 0 : i32
    return %c0_i32, %c0_i32_0 : i32, i32
  }
  func.func @transform_4(%arg0: i32, %arg1: i32) -> (i32, i32, i32) {
    %c0_i32 = arith.constant 0 : i32
    %c0_i32_0 = arith.constant 0 : i32
    return %arg0, %arg1, %c0_i32 : i32, i32, i32
  }
  func.func @transform_5(%arg0: i32, %arg1: i32) -> (i32, i32, i32) {
    %c0_i32 = arith.constant 0 : i32
    %c0_i32_0 = arith.constant 0 : i32
    return %arg0, %arg1, %c0_i32 : i32, i32, i32
  }
}

module attributes {stable_mosaic.version = 11 : i64} {
  func.func @kernel(%arg0: i32, %arg1: i32, %arg2: i32, %arg3: memref<16x256xbf16, #tpu.memory_space<vmem>>, %arg4: memref<256x128xbf16, #tpu.memory_space<vmem>>, %arg5: memref<1x128xf32, #tpu.memory_space<vmem>>, %arg6: memref<16x128xf32, #tpu.memory_space<vmem>>, %arg7: memref<16x128xf32, #tpu.memory_space<vmem>>, %arg8: memref<16x128xf32, #tpu.memory_space<vmem>>) attributes {dimension_semantics = [#tpu.dimension_semantics<parallel>, #tpu.dimension_semantics<parallel>, #tpu.dimension_semantics<arbitrary>], iteration_bounds = array<i64: 1, 1, 1>, scalar_prefetch = 0 : i64, scratch_operands = 1 : i64, tpu.core_type = #tpu.core_type<tc>, window_params = [{transform_indices = @transform_0, window_bounds = array<i64: 16, 256>}, {transform_indices = @transform_1, window_bounds = array<i64: 256, 128>}, {transform_indices = @transform_2, window_bounds = array<i64: 1, 128>}, {transform_indices = @transform_3, window_bounds = array<i64: 16, 128>}, {transform_indices = @transform_4, window_bounds = array<i64: 16, 128>}]} {
    %c0_i32 = arith.constant 0 : i32
    %0 = arith.cmpi eq, %arg2, %c0_i32 : i32
    %1 = arith.extui %0 : i1 to i32
    %c0_i32_0 = arith.constant 0 : i32
    %2 = arith.cmpi ne, %1, %c0_i32_0 : i32
    scf.if %2 {
      %cst_10 = arith.constant 0.000000e+00 : f32
      %12 = vector.broadcast %cst_10 : f32 to vector<16x128xf32>
      %c0_11 = arith.constant 0 : index
      %c0_12 = arith.constant 0 : index
      %13 = vector.load %arg8[%c0_11, %c0_12] : memref<16x128xf32, #tpu.memory_space<vmem>>, vector<16x128xf32>
      tpu.vector_store %arg8[%c0_11, %c0_12], %12 {strides = array<i32>} : memref<16x128xf32, #tpu.memory_space<vmem>>, vector<16x128xf32>,
    } else {
    }
    %c0 = arith.constant 0 : index
    %c0_1 = arith.constant 0 : index
    %3 = vector.load %arg3[%c0, %c0_1] : memref<16x256xbf16, #tpu.memory_space<vmem>>, vector<16x256xbf16>
    %c0_2 = arith.constant 0 : index
    %c0_3 = arith.constant 0 : index
    %4 = vector.load %arg8[%c0_2, %c0_3] : memref<16x128xf32, #tpu.memory_space<vmem>>, vector<16x128xf32>
    %c0_4 = arith.constant 0 : index
    %c0_5 = arith.constant 0 : index
    %5 = vector.load %arg4[%c0_4, %c0_5] : memref<256x128xbf16, #tpu.memory_space<vmem>>, vector<256x128xbf16>
    %cst = arith.constant dense<0.000000e+00> : vector<16x128xf32>
    %6 = tpu.matmul %3, %5, %cst {dimension_numbers = #tpu.dot_dimension_numbers<[1], [0], [0], [1], [0, 0, 1, 1], [], []>} : vector<16x256xbf16>, vector<256x128xbf16>, vector<16x128xf32> -> vector<16x128xf32>
    %7 = arith.addf %4, %6 : vector<16x128xf32>
    %c0_6 = arith.constant 0 : index
    %c0_7 = arith.constant 0 : index
    %8 = vector.load %arg8[%c0_6, %c0_7] : memref<16x128xf32, #tpu.memory_space<vmem>>, vector<16x128xf32>
    tpu.vector_store %arg8[%c0_6, %c0_7], %7 {strides = array<i32>} : memref<16x128xf32, #tpu.memory_space<vmem>>, vector<16x128xf32>,
    %c0_i32_8 = arith.constant 0 : i32
    %9 = arith.cmpi eq, %arg2, %c0_i32_8 : i32
    %10 = arith.extui %9 : i1 to i32
    %c0_i32_9 = arith.constant 0 : i32
    %11 = arith.cmpi ne, %10, %c0_i32_9 : i32
    scf.if %11 {
      %c0_10 = arith.constant 0 : index
      %c0_11 = arith.constant 0 : index
      %12 = vector.load %arg8[%c0_10, %c0_11] : memref<16x128xf32, #tpu.memory_space<vmem>>, vector<16x128xf32>
      %c0_12 = arith.constant 0 : index
      %c0_13 = arith.constant 0 : index
      %13 = vector.load %arg5[%c0_12, %c0_13] : memref<1x128xf32, #tpu.memory_space<vmem>>, vector<1x128xf32>
      %14 = vector.broadcast %13 : vector<1x128xf32> to vector<16x128xf32>
      %15 = arith.addf %12, %14 : vector<16x128xf32>
      %c0_14 = arith.constant 0 : index
      %c0_15 = arith.constant 0 : index
      %16 = vector.load %arg6[%c0_14, %c0_15] : memref<16x128xf32, #tpu.memory_space<vmem>>, vector<16x128xf32>
      %17 = arith.addf %15, %16 : vector<16x128xf32>
      %c0_16 = arith.constant 0 : index
      %c0_17 = arith.constant 0 : index
      %18 = vector.load %arg7[%c0_16, %c0_17] : memref<16x128xf32, #tpu.memory_space<vmem>>, vector<16x128xf32>
      tpu.vector_store %arg7[%c0_16, %c0_17], %17 {strides = array<i32>} : memref<16x128xf32, #tpu.memory_space<vmem>>, vector<16x128xf32>,
    } else {
    }
    return
  }
  func.func @transform_0(%arg0: i32, %arg1: i32, %arg2: i32) -> (i32, i32) {
    %c0_i32 = arith.constant 0 : i32
    return %arg0, %arg2 : i32, i32
  }
  func.func @transform_1(%arg0: i32, %arg1: i32, %arg2: i32) -> (i32, i32) {
    %c0_i32 = arith.constant 0 : i32
    return %arg2, %arg1 : i32, i32
  }
  func.func @transform_2(%arg0: i32, %arg1: i32, %arg2: i32) -> (i32, i32) {
    %c0_i32 = arith.constant 0 : i32
    %c0_i32_0 = arith.constant 0 : i32
    return %c0_i32, %arg1 : i32, i32
  }
  func.func @transform_3(%arg0: i32, %arg1: i32, %arg2: i32) -> (i32, i32) {
    %c0_i32 = arith.constant 0 : i32
    return %arg0, %arg1 : i32, i32
  }
  func.func @transform_4(%arg0: i32, %arg1: i32, %arg2: i32) -> (i32, i32) {
    %c0_i32 = arith.constant 0 : i32
    return %arg0, %arg1 : i32, i32
  }
}

module attributes {stable_mosaic.version = 11 : i64} {
  func.func @kernel(%arg0: i32, %arg1: i32, %arg2: i32, %arg3: memref<16x128xf32, #tpu.memory_space<vmem>>, %arg4: memref<1x128xf32, #tpu.memory_space<vmem>>, %arg5: memref<128x256xbf16, #tpu.memory_space<vmem>>, %arg6: memref<1x256xf32, #tpu.memory_space<vmem>>, %arg7: memref<16x256xbf16, #tpu.memory_space<vmem>>, %arg8: memref<16x256xf32, #tpu.memory_space<vmem>>, %arg9: memref<16x128xbf16, #tpu.memory_space<vmem>>) attributes {dimension_semantics = [#tpu.dimension_semantics<parallel>, #tpu.dimension_semantics<arbitrary>, #tpu.dimension_semantics<arbitrary>], iteration_bounds = array<i64: 1, 1, 1>, scalar_prefetch = 0 : i64, scratch_operands = 2 : i64, tpu.core_type = #tpu.core_type<tc>, window_params = [{transform_indices = @transform_0, window_bounds = array<i64: 16, 128>}, {pipeline_mode = #tpu.pipeline_mode<synchronous>, transform_indices = @transform_1, window_bounds = array<i64: 1, 128>}, {transform_indices = @transform_2, window_bounds = array<i64: 128, 256>}, {transform_indices = @transform_3, window_bounds = array<i64: 1, 256>}, {transform_indices = @transform_4, window_bounds = array<i64: 16, 256>}]} {
    %c0_i32 = arith.constant 0 : i32
    %0 = arith.cmpi eq, %arg2, %c0_i32 : i32
    %1 = arith.extui %0 : i1 to i32
    %c0_i32_0 = arith.constant 0 : i32
    %2 = arith.cmpi ne, %1, %c0_i32_0 : i32
    scf.if %2 {
      %cst_12 = arith.constant 0.000000e+00 : f32
      %15 = vector.broadcast %cst_12 : f32 to vector<16x256xf32>
      %c0_13 = arith.constant 0 : index
      %c0_14 = arith.constant 0 : index
      %16 = vector.load %arg8[%c0_13, %c0_14] : memref<16x256xf32, #tpu.memory_space<vmem>>, vector<16x256xf32>
      tpu.vector_store %arg8[%c0_13, %c0_14], %15 {strides = array<i32>} : memref<16x256xf32, #tpu.memory_space<vmem>>, vector<16x256xf32>,
    } else {
    }
    %c0_i32_1 = arith.constant 0 : i32
    %3 = arith.cmpi eq, %arg1, %c0_i32_1 : i32
    %4 = arith.extui %3 : i1 to i32
    %c0_i32_2 = arith.constant 0 : i32
    %5 = arith.cmpi ne, %4, %c0_i32_2 : i32
    scf.if %5 {
      %c0_12 = arith.constant 0 : index
      %c0_13 = arith.constant 0 : index
      %15 = vector.load %arg3[%c0_12, %c0_13] : memref<16x128xf32, #tpu.memory_space<vmem>>, vector<16x128xf32>
      %16 = arith.mulf %15, %15 : vector<16x128xf32>
      %cst_14 = arith.constant dense<0.000000e+00> : vector<16xf32>
      %17 = vector.multi_reduction <add>, %16, %cst_14 [1] : vector<16x128xf32> to vector<16xf32>
      %18 = vector.shape_cast %17 : vector<16xf32> to vector<16x1xf32>
      %cst_15 = arith.constant 7.812500e-03 : f32
      %19 = vector.broadcast %cst_15 : f32 to vector<16x1xf32>
      %20 = arith.mulf %18, %19 : vector<16x1xf32>
      %cst_16 = arith.constant 9.99999974E-6 : f32
      %21 = vector.broadcast %cst_16 : f32 to vector<16x1xf32>
      %22 = arith.addf %20, %21 : vector<16x1xf32>
      %23 = math.rsqrt %22 : vector<16x1xf32>
      %24 = vector.broadcast %23 : vector<16x1xf32> to vector<16x128xf32>
      %25 = arith.mulf %15, %24 : vector<16x128xf32>
      %c0_17 = arith.constant 0 : index
      %c0_18 = arith.constant 0 : index
      %26 = vector.load %arg4[%c0_17, %c0_18] : memref<1x128xf32, #tpu.memory_space<vmem>>, vector<1x128xf32>
      %27 = vector.broadcast %26 : vector<1x128xf32> to vector<16x128xf32>
      %28 = arith.mulf %25, %27 : vector<16x128xf32>
      %29 = arith.truncf %28 : vector<16x128xf32> to vector<16x128xbf16>
      %c0_19 = arith.constant 0 : index
      %c0_20 = arith.constant 0 : index
      %30 = vector.load %arg9[%c0_19, %c0_20] : memref<16x128xbf16, #tpu.memory_space<vmem>>, vector<16x128xbf16>
      tpu.vector_store %arg9[%c0_19, %c0_20], %29 {strides = array<i32>} : memref<16x128xbf16, #tpu.memory_space<vmem>>, vector<16x128xbf16>,
    } else {
    }
    %c0 = arith.constant 0 : index
    %c0_3 = arith.constant 0 : index
    %6 = vector.load %arg9[%c0, %c0_3] : memref<16x128xbf16, #tpu.memory_space<vmem>>, vector<16x128xbf16>
    %c0_4 = arith.constant 0 : index
    %c0_5 = arith.constant 0 : index
    %7 = vector.load %arg8[%c0_4, %c0_5] : memref<16x256xf32, #tpu.memory_space<vmem>>, vector<16x256xf32>
    %c0_6 = arith.constant 0 : index
    %c0_7 = arith.constant 0 : index
    %8 = vector.load %arg5[%c0_6, %c0_7] : memref<128x256xbf16, #tpu.memory_space<vmem>>, vector<128x256xbf16>
    %cst = arith.constant dense<0.000000e+00> : vector<16x256xf32>
    %9 = tpu.matmul %6, %8, %cst {dimension_numbers = #tpu.dot_dimension_numbers<[1], [0], [0], [1], [0, 0, 1, 1], [], []>} : vector<16x128xbf16>, vector<128x256xbf16>, vector<16x256xf32> -> vector<16x256xf32>
    %10 = arith.addf %7, %9 : vector<16x256xf32>
    %c0_8 = arith.constant 0 : index
    %c0_9 = arith.constant 0 : index
    %11 = vector.load %arg8[%c0_8, %c0_9] : memref<16x256xf32, #tpu.memory_space<vmem>>, vector<16x256xf32>
    tpu.vector_store %arg8[%c0_8, %c0_9], %10 {strides = array<i32>} : memref<16x256xf32, #tpu.memory_space<vmem>>, vector<16x256xf32>,
    %c0_i32_10 = arith.constant 0 : i32
    %12 = arith.cmpi eq, %arg2, %c0_i32_10 : i32
    %13 = arith.extui %12 : i1 to i32
    %c0_i32_11 = arith.constant 0 : i32
    %14 = arith.cmpi ne, %13, %c0_i32_11 : i32
    scf.if %14 {
      %c0_12 = arith.constant 0 : index
      %c0_13 = arith.constant 0 : index
      %15 = vector.load %arg8[%c0_12, %c0_13] : memref<16x256xf32, #tpu.memory_space<vmem>>, vector<16x256xf32>
      %c0_14 = arith.constant 0 : index
      %c0_15 = arith.constant 0 : index
      %16 = vector.load %arg6[%c0_14, %c0_15] : memref<1x256xf32, #tpu.memory_space<vmem>>, vector<1x256xf32>
      %17 = vector.broadcast %16 : vector<1x256xf32> to vector<16x256xf32>
      %18 = arith.addf %15, %17 : vector<16x256xf32>
      %19 = arith.mulf %18, %18 : vector<16x256xf32>
      %20 = arith.mulf %18, %19 : vector<16x256xf32>
      %cst_16 = arith.constant 4.471500e-02 : f32
      %21 = vector.broadcast %cst_16 : f32 to vector<16x256xf32>
      %22 = arith.mulf %21, %20 : vector<16x256xf32>
      %23 = arith.addf %18, %22 : vector<16x256xf32>
      %cst_17 = arith.constant 0.797884583 : f32
      %24 = vector.broadcast %cst_17 : f32 to vector<16x256xf32>
      %25 = arith.mulf %24, %23 : vector<16x256xf32>
      %26 = math.tanh %25 : vector<16x256xf32>
      %cst_18 = arith.constant 1.000000e+00 : f32
      %27 = vector.broadcast %cst_18 : f32 to vector<16x256xf32>
      %28 = arith.addf %27, %26 : vector<16x256xf32>
      %cst_19 = arith.constant 5.000000e-01 : f32
      %29 = vector.broadcast %cst_19 : f32 to vector<16x256xf32>
      %30 = arith.mulf %29, %28 : vector<16x256xf32>
      %31 = arith.mulf %18, %30 : vector<16x256xf32>
      %32 = arith.truncf %31 : vector<16x256xf32> to vector<16x256xbf16>
      %c0_20 = arith.constant 0 : index
      %c0_21 = arith.constant 0 : index
      %33 = vector.load %arg7[%c0_20, %c0_21] : memref<16x256xbf16, #tpu.memory_space<vmem>>, vector<16x256xbf16>
      tpu.vector_store %arg7[%c0_20, %c0_21], %32 {strides = array<i32>} : memref<16x256xbf16, #tpu.memory_space<vmem>>, vector<16x256xbf16>,
    } else {
    }
    return
  }
  func.func @transform_0(%arg0: i32, %arg1: i32, %arg2: i32) -> (i32, i32) {
    %c0_i32 = arith.constant 0 : i32
    return %arg0, %arg2 : i32, i32
  }
  func.func @transform_1(%arg0: i32, %arg1: i32, %arg2: i32) -> (i32, i32) {
    %c0_i32 = arith.constant 0 : i32
    %c0_i32_0 = arith.constant 0 : i32
    %c0_i32_1 = arith.constant 0 : i32
    return %c0_i32, %c0_i32_0 : i32, i32
  }
  func.func @transform_2(%arg0: i32, %arg1: i32, %arg2: i32) -> (i32, i32) {
    %c0_i32 = arith.constant 0 : i32
    return %arg2, %arg1 : i32, i32
  }
  func.func @transform_3(%arg0: i32, %arg1: i32, %arg2: i32) -> (i32, i32) {
    %c0_i32 = arith.constant 0 : i32
    %c0_i32_0 = arith.constant 0 : i32
    return %c0_i32, %arg1 : i32, i32
  }
  func.func @transform_4(%arg0: i32, %arg1: i32, %arg2: i32) -> (i32, i32) {
    %c0_i32 = arith.constant 0 : i32
    return %arg0, %arg1 : i32, i32
  }
}

module attributes {stable_mosaic.version = 11 : i64} {
  func.func @kernel(%arg0: i32, %arg1: i32, %arg2: i32, %arg3: memref<16x128xf32, #tpu.memory_space<vmem>>, %arg4: memref<1x128xf32, #tpu.memory_space<vmem>>, %arg5: memref<128x128xbf16, #tpu.memory_space<vmem>>, %arg6: memref<1x128xf32, #tpu.memory_space<vmem>>, %arg7: memref<16x128xf32, #tpu.memory_space<vmem>>, %arg8: memref<16x128xf32, #tpu.memory_space<vmem>>, %arg9: memref<16x128xbf16, #tpu.memory_space<vmem>>) attributes {dimension_semantics = [#tpu.dimension_semantics<parallel>, #tpu.dimension_semantics<arbitrary>, #tpu.dimension_semantics<arbitrary>], iteration_bounds = array<i64: 1, 1, 1>, scalar_prefetch = 0 : i64, scratch_operands = 2 : i64, tpu.core_type = #tpu.core_type<tc>, window_params = [{transform_indices = @transform_0, window_bounds = array<i64: 16, 128>}, {pipeline_mode = #tpu.pipeline_mode<synchronous>, transform_indices = @transform_1, window_bounds = array<i64: 1, 128>}, {transform_indices = @transform_2, window_bounds = array<i64: 128, 128>}, {transform_indices = @transform_3, window_bounds = array<i64: 1, 128>}, {transform_indices = @transform_4, window_bounds = array<i64: 16, 128>}]} {
    %c0_i32 = arith.constant 0 : i32
    %0 = arith.cmpi eq, %arg2, %c0_i32 : i32
    %1 = arith.extui %0 : i1 to i32
    %c0_i32_0 = arith.constant 0 : i32
    %2 = arith.cmpi ne, %1, %c0_i32_0 : i32
    scf.if %2 {
      %cst_12 = arith.constant 0.000000e+00 : f32
      %15 = vector.broadcast %cst_12 : f32 to vector<16x128xf32>
      %c0_13 = arith.constant 0 : index
      %c0_14 = arith.constant 0 : index
      %16 = vector.load %arg8[%c0_13, %c0_14] : memref<16x128xf32, #tpu.memory_space<vmem>>, vector<16x128xf32>
      tpu.vector_store %arg8[%c0_13, %c0_14], %15 {strides = array<i32>} : memref<16x128xf32, #tpu.memory_space<vmem>>, vector<16x128xf32>,
    } else {
    }
    %c0_i32_1 = arith.constant 0 : i32
    %3 = arith.cmpi eq, %arg1, %c0_i32_1 : i32
    %4 = arith.extui %3 : i1 to i32
    %c0_i32_2 = arith.constant 0 : i32
    %5 = arith.cmpi ne, %4, %c0_i32_2 : i32
    scf.if %5 {
      %c0_12 = arith.constant 0 : index
      %c0_13 = arith.constant 0 : index
      %15 = vector.load %arg3[%c0_12, %c0_13] : memref<16x128xf32, #tpu.memory_space<vmem>>, vector<16x128xf32>
      %16 = arith.mulf %15, %15 : vector<16x128xf32>
      %cst_14 = arith.constant dense<0.000000e+00> : vector<16xf32>
      %17 = vector.multi_reduction <add>, %16, %cst_14 [1] : vector<16x128xf32> to vector<16xf32>
      %18 = vector.shape_cast %17 : vector<16xf32> to vector<16x1xf32>
      %cst_15 = arith.constant 7.812500e-03 : f32
      %19 = vector.broadcast %cst_15 : f32 to vector<16x1xf32>
      %20 = arith.mulf %18, %19 : vector<16x1xf32>
      %cst_16 = arith.constant 9.99999974E-6 : f32
      %21 = vector.broadcast %cst_16 : f32 to vector<16x1xf32>
      %22 = arith.addf %20, %21 : vector<16x1xf32>
      %23 = math.rsqrt %22 : vector<16x1xf32>
      %24 = vector.broadcast %23 : vector<16x1xf32> to vector<16x128xf32>
      %25 = arith.mulf %15, %24 : vector<16x128xf32>
      %c0_17 = arith.constant 0 : index
      %c0_18 = arith.constant 0 : index
      %26 = vector.load %arg4[%c0_17, %c0_18] : memref<1x128xf32, #tpu.memory_space<vmem>>, vector<1x128xf32>
      %27 = vector.broadcast %26 : vector<1x128xf32> to vector<16x128xf32>
      %28 = arith.mulf %25, %27 : vector<16x128xf32>
      %29 = arith.truncf %28 : vector<16x128xf32> to vector<16x128xbf16>
      %c0_19 = arith.constant 0 : index
      %c0_20 = arith.constant 0 : index
      %30 = vector.load %arg9[%c0_19, %c0_20] : memref<16x128xbf16, #tpu.memory_space<vmem>>, vector<16x128xbf16>
      tpu.vector_store %arg9[%c0_19, %c0_20], %29 {strides = array<i32>} : memref<16x128xbf16, #tpu.memory_space<vmem>>, vector<16x128xbf16>,
    } else {
    }
    %c0 = arith.constant 0 : index
    %c0_3 = arith.constant 0 : index
    %6 = vector.load %arg9[%c0, %c0_3] : memref<16x128xbf16, #tpu.memory_space<vmem>>, vector<16x128xbf16>
    %c0_4 = arith.constant 0 : index
    %c0_5 = arith.constant 0 : index
    %7 = vector.load %arg8[%c0_4, %c0_5] : memref<16x128xf32, #tpu.memory_space<vmem>>, vector<16x128xf32>
    %c0_6 = arith.constant 0 : index
    %c0_7 = arith.constant 0 : index
    %8 = vector.load %arg5[%c0_6, %c0_7] : memref<128x128xbf16, #tpu.memory_space<vmem>>, vector<128x128xbf16>
    %cst = arith.constant dense<0.000000e+00> : vector<16x128xf32>
    %9 = tpu.matmul %6, %8, %cst {dimension_numbers = #tpu.dot_dimension_numbers<[1], [0], [0], [1], [0, 0, 1, 1], [], []>} : vector<16x128xbf16>, vector<128x128xbf16>, vector<16x128xf32> -> vector<16x128xf32>
    %10 = arith.addf %7, %9 : vector<16x128xf32>
    %c0_8 = arith.constant 0 : index
    %c0_9 = arith.constant 0 : index
    %11 = vector.load %arg8[%c0_8, %c0_9] : memref<16x128xf32, #tpu.memory_space<vmem>>, vector<16x128xf32>
    tpu.vector_store %arg8[%c0_8, %c0_9], %10 {strides = array<i32>} : memref<16x128xf32, #tpu.memory_space<vmem>>, vector<16x128xf32>,
    %c0_i32_10 = arith.constant 0 : i32
    %12 = arith.cmpi eq, %arg2, %c0_i32_10 : i32
    %13 = arith.extui %12 : i1 to i32
    %c0_i32_11 = arith.constant 0 : i32
    %14 = arith.cmpi ne, %13, %c0_i32_11 : i32
    scf.if %14 {
      %c0_12 = arith.constant 0 : index
      %c0_13 = arith.constant 0 : index
      %15 = vector.load %arg8[%c0_12, %c0_13] : memref<16x128xf32, #tpu.memory_space<vmem>>, vector<16x128xf32>
      %c0_14 = arith.constant 0 : index
      %c0_15 = arith.constant 0 : index
      %16 = vector.load %arg6[%c0_14, %c0_15] : memref<1x128xf32, #tpu.memory_space<vmem>>, vector<1x128xf32>
      %17 = vector.broadcast %16 : vector<1x128xf32> to vector<16x128xf32>
      %18 = arith.addf %15, %17 : vector<16x128xf32>
      %c0_16 = arith.constant 0 : index
      %c0_17 = arith.constant 0 : index
      %19 = vector.load %arg7[%c0_16, %c0_17] : memref<16x128xf32, #tpu.memory_space<vmem>>, vector<16x128xf32>
      tpu.vector_store %arg7[%c0_16, %c0_17], %18 {strides = array<i32>} : memref<16x128xf32, #tpu.memory_space<vmem>>, vector<16x128xf32>,
    } else {
    }
    return
  }
  func.func @transform_0(%arg0: i32, %arg1: i32, %arg2: i32) -> (i32, i32) {
    %c0_i32 = arith.constant 0 : i32
    return %arg0, %arg2 : i32, i32
  }
  func.func @transform_1(%arg0: i32, %arg1: i32, %arg2: i32) -> (i32, i32) {
    %c0_i32 = arith.constant 0 : i32
    %c0_i32_0 = arith.constant 0 : i32
    %c0_i32_1 = arith.constant 0 : i32
    return %c0_i32, %c0_i32_0 : i32, i32
  }
  func.func @transform_2(%arg0: i32, %arg1: i32, %arg2: i32) -> (i32, i32) {
    %c0_i32 = arith.constant 0 : i32
    return %arg2, %arg1 : i32, i32
  }
  func.func @transform_3(%arg0: i32, %arg1: i32, %arg2: i32) -> (i32, i32) {
    %c0_i32 = arith.constant 0 : i32
    %c0_i32_0 = arith.constant 0 : i32
    return %c0_i32, %arg1 : i32, i32
  }
  func.func @transform_4(%arg0: i32, %arg1: i32, %arg2: i32) -> (i32, i32) {
    %c0_i32 = arith.constant 0 : i32
    return %arg0, %arg1 : i32, i32
  }
}

</mosaic_0001>

<llo_original>
// kernel: melody_generator_forward.18
$region0: #{melody_generator_forward.18}
  #allocation0 [shape = 'u32[]', space=smem, size = 0x4, offset = 0x4, fixed_abs, tag = 'smem constant byte address 0x4 - core index']
  #allocation1 [shape = 'u32[72,128]{1,0:T(1,128)}', space=vmem, size = 0x9000, scoped, tag = 'internal scratch']
  #allocation2 [shape = 'f32[16,256]{1,0:T(8,128)}', space=vmem, size = 0x4000, scoped, tag = 'scratch operand']
  %s0 = inlined_call_operand.vmem [shape: bf16[16,128], index: 0, kind: input, shape index: {}]
  %s1 = inlined_call_operand.hbm [shape: bf16[128,256], index: 1, kind: input, shape index: {}]
  %s2 = inlined_call_operand.vmem [shape: bf16[16,256], index: 2, kind: output, shape index: {}]
  %s3 = sld [smem:[#allocation0]]
  $region30: #{melody_generator_forward.18} parent=0
    _
  %s5 = ssub.s32 1, %s3
  %s6 = scalar_select 0, %s5, %s3
  $region1: #{melody_generator_forward.18} parent=0
    #allocation3 [shape = 'u8[65536]{0}', space=vmem, size = 0x10000, scoped, tag = 'input window, operand 1, single buffered']
    #allocation4 [shape = 's32[1]{0}', space=sflag, size = 0x4, scoped, tag = 'scoped memory for melody_generator_forward.18']
    %7 = vsyncpa [#allocation4], 0
    // Predicated region
    $region2: #{melody_generator_forward.18} parent=1 // pred_check
      _
    $region3: #{melody_generator_forward.18} parent=1 // pred_check_branch
      %9 = sbr.rel (0) target = $region5
    $region4: #{melody_generator_forward.18} parent=1 // pred_region
      _
    $region5: #{melody_generator_forward.18} parent=1 // pred_fallthru
      _
    // Predicated region
    $region6: #{melody_generator_forward.18} parent=1 // pred_check
      _
    $region7: #{melody_generator_forward.18} parent=1 // pred_check_branch
      %11 = sbr.rel (0) target = $region9
    $region8: #{melody_generator_forward.18} parent=1 // pred_region
      %13 = vsyncadd [#allocation4], 0
      %s14 = sshll.u32 %s1, 4
      %s15 = int_to_ptr.hbm [resolvable:$true] %s14
      %s16 = sshll.u32 [#allocation3], 4
      %s17 = int_to_ptr.vmem [resolvable:$true] %s16
      %22 = dma.hbm_to_vmem [thread:$0]  %s15, 2048, %s17, [#allocation4], 128, 128, 8
    $region9: #{melody_generator_forward.18} parent=1 // pred_fallthru
      _
    // Predicated region
    $region10: #{melody_generator_forward.18} parent=1 // pred_check
      _
    $region11: #{melody_generator_forward.18} parent=1 // pred_check_branch
      %24 = sbr.rel (0) target = $region13
    $region12: #{melody_generator_forward.18} parent=1 // pred_region
      %26 = dma.done [#allocation4], 2048
    $region13: #{melody_generator_forward.18} parent=1 // pred_fallthru
      _
    %p27 = scmp.eq.s32.totalorder 0, 0
    // Predicated region
    $region14: #{melody_generator_forward.18} parent=1 // pred_check
      %p28 = pneg %p27
    $region15: #{melody_generator_forward.18} parent=1 // pred_check_branch
      %30 = sbr.rel (%p28) target = $region17
    $region16: #{melody_generator_forward.18} parent=1 // pred_region
      %31 = vst [vmem:[#allocation2] sm:$0xff] 0.0
      %32 = vst [vmem:[#allocation2 + $0x8] sm:$0xff] 0.0
      %33 = vst [vmem:[#allocation2 + $0x10] sm:$0xff] 0.0
      %34 = vst [vmem:[#allocation2 + $0x18] sm:$0xff] 0.0
    $region17: #{melody_generator_forward.18} parent=1 // pred_fallthru
      _
    %v35 = vld [vmem:[%s0] sm:$0xf]
    %v36 = vld [vmem:[%s0 + $0x4] sm:$0xf]
    %v37 = vld [vmem:[#allocation2] sm:$0xff]
    %v38 = vld [vmem:[#allocation2 + $0x8] sm:$0xff]
    %v39 = vld [vmem:[#allocation2 + $0x10] sm:$0xff]
    %v40 = vld [vmem:[#allocation2 + $0x18] sm:$0xff]
    %v41 = vld [vmem:[#allocation3] sm:$0xff]
    %v42 = vld [vmem:[#allocation3 + $0x8] sm:$0xff]
    %v43 = vld [vmem:[#allocation3 + $0x10] sm:$0xff]
    %v44 = vld [vmem:[#allocation3 + $0x18] sm:$0xff]
    %v45 = vld [vmem:[#allocation3 + $0x20] sm:$0xff]
    %v46 = vld [vmem:[#allocation3 + $0x28] sm:$0xff]
    %v47 = vld [vmem:[#allocation3 + $0x30] sm:$0xff]
    %v48 = vld [vmem:[#allocation3 + $0x38] sm:$0xff]
    %v49 = vld [vmem:[#allocation3 + $0x40] sm:$0xff]
    %v50 = vld [vmem:[#allocation3 + $0x48] sm:$0xff]
    %v51 = vld [vmem:[#allocation3 + $0x50] sm:$0xff]
    %v52 = vld [vmem:[#allocation3 + $0x58] sm:$0xff]
    %v53 = vld [vmem:[#allocation3 + $0x60] sm:$0xff]
    %v54 = vld [vmem:[#allocation3 + $0x68] sm:$0xff]
    %v55 = vld [vmem:[#allocation3 + $0x70] sm:$0xff]
    %v56 = vld [vmem:[#allocation3 + $0x78] sm:$0xff]
    %v59 = vunpack.c.l.b16 %v35
    %v60 = vunpack.c.l.b16 %v36
    %v61 = vpack.c.b16 %v60, %v59
    %v79 = vunpack.c.l.b16 %v41
    %v80 = vunpack.c.h.b16 %v41
    %v81 = vunpack.c.l.b16 %v42
    %v82 = vunpack.c.h.b16 %v42
    %v83 = vunpack.c.l.b16 %v43
    %v84 = vunpack.c.h.b16 %v43
    %v85 = vunpack.c.l.b16 %v44
    %v86 = vunpack.c.h.b16 %v44
    %v87 = vunpack.c.l.b16 %v45
    %v88 = vunpack.c.h.b16 %v45
    %v89 = vunpack.c.l.b16 %v46
    %v90 = vunpack.c.h.b16 %v46
    %v91 = vunpack.c.l.b16 %v47
    %v92 = vunpack.c.h.b16 %v47
    %v93 = vunpack.c.l.b16 %v48
    %v94 = vunpack.c.h.b16 %v48
    %v95 = vunpack.c.l.b16 %v49
    %v96 = vunpack.c.h.b16 %v49
    %v97 = vunpack.c.l.b16 %v50
    %v98 = vunpack.c.h.b16 %v50
    %v99 = vunpack.c.l.b16 %v51
    %v100 = vunpack.c.h.b16 %v51
    %v101 = vunpack.c.l.b16 %v52
    %v102 = vunpack.c.h.b16 %v52
    %v103 = vunpack.c.l.b16 %v53
    %v104 = vunpack.c.h.b16 %v53
    %v105 = vunpack.c.l.b16 %v54
    %v106 = vunpack.c.h.b16 %v54
    %v107 = vunpack.c.l.b16 %v55
    %v108 = vunpack.c.h.b16 %v55
    %v109 = vunpack.c.l.b16 %v56
    %v110 = vunpack.c.h.b16 %v56
    %v111 = vpack.c.b16 %v81, %v79
    %v112 = vpack.c.b16 %v82, %v80
    %v113 = vpack.c.b16 %v85, %v83
    %v114 = vpack.c.b16 %v86, %v84
    %v115 = vpack.c.b16 %v89, %v87
    %v116 = vpack.c.b16 %v90, %v88
    %v117 = vpack.c.b16 %v93, %v91
    %v118 = vpack.c.b16 %v94, %v92
    %v119 = vpack.c.b16 %v97, %v95
    %v120 = vpack.c.b16 %v98, %v96
    %v121 = vpack.c.b16 %v101, %v99
    %v122 = vpack.c.b16 %v102, %v100
    %v123 = vpack.c.b16 %v105, %v103
    %v124 = vpack.c.b16 %v106, %v104
    %v125 = vpack.c.b16 %v109, %v107
    %v126 = vpack.c.b16 %v110, %v108
    %143 = vmatpush.bf16.msra.mxu0 %v125
    %144 = vmatpush.bf16.msra.mxu0 %v123
    %145 = vmatpush.bf16.msra.mxu0 %v121
    %146 = vmatpush.bf16.msra.mxu0 %v119
    %147 = vmatpush.bf16.msra.mxu0 %v117
    %148 = vmatpush.bf16.msra.mxu0 %v115
    %149 = vmatpush.bf16.msra.mxu0 %v113
    %150 = vmatpush.bf16.msra.mxu0 %v111
    %151 = vmatmul.bf16.gmra.mxu0 %v61
    %v152 = vpop.f32.mrf.mxu0
    %v153 = vadd.f32 0.0, %v152
    %v154 = vpop.f32.mrf.mxu0
    %v155 = vadd.f32 0.0, %v154
    %156 = vdwg.mxu0
    %157 = vmatpush.bf16.msra.mxu0 %v126
    %158 = vmatpush.bf16.msra.mxu0 %v124
    %159 = vmatpush.bf16.msra.mxu0 %v122
    %160 = vmatpush.bf16.msra.mxu0 %v120
    %161 = vmatpush.bf16.msra.mxu0 %v118
    %162 = vmatpush.bf16.msra.mxu0 %v116
    %163 = vmatpush.bf16.msra.mxu0 %v114
    %164 = vmatpush.bf16.msra.mxu0 %v112
    %165 = vmatmul.bf16.gmra.mxu0 %v61
    %v166 = vpop.f32.mrf.mxu0
    %v167 = vadd.f32 0.0, %v166
    %v168 = vpop.f32.mrf.mxu0
    %v169 = vadd.f32 0.0, %v168
    %170 = vdwg.mxu0
    %v171 = vadd.f32 %v37, %v153
    %v172 = vadd.f32 %v38, %v167
    %v173 = vadd.f32 %v39, %v155
    %v174 = vadd.f32 %v40, %v169
    %175 = vst [vmem:[#allocation2] sm:$0xff] %v171
    %176 = vst [vmem:[#allocation2 + $0x8] sm:$0xff] %v172
    %177 = vst [vmem:[#allocation2 + $0x10] sm:$0xff] %v173
    %178 = vst [vmem:[#allocation2 + $0x18] sm:$0xff] %v174
    // Predicated region
    $region18: #{melody_generator_forward.18} parent=1 // pred_check
      %p179 = pneg %p27
    $region19: #{melody_generator_forward.18} parent=1 // pred_check_branch
      %181 = sbr.rel (%p179) target = $region21
    $region20: #{melody_generator_forward.18} parent=1 // pred_region
      %v182 = vld [vmem:[#allocation2] sm:$0xff]
      %v183 = vld [vmem:[#allocation2 + $0x8] sm:$0xff]
      %v184 = vld [vmem:[#allocation2 + $0x10] sm:$0xff]
      %v185 = vld [vmem:[#allocation2 + $0x18] sm:$0xff]
      %v186 = vpack.c.bf16 %v183, %v182
      %v187 = vpack.c.bf16 %v185, %v184
      %188 = vst [vmem:[%s2] sm:$0xff] %v186
      %189 = vst [vmem:[%s2 + $0x8] sm:$0xff] %v187
    $region21: #{melody_generator_forward.18} parent=1 // pred_fallthru
      _
    // Predicated region
    $region22: #{melody_generator_forward.18} parent=1 // pred_check
      _
    $region23: #{melody_generator_forward.18} parent=1 // pred_check_branch
      %191 = sbr.rel (0) target = $region25
    $region24: #{melody_generator_forward.18} parent=1 // pred_region
      _
    $region25: #{melody_generator_forward.18} parent=1 // pred_fallthru
      _
    // Predicated region
    $region26: #{melody_generator_forward.18} parent=1 // pred_check
      _
    $region27: #{melody_generator_forward.18} parent=1 // pred_check_branch
      %193 = sbr.rel (0) target = $region29
    $region28: #{melody_generator_forward.18} parent=1 // pred_region
      _
    $region29: #{melody_generator_forward.18} parent=1 // pred_fallthru
      _
    %194 = vsyncpa [#allocation4], 1

// kernel: melody_generator_forward.15
$region0: #{melody_generator_forward.15}
  #allocation0 [shape = 'u32[]', space=smem, size = 0x4, offset = 0x4, fixed_abs, tag = 'smem constant byte address 0x4 - core index']
  #allocation1 [shape = 'u32[72,128]{1,0:T(1,128)}', space=vmem, size = 0x9000, scoped, tag = 'internal scratch']
  #allocation2 [shape = 'f32[16,128]{1,0:T(8,128)}', space=vmem, size = 0x2000, scoped, tag = 'scratch operand']
  #allocation3 [shape = 'bf16[16,128]{1,0:T(8,128)(2,1)}', space=vmem, size = 0x1000, scoped, tag = 'scratch operand']
  %s0 = inlined_call_operand.vmem [shape: f32[16,128], index: 0, kind: input, shape index: {}]
  %s1 = inlined_call_operand.vmem [shape: f32[1,128], index: 1, kind: input, shape index: {}]
  %s2 = inlined_call_operand.vmem [shape: bf16[128,384], index: 2, kind: input, shape index: {}]
  %s3 = inlined_call_operand.vmem [shape: bf16[16,384], index: 3, kind: output, shape index: {}]
  %s4 = sld [smem:[#allocation0]]
  $region135: #{melody_generator_forward.15} parent=0
    _
  %s6 = ssub.s32 1, %s4
  %s7 = scalar_select 0, %s6, %s4
  $region1: #{melody_generator_forward.15} parent=0
    #allocation4 [shape = 'u8[65536]{0}', space=vmem, size = 0x10000, scoped, tag = 'input window, operand 2']
    #allocation5 [shape = 'u8[8192]{0}', space=vmem, size = 0x2000, scoped, tag = 'output window, operand 0']
    loop: start=0, step=1, limit=5
    $region2: #{melody_generator_forward.15} parent=1 // loop_pre_header
      _
    $region3: #{melody_generator_forward.15} parent=1 // loop_header
      %s9 = sphi 0, %s13
      %p10 = scmp.ge.s32.totalorder %s9, 5
      %s16 = sphi 0, %s35
      %s17 = sphi 0, %s31
      %s18 = sphi 0, %s27
      %s19 = sphi 0, %s16
      %s20 = sphi 0, %s17
      %s21 = sphi 0, %s18
      %s22 = sphi 0, %s19
      %s23 = sphi 0, %s20
      %s24 = sphi 0, %s21
      %s40 = sphi 0, %s42
      %s43 = sphi 0, %s40
      %s44 = sphi 0, %s43
      %s60 = sphi 0, %s44
      %s64 = sphi 0, %s64
      %s66 = sphi 0, %s64
      %s67 = sphi 0, %s66
      %s81 = sphi 0, %s67
      %s89 = sphi 0, %s91
      %s92 = sphi 0, %s89
      %s93 = sphi 0, %s92
      %s109 = sphi 0, %s93
      %s117 = sphi 0, %s119
      %s120 = sphi 0, %s117
      %s121 = sphi 0, %s120
      %s137 = sphi 0, %s121
    $region4: #{melody_generator_forward.15} parent=1 // loop_header_branch
      %12 = sbr.rel (%p10) target = $region8
    $region5: #{melody_generator_forward.15} parent=1 // loop_body
      %s14 = ssub.s32 %s9, 1
      %s15 = ssub.s32 %s9, 2
      %s25 = sadd.s32 1, %s18
      %p26 = scmp.ge.s32.totalorder %s25, 1
      %s27 = scalar_select %p26, 0, %s25
      %s28 = sadd.s32 1, %s17
      %s29 = scalar_select %p26, %s28, %s17
      %p30 = scmp.ge.s32.totalorder %s29, 3
      %s31 = scalar_select %p30, 0, %s29
      %s32 = sadd.s32 1, %s16
      %s33 = scalar_select %p30, %s32, %s16
      %p34 = scmp.ge.s32.totalorder %s33, 1
      %s35 = scalar_select %p34, 0, %s33
      %s36 = ssub.s32 %s16, %s35
      %s37 = ssub.s32 %s18, %s27
      %s38 = sor.u32 %s36, %s37
      %p39 = scmp.eq.s32.totalorder %s38, 0
      %s41 = sadd.s32 %s40, 1
      %s42 = scalar_select %p39, %s40, %s41
      %p45 = pneg %p39
      %p46 = scmp.eq.s32.totalorder %s9, 2
      %p47 = por %p45, %p46
      %p48 = scmp.ne.s32.totalorder %s40, %s43
      %p49 = scmp.eq.s32.totalorder %s9, 0
      %p50 = por %p48, %p49
      %p51 = scmp.ne.s32.totalorder %s40, %s43
      %p52 = scmp.eq.s32.totalorder %s14, 2
      %p53 = por %p51, %p52
      %p54 = scmp.ne.s32.totalorder %s43, %s44
      %p55 = scmp.eq.s32.totalorder %s14, 0
      %p56 = por %p54, %p55
      %p57 = scmp.ne.s32.totalorder %s43, %s44
      %p58 = scmp.eq.s32.totalorder %s15, 2
      %p59 = por %p57, %p58
      %p61 = scmp.ne.s32.totalorder %s44, %s60
      %p62 = scmp.eq.s32.totalorder %s15, 0
      %p63 = por %p61, %p62
      %s65 = sadd.s32 %s64, 1
      %p68 = scmp.eq.s32.totalorder %s9, 2
      %p69 = scmp.ne.s32.totalorder %s64, %s66
      %p70 = scmp.eq.s32.totalorder %s9, 0
      %p71 = por %p69, %p70
      %p72 = scmp.ne.s32.totalorder %s64, %s66
      %p73 = scmp.eq.s32.totalorder %s14, 2
      %p74 = por %p72, %p73
      %p75 = scmp.ne.s32.totalorder %s66, %s67
      %p76 = scmp.eq.s32.totalorder %s14, 0
      %p77 = por %p75, %p76
      %p78 = scmp.ne.s32.totalorder %s66, %s67
      %p79 = scmp.eq.s32.totalorder %s15, 2
      %p80 = por %p78, %p79
      %p82 = scmp.ne.s32.totalorder %s67, %s81
      %p83 = scmp.eq.s32.totalorder %s15, 0
      %p84 = por %p82, %p83
      %s85 = ssub.s32 %s18, %s27
      %s86 = ssub.s32 %s17, %s31
      %s87 = sor.u32 %s85, %s86
      %p88 = scmp.eq.s32.totalorder %s87, 0
      %s90 = sadd.s32 %s89, 1
      %s91 = scalar_select %p88, %s89, %s90
      %p94 = pneg %p88
      %p95 = scmp.eq.s32.totalorder %s9, 2
      %p96 = por %p94, %p95
      %p97 = scmp.ne.s32.totalorder %s89, %s92
      %p98 = scmp.eq.s32.totalorder %s9, 0
      %p99 = por %p97, %p98
      %p100 = scmp.ne.s32.totalorder %s89, %s92
      %p101 = scmp.eq.s32.totalorder %s14, 2
      %p102 = por %p100, %p101
      %p103 = scmp.ne.s32.totalorder %s92, %s93
      %p104 = scmp.eq.s32.totalorder %s14, 0
      %p105 = por %p103, %p104
      %p106 = scmp.ne.s32.totalorder %s92, %s93
      %p107 = scmp.eq.s32.totalorder %s15, 2
      %p108 = por %p106, %p107
      %p110 = scmp.ne.s32.totalorder %s93, %s109
      %p111 = scmp.eq.s32.totalorder %s15, 0
      %p112 = por %p110, %p111
      %s113 = ssub.s32 %s16, %s35
      %s114 = ssub.s32 %s17, %s31
      %s115 = sor.u32 %s113, %s114
      %p116 = scmp.eq.s32.totalorder %s115, 0
      %s118 = sadd.s32 %s117, 1
      %s119 = scalar_select %p116, %s117, %s118
      %p122 = pneg %p116
      %p123 = scmp.eq.s32.totalorder %s9, 2
      %p124 = por %p122, %p123
      %p125 = scmp.ne.s32.totalorder %s117, %s120
      %p126 = scmp.eq.s32.totalorder %s9, 0
      %p127 = por %p125, %p126
      %p128 = scmp.ne.s32.totalorder %s117, %s120
      %p129 = scmp.eq.s32.totalorder %s14, 2
      %p130 = por %p128, %p129
      %p131 = scmp.ne.s32.totalorder %s120, %s121
      %p132 = scmp.eq.s32.totalorder %s14, 0
      %p133 = por %p131, %p132
      %p134 = scmp.ne.s32.totalorder %s120, %s121
      %p135 = scmp.eq.s32.totalorder %s15, 2
      %p136 = por %p134, %p135
      %p138 = scmp.ne.s32.totalorder %s121, %s137
      %p139 = scmp.eq.s32.totalorder %s15, 0
      %p140 = por %p138, %p139
      %p141 = scmp.le.s32.totalorder 1, %s9
      %p142 = scmp.lt.s32.totalorder %s9, 4
      %p143 = pnand %p141, %p142
      %p144 = pneg %p143
      // Predicated region
      $region9: #{melody_generator_forward.15} parent=5 // pred_check
        _
      $region10: #{melody_generator_forward.15} parent=5 // pred_check_branch
        %146 = sbr.rel (%p143) target = $region12
      $region11: #{melody_generator_forward.15} parent=5 // pred_region
        %s147 = ssub.s32 %s9, 1
        // Predicated region
        $region13: #{melody_generator_forward.15} parent=11 // pred_check
          %p148 = pneg %p56
        $region14: #{melody_generator_forward.15} parent=11 // pred_check_branch
          %150 = sbr.rel (%p148) target = $region16
        $region15: #{melody_generator_forward.15} parent=11 // pred_region
          %s151 = smul.u32 2, %s19
          %p152 = scmp.lt.s32.totalorder %s151, 1
          %s153 = scalar_select %p152, %s151, 1
          %p154 = scmp.lt.s32.totalorder %s21, 0
          %s155 = scalar_select %p154, %s21, 0
          %s156 = sadd.s32 %s155, %s153
          %s157 = smul.addr %s156, 8
          %s158 = scalar_lea.vmem %s0, %s157
          %s159 = smul.u32 2, %s19
        $region16: #{melody_generator_forward.15} parent=11 // pred_fallthru
          _
        // Predicated region
        $region17: #{melody_generator_forward.15} parent=11 // pred_check
          %p160 = pneg %p77
        $region18: #{melody_generator_forward.15} parent=11 // pred_check_branch
          %162 = sbr.rel (%p160) target = $region20
        $region19: #{melody_generator_forward.15} parent=11 // pred_region
          _
        $region20: #{melody_generator_forward.15} parent=11 // pred_fallthru
          _
      $region12: #{melody_generator_forward.15} parent=5 // pred_fallthru
        _
      %p163 = scmp.lt.s32.totalorder %s9, 3
      // Predicated region
      $region21: #{melody_generator_forward.15} parent=5 // pred_check
        %p164 = pneg %p163
      $region22: #{melody_generator_forward.15} parent=5 // pred_check_branch
        %166 = sbr.rel (%p164) target = $region24
      $region23: #{melody_generator_forward.15} parent=5 // pred_region
        // Predicated region
        $region25: #{melody_generator_forward.15} parent=23 // pred_check
          %p167 = pneg %p99
        $region26: #{melody_generator_forward.15} parent=23 // pred_check_branch
          %169 = sbr.rel (%p167) target = $region28
        $region27: #{melody_generator_forward.15} parent=23 // pred_region
          %s170 = sand.u32 %s89, 1
          %s171 = sand.u32 %s89, 1
          %s172 = smul.addr %s171, 64
          %s173 = scalar_lea.vmem [#allocation4], %s172
          %s174 = smul.u32 16, %s18
          %s175 = smul.addr %s174, 3
          %s176 = sadd.s32 %s17, %s175
          %s177 = smul.addr %s176, 4
          %s178 = scalar_lea.vmem %s2, %s177
          // Predicated region
          $region29: #{melody_generator_forward.15} parent=27 // pred_check
            _
          $region30: #{melody_generator_forward.15} parent=27 // pred_check_branch
            %180 = sbr.rel (0) target = $region32
          $region31: #{melody_generator_forward.15} parent=27 // pred_region
            // Predicated region
            $region33: #{melody_generator_forward.15} parent=31 // pred_check
              _
            $region34: #{melody_generator_forward.15} parent=31 // pred_check_branch
              %182 = sbr.rel target = $region36
            $region35: #{melody_generator_forward.15} parent=31 // pred_region
              // Predicated region
              $region48: #{melody_generator_forward.15} parent=35 // pred_check
                _
              $region49: #{melody_generator_forward.15} parent=35 // pred_check_branch
                %228 = sbr.rel (0) target = $region51
              $region50: #{melody_generator_forward.15} parent=35 // pred_region
                loop: start=0, step=1, limit=1
                $region52: #{melody_generator_forward.15} parent=50 // loop_pre_header
                  _
                $region53: #{melody_generator_forward.15} parent=50 // loop_header
                  %s230 = sphi 0, %s234
                  %p231 = scmp.ge.s32.totalorder %s230, 1
                  %s235 = sphi %s178, %s178
                  %s236 = sphi %s173, %s173
                $region54: #{melody_generator_forward.15} parent=50 // loop_header_branch
                  %233 = sbr.rel (%p231) target = $region58
                $region55: #{melody_generator_forward.15} parent=50 // loop_body
                  _
                $region56: #{melody_generator_forward.15} parent=50 // loop_footer
                  %s234 = sadd.s32 1, %s230
                $region57: #{melody_generator_forward.15} parent=50 // loop_footer_branch
                  %229 = sbr.rel target = $region53
                $region58: #{melody_generator_forward.15} parent=50 // loop_exit
                  _
                %s238 = ssub.s32 16, 1
                loop: start=0, step=1, limit=1
                $region59: #{melody_generator_forward.15} parent=50 // loop_pre_header
                  _
                $region60: #{melody_generator_forward.15} parent=50 // loop_header
                  %s240 = sphi 0, %s244
                  %p241 = scmp.ge.s32.totalorder %s240, 1
                  %s245 = sphi %s178, %s178
                  %s246 = sphi %s173, %s173
                $region61: #{melody_generator_forward.15} parent=50 // loop_header_branch
                  %243 = sbr.rel (%p241) target = $region65
                $region62: #{melody_generator_forward.15} parent=50 // loop_body
                  %v247 = vld [vmem:[%s245] sm:%s238]
                  %248 = vst [vmem:[%s246] sm:%s238] %v247
                  %v249 = vld [vmem:[%s245 + $0xc] sm:%s238]
                  %250 = vst [vmem:[%s246 + $0x4] sm:%s238] %v249
                  %v251 = vld [vmem:[%s245 + $0x18] sm:%s238]
                  %252 = vst [vmem:[%s246 + $0x8] sm:%s238] %v251
                  %v253 = vld [vmem:[%s245 + $0x24] sm:%s238]
                  %254 = vst [vmem:[%s246 + $0xc] sm:%s238] %v253
                  %v255 = vld [vmem:[%s245 + $0x30] sm:%s238]
                  %256 = vst [vmem:[%s246 + $0x10] sm:%s238] %v255
                  %v257 = vld [vmem:[%s245 + $0x3c] sm:%s238]
                  %258 = vst [vmem:[%s246 + $0x14] sm:%s238] %v257
                  %v259 = vld [vmem:[%s245 + $0x48] sm:%s238]
                  %260 = vst [vmem:[%s246 + $0x18] sm:%s238] %v259
                  %v261 = vld [vmem:[%s245 + $0x54] sm:%s238]
                  %262 = vst [vmem:[%s246 + $0x1c] sm:%s238] %v261
                  %v263 = vld [vmem:[%s245 + $0x60] sm:%s238]
                  %264 = vst [vmem:[%s246 + $0x20] sm:%s238] %v263
                  %v265 = vld [vmem:[%s245 + $0x6c] sm:%s238]
                  %266 = vst [vmem:[%s246 + $0x24] sm:%s238] %v265
                  %v267 = vld [vmem:[%s245 + $0x78] sm:%s238]
                  %268 = vst [vmem:[%s246 + $0x28] sm:%s238] %v267
                  %v269 = vld [vmem:[%s245 + $0x84] sm:%s238]
                  %270 = vst [vmem:[%s246 + $0x2c] sm:%s238] %v269
                  %v271 = vld [vmem:[%s245 + $0x90] sm:%s238]
                  %272 = vst [vmem:[%s246 + $0x30] sm:%s238] %v271
                  %v273 = vld [vmem:[%s245 + $0x9c] sm:%s238]
                  %274 = vst [vmem:[%s246 + $0x34] sm:%s238] %v273
                  %v275 = vld [vmem:[%s245 + $0xa8] sm:%s238]
                  %276 = vst [vmem:[%s246 + $0x38] sm:%s238] %v275
                  %v277 = vld [vmem:[%s245 + $0xb4] sm:%s238]
                  %278 = vst [vmem:[%s246 + $0x3c] sm:%s238] %v277
                $region63: #{melody_generator_forward.15} parent=50 // loop_footer
                  %s244 = sadd.s32 1, %s240
                $region64: #{melody_generator_forward.15} parent=50 // loop_footer_branch
                  %239 = sbr.rel target = $region60
                $region65: #{melody_generator_forward.15} parent=50 // loop_exit
                  _
              $region51: #{melody_generator_forward.15} parent=35 // pred_fallthru
                _
            $region36: #{melody_generator_forward.15} parent=31 // pred_fallthru
              _
            // Predicated region
            $region37: #{melody_generator_forward.15} parent=31 // pred_check
              _
            $region38: #{melody_generator_forward.15} parent=31 // pred_check_branch
              %184 = sbr.rel (0) target = $region40
            $region39: #{melody_generator_forward.15} parent=31 // pred_region
              %s186 = ssub.s32 16, 1
              loop: start=0, step=1, limit=1
              $region41: #{melody_generator_forward.15} parent=39 // loop_pre_header
                _
              $region42: #{melody_generator_forward.15} parent=39 // loop_header
                %s188 = sphi 0, %s192
                %p189 = scmp.ge.s32.totalorder %s188, 1
                %s193 = sphi %s178, %s178
                %s194 = sphi %s173, %s173
              $region43: #{melody_generator_forward.15} parent=39 // loop_header_branch
                %191 = sbr.rel (%p189) target = $region47
              $region44: #{melody_generator_forward.15} parent=39 // loop_body
                %v195 = vld [vmem:[%s193] sm:%s186]
                %196 = vst [vmem:[%s194] sm:%s186] %v195
                %v197 = vld [vmem:[%s193 + $0xc] sm:%s186]
                %198 = vst [vmem:[%s194 + $0x4] sm:%s186] %v197
                %v199 = vld [vmem:[%s193 + $0x18] sm:%s186]
                %200 = vst [vmem:[%s194 + $0x8] sm:%s186] %v199
                %v201 = vld [vmem:[%s193 + $0x24] sm:%s186]
                %202 = vst [vmem:[%s194 + $0xc] sm:%s186] %v201
                %v203 = vld [vmem:[%s193 + $0x30] sm:%s186]
                %204 = vst [vmem:[%s194 + $0x10] sm:%s186] %v203
                %v205 = vld [vmem:[%s193 + $0x3c] sm:%s186]
                %206 = vst [vmem:[%s194 + $0x14] sm:%s186] %v205
                %v207 = vld [vmem:[%s193 + $0x48] sm:%s186]
                %208 = vst [vmem:[%s194 + $0x18] sm:%s186] %v207
                %v209 = vld [vmem:[%s193 + $0x54] sm:%s186]
                %210 = vst [vmem:[%s194 + $0x1c] sm:%s186] %v209
                %v211 = vld [vmem:[%s193 + $0x60] sm:%s186]
                %212 = vst [vmem:[%s194 + $0x20] sm:%s186] %v211
                %v213 = vld [vmem:[%s193 + $0x6c] sm:%s186]
                %214 = vst [vmem:[%s194 + $0x24] sm:%s186] %v213
                %v215 = vld [vmem:[%s193 + $0x78] sm:%s186]
                %216 = vst [vmem:[%s194 + $0x28] sm:%s186] %v215
                %v217 = vld [vmem:[%s193 + $0x84] sm:%s186]
                %218 = vst [vmem:[%s194 + $0x2c] sm:%s186] %v217
                %v219 = vld [vmem:[%s193 + $0x90] sm:%s186]
                %220 = vst [vmem:[%s194 + $0x30] sm:%s186] %v219
                %v221 = vld [vmem:[%s193 + $0x9c] sm:%s186]
                %222 = vst [vmem:[%s194 + $0x34] sm:%s186] %v221
                %v223 = vld [vmem:[%s193 + $0xa8] sm:%s186]
                %224 = vst [vmem:[%s194 + $0x38] sm:%s186] %v223
                %v225 = vld [vmem:[%s193 + $0xb4] sm:%s186]
                %226 = vst [vmem:[%s194 + $0x3c] sm:%s186] %v225
              $region45: #{melody_generator_forward.15} parent=39 // loop_footer
                %s192 = sadd.s32 1, %s188
              $region46: #{melody_generator_forward.15} parent=39 // loop_footer_branch
                %187 = sbr.rel target = $region42
              $region47: #{melody_generator_forward.15} parent=39 // loop_exit
                _
            $region40: #{melody_generator_forward.15} parent=31 // pred_fallthru
              _
          $region32: #{melody_generator_forward.15} parent=27 // pred_fallthru
            _
          %279 = vnop
        $region28: #{melody_generator_forward.15} parent=23 // pred_fallthru
          _
      $region24: #{melody_generator_forward.15} parent=5 // pred_fallthru
        _
      %p280 = scmp.le.s32.totalorder 1, %s9
      %p281 = scmp.lt.s32.totalorder %s9, 4
      %p282 = pnand %p280, %p281
      %p283 = pneg %p282
      // Predicated region
      $region66: #{melody_generator_forward.15} parent=5 // pred_check
        _
      $region67: #{melody_generator_forward.15} parent=5 // pred_check_branch
        %285 = sbr.rel (%p282) target = $region69
      $region68: #{melody_generator_forward.15} parent=5 // pred_region
        %s286 = ssub.s32 %s9, 1
        %s287 = sand.u32 %s92, 1
        %s288 = sand.u32 %s92, 1
        %s289 = smul.addr %s288, 64
        %s290 = scalar_lea.vmem [#allocation4], %s289
        // Predicated region
        $region70: #{melody_generator_forward.15} parent=68 // pred_check
          %p291 = pneg %p105
        $region71: #{melody_generator_forward.15} parent=68 // pred_check_branch
          %293 = sbr.rel (%p291) target = $region73
        $region72: #{melody_generator_forward.15} parent=68 // pred_region
          _
        $region73: #{melody_generator_forward.15} parent=68 // pred_fallthru
          _
        %s294 = smul.u32 2, %s19
        %p295 = scmp.lt.s32.totalorder %s294, 1
        %s296 = scalar_select %p295, %s294, 1
        %p297 = scmp.lt.s32.totalorder %s21, 0
        %s298 = scalar_select %p297, %s21, 0
        %s299 = sadd.s32 %s298, %s296
        %s300 = smul.addr %s299, 8
        %s301 = scalar_lea.vmem %s0, %s300
        %p302 = pneg %p56
        %p303 = pneg %p53
        %p304 = pneg %p77
        %p305 = pneg %p74
        %s306 = sand.u32 %s92, 1
        %s307 = sand.u32 %s92, 1
        %s308 = smul.addr %s307, 64
        %s309 = scalar_lea.vmem [#allocation4], %s308
        %p310 = pneg %p105
        %p311 = pneg %p102
        %p312 = pneg %p133
        %p313 = pneg %p130
        %s314 = sand.u32 %s120, 1
        %s315 = sand.u32 %s120, 1
        %s316 = smul.addr %s315, 8
        %s317 = scalar_lea.vmem [#allocation5], %s316
        %s318 = smul.u32 2, %s19
        %p319 = scmp.lt.s32.totalorder %s318, 1
        %s320 = scalar_select %p319, %s318, 1
        %p321 = scmp.lt.s32.totalorder %s21, 0
        %s322 = scalar_select %p321, %s21, 0
        %s323 = sadd.s32 %s322, %s320
        %s324 = smul.addr %s323, 8
        %s325 = scalar_lea.vmem %s0, %s324
        %s326 = smul.u32 2, %s19
        %s327 = smul.u32 16, %s21
        %s328 = smul.u32 2, %s19
        %p329 = scmp.eq.s32.totalorder %s21, 0
        // Predicated region
        $region74: #{melody_generator_forward.15} parent=68 // pred_check
          %p330 = pneg %p329
        $region75: #{melody_generator_forward.15} parent=68 // pred_check_branch
          %332 = sbr.rel (%p330) target = $region77
        $region76: #{melody_generator_forward.15} parent=68 // pred_region
          %333 = vst [vmem:[#allocation2] sm:$0xff] 0.0
          %334 = vst [vmem:[#allocation2 + $0x8] sm:$0xff] 0.0
        $region77: #{melody_generator_forward.15} parent=68 // pred_fallthru
          _
        %p335 = scmp.eq.s32.totalorder %s20, 0
        // Predicated region
        $region78: #{melody_generator_forward.15} parent=68 // pred_check
          %p336 = pneg %p335
        $region79: #{melody_generator_forward.15} parent=68 // pred_check_branch
          %338 = sbr.rel (%p336) target = $region81
        $region80: #{melody_generator_forward.15} parent=68 // pred_region
          %v339 = vld [vmem:[%s325] sm:$0xff]
          %v340 = vld [vmem:[%s325 + $0x8] sm:$0xff]
          %v341 = vmul.f32 %v339, %v339
          %v342 = vmul.f32 %v340, %v340
          %343 = vadd.xlane.f32.xlu0 %v341
          %v344 = vpop.xlane.xlu0 %343
          %345 = vadd.xlane.f32.xlu0 %v342
          %v346 = vpop.xlane.xlu0 %345
          %v347 = vmul.f32 %v344, 0.0078125
          %v348 = vmul.f32 %v346, 0.0078125
          %v349 = vadd.f32 %v347, 1e-05
          %v350 = vadd.f32 %v348, 1e-05
          %v351 = vrsqrt.pop %v349
          %v352 = vmul.f32 %v351, %v349
          %v353 = vmul.f32 %v352, %v351
          %v354 = vmul.f32 0.5, %v353
          %v355 = vsub.f32 1.5, %v354
          %v356 = vmul.f32 %v351, %v355
          %vm357 = vweird.f32 %v349
          %vm358 = vweird.f32 %v351
          %vm359 = vmor %vm357, %vm358
          %v360 = vsel %vm359, %v351, %v356
          %v361 = vrsqrt.pop %v350
          %v362 = vmul.f32 %v361, %v350
          %v363 = vmul.f32 %v362, %v361
          %v364 = vmul.f32 0.5, %v363
          %v365 = vsub.f32 1.5, %v364
          %v366 = vmul.f32 %v361, %v365
          %vm367 = vweird.f32 %v350
          %vm368 = vweird.f32 %v361
          %vm369 = vmor %vm367, %vm368
          %v370 = vsel %vm369, %v361, %v366
          %v371 = vmul.f32 %v339, %v360
          %v372 = vmul.f32 %v340, %v370
          %v373 = vld [vmem:[%s1] sm:$0x1]
          %v375 = vperm.slane %v373, 0
          %v377 = vmul.f32 %v371, %v375
          %v378 = vmul.f32 %v372, %v375
          %v379 = vpack.c.bf16 %v377, %v377
          %v380 = vpack.c.bf16 %v378, %v378
          %381 = vst [vmem:[#allocation3] sm:$0xf] %v379
          %382 = vst [vmem:[#allocation3 + $0x4] sm:$0xf] %v380
        $region81: #{melody_generator_forward.15} parent=68 // pred_fallthru
          _
        %v383 = vld [vmem:[#allocation3] sm:$0xf]
        %v384 = vld [vmem:[#allocation3 + $0x4] sm:$0xf]
        %v385 = vld [vmem:[#allocation2] sm:$0xff]
        %v386 = vld [vmem:[#allocation2 + $0x8] sm:$0xff]
        %v387 = vld [vmem:[%s290] sm:$0xf]
        %v388 = vld [vmem:[%s290 + $0x4] sm:$0xf]
        %v389 = vld [vmem:[%s290 + $0x8] sm:$0xf]
        %v390 = vld [vmem:[%s290 + $0xc] sm:$0xf]
        %v391 = vld [vmem:[%s290 + $0x10] sm:$0xf]
        %v392 = vld [vmem:[%s290 + $0x14] sm:$0xf]
        %v393 = vld [vmem:[%s290 + $0x18] sm:$0xf]
        %v394 = vld [vmem:[%s290 + $0x1c] sm:$0xf]
        %v395 = vld [vmem:[%s290 + $0x20] sm:$0xf]
        %v396 = vld [vmem:[%s290 + $0x24] sm:$0xf]
        %v397 = vld [vmem:[%s290 + $0x28] sm:$0xf]
        %v398 = vld [vmem:[%s290 + $0x2c] sm:$0xf]
        %v399 = vld [vmem:[%s290 + $0x30] sm:$0xf]
        %v400 = vld [vmem:[%s290 + $0x34] sm:$0xf]
        %v401 = vld [vmem:[%s290 + $0x38] sm:$0xf]
        %v402 = vld [vmem:[%s290 + $0x3c] sm:$0xf]
        %v405 = vunpack.c.l.b16 %v383
        %v406 = vunpack.c.l.b16 %v384
        %v407 = vpack.c.b16 %v406, %v405
        %v425 = vunpack.c.l.b16 %v387
        %v426 = vunpack.c.l.b16 %v388
        %v427 = vunpack.c.l.b16 %v389
        %v428 = vunpack.c.l.b16 %v390
        %v429 = vunpack.c.l.b16 %v391
        %v430 = vunpack.c.l.b16 %v392
        %v431 = vunpack.c.l.b16 %v393
        %v432 = vunpack.c.l.b16 %v394
        %v433 = vunpack.c.l.b16 %v395
        %v434 = vunpack.c.l.b16 %v396
        %v435 = vunpack.c.l.b16 %v397
        %v436 = vunpack.c.l.b16 %v398
        %v437 = vunpack.c.l.b16 %v399
        %v438 = vunpack.c.l.b16 %v400
        %v439 = vunpack.c.l.b16 %v401
        %v440 = vunpack.c.l.b16 %v402
        %v441 = vpack.c.b16 %v426, %v425
        %v442 = vpack.c.b16 %v428, %v427
        %v443 = vpack.c.b16 %v430, %v429
        %v444 = vpack.c.b16 %v432, %v431
        %v445 = vpack.c.b16 %v434, %v433
        %v446 = vpack.c.b16 %v436, %v435
        %v447 = vpack.c.b16 %v438, %v437
        %v448 = vpack.c.b16 %v440, %v439
        %457 = vmatpush.bf16.msra.mxu0 %v448
        %458 = vmatpush.bf16.msra.mxu0 %v447
        %459 = vmatpush.bf16.msra.mxu0 %v446
        %460 = vmatpush.bf16.msra.mxu0 %v445
        %461 = vmatpush.bf16.msra.mxu0 %v444
        %462 = vmatpush.bf16.msra.mxu0 %v443
        %463 = vmatpush.bf16.msra.mxu0 %v442
        %464 = vmatpush.bf16.msra.mxu0 %v441
        %465 = vmatmul.bf16.gmra.mxu0 %v407
        %v466 = vpop.f32.mrf.mxu0
        %v467 = vadd.f32 0.0, %v466
        %v468 = vpop.f32.mrf.mxu0
        %v469 = vadd.f32 0.0, %v468
        %470 = vdwg.mxu0
        %v471 = vadd.f32 %v385, %v467
        %v472 = vadd.f32 %v386, %v469
        %473 = vst [vmem:[#allocation2] sm:$0xff] %v471
        %474 = vst [vmem:[#allocation2 + $0x8] sm:$0xff] %v472
        // Predicated region
        $region82: #{melody_generator_forward.15} parent=68 // pred_check
          %p475 = pneg %p329
        $region83: #{melody_generator_forward.15} parent=68 // pred_check_branch
          %477 = sbr.rel (%p475) target = $region85
        $region84: #{melody_generator_forward.15} parent=68 // pred_region
          %v478 = vld [vmem:[#allocation2] sm:$0xff]
          %v479 = vld [vmem:[#allocation2 + $0x8] sm:$0xff]
          %v480 = vpack.c.bf16 %v478, %v478
          %v481 = vpack.c.bf16 %v479, %v479
          %482 = vst [vmem:[%s317] sm:$0xf] %v480
          %483 = vst [vmem:[%s317 + $0x4] sm:$0xf] %v481
        $region85: #{melody_generator_forward.15} parent=68 // pred_fallthru
          _
        %s484 = sand.u32 %s120, 1
        %s485 = sand.u32 %s120, 1
        %s486 = smul.addr %s485, 8
        %s487 = scalar_lea.vmem [#allocation5], %s486
        // Predicated region
        $region86: #{melody_generator_forward.15} parent=68 // pred_check
          %p488 = pneg %p130
        $region87: #{melody_generator_forward.15} parent=68 // pred_check_branch
          %490 = sbr.rel (%p488) target = $region89
        $region88: #{melody_generator_forward.15} parent=68 // pred_region
          %s491 = smul.u32 2, %s19
          %s492 = smul.addr %s491, 3
          %s493 = sadd.s32 %s20, %s492
          %s494 = smul.addr %s493, 4
          %s495 = scalar_lea.vmem %s3, %s494
          // Predicated region
          $region90: #{melody_generator_forward.15} parent=88 // pred_check
            _
          $region91: #{melody_generator_forward.15} parent=88 // pred_check_branch
            %497 = sbr.rel (0) target = $region93
          $region92: #{melody_generator_forward.15} parent=88 // pred_region
            // Predicated region
            $region94: #{melody_generator_forward.15} parent=92 // pred_check
              _
            $region95: #{melody_generator_forward.15} parent=92 // pred_check_branch
              %499 = sbr.rel target = $region97
            $region96: #{melody_generator_forward.15} parent=92 // pred_region
              // Predicated region
              $region109: #{melody_generator_forward.15} parent=96 // pred_check
                _
              $region110: #{melody_generator_forward.15} parent=96 // pred_check_branch
                %517 = sbr.rel (0) target = $region112
              $region111: #{melody_generator_forward.15} parent=96 // pred_region
                loop: start=0, step=1, limit=1
                $region113: #{melody_generator_forward.15} parent=111 // loop_pre_header
                  _
                $region114: #{melody_generator_forward.15} parent=111 // loop_header
                  %s519 = sphi 0, %s523
                  %p520 = scmp.ge.s32.totalorder %s519, 1
                  %s524 = sphi %s487, %s487
                  %s525 = sphi %s495, %s495
                $region115: #{melody_generator_forward.15} parent=111 // loop_header_branch
                  %522 = sbr.rel (%p520) target = $region119
                $region116: #{melody_generator_forward.15} parent=111 // loop_body
                  _
                $region117: #{melody_generator_forward.15} parent=111 // loop_footer
                  %s523 = sadd.s32 1, %s519
                $region118: #{melody_generator_forward.15} parent=111 // loop_footer_branch
                  %518 = sbr.rel target = $region114
                $region119: #{melody_generator_forward.15} parent=111 // loop_exit
                  _
                %s527 = ssub.s32 16, 1
                loop: start=0, step=1, limit=1
                $region120: #{melody_generator_forward.15} parent=111 // loop_pre_header
                  _
                $region121: #{melody_generator_forward.15} parent=111 // loop_header
                  %s529 = sphi 0, %s533
                  %p530 = scmp.ge.s32.totalorder %s529, 1
                  %s534 = sphi %s487, %s487
                  %s535 = sphi %s495, %s495
                $region122: #{melody_generator_forward.15} parent=111 // loop_header_branch
                  %532 = sbr.rel (%p530) target = $region126
                $region123: #{melody_generator_forward.15} parent=111 // loop_body
                  %v536 = vld [vmem:[%s534] sm:%s527]
                  %537 = vst [vmem:[%s535] sm:%s527] %v536
                  %v538 = vld [vmem:[%s534 + $0x4] sm:%s527]
                  %539 = vst [vmem:[%s535 + $0xc] sm:%s527] %v538
                $region124: #{melody_generator_forward.15} parent=111 // loop_footer
                  %s533 = sadd.s32 1, %s529
                $region125: #{melody_generator_forward.15} parent=111 // loop_footer_branch
                  %528 = sbr.rel target = $region121
                $region126: #{melody_generator_forward.15} parent=111 // loop_exit
                  _
              $region112: #{melody_generator_forward.15} parent=96 // pred_fallthru
                _
            $region97: #{melody_generator_forward.15} parent=92 // pred_fallthru
              _
            // Predicated region
            $region98: #{melody_generator_forward.15} parent=92 // pred_check
              _
            $region99: #{melody_generator_forward.15} parent=92 // pred_check_branch
              %501 = sbr.rel (0) target = $region101
            $region100: #{melody_generator_forward.15} parent=92 // pred_region
              %s503 = ssub.s32 16, 1
              loop: start=0, step=1, limit=1
              $region102: #{melody_generator_forward.15} parent=100 // loop_pre_header
                _
              $region103: #{melody_generator_forward.15} parent=100 // loop_header
                %s505 = sphi 0, %s509
                %p506 = scmp.ge.s32.totalorder %s505, 1
                %s510 = sphi %s487, %s487
                %s511 = sphi %s495, %s495
              $region104: #{melody_generator_forward.15} parent=100 // loop_header_branch
                %508 = sbr.rel (%p506) target = $region108
              $region105: #{melody_generator_forward.15} parent=100 // loop_body
                %v512 = vld [vmem:[%s510] sm:%s503]
                %513 = vst [vmem:[%s511] sm:%s503] %v512
                %v514 = vld [vmem:[%s510 + $0x4] sm:%s503]
                %515 = vst [vmem:[%s511 + $0xc] sm:%s503] %v514
              $region106: #{melody_generator_forward.15} parent=100 // loop_footer
                %s509 = sadd.s32 1, %s505
              $region107: #{melody_generator_forward.15} parent=100 // loop_footer_branch
                %504 = sbr.rel target = $region103
              $region108: #{melody_generator_forward.15} parent=100 // loop_exit
                _
            $region101: #{melody_generator_forward.15} parent=92 // pred_fallthru
              _
          $region93: #{melody_generator_forward.15} parent=88 // pred_fallthru
            _
          %540 = vnop
        $region89: #{melody_generator_forward.15} parent=68 // pred_fallthru
          _
      $region69: #{melody_generator_forward.15} parent=5 // pred_fallthru
        _
      %p541 = scmp.le.s32.totalorder 2, %s9
      // Predicated region
      $region127: #{melody_generator_forward.15} parent=5 // pred_check
        %p542 = pneg %p541
      $region128: #{melody_generator_forward.15} parent=5 // pred_check_branch
        %544 = sbr.rel (%p542) target = $region130
      $region129: #{melody_generator_forward.15} parent=5 // pred_region
        %s545 = ssub.s32 %s9, 2
        // Predicated region
        $region131: #{melody_generator_forward.15} parent=129 // pred_check
          %p546 = pneg %p136
        $region132: #{melody_generator_forward.15} parent=129 // pred_check_branch
          %548 = sbr.rel (%p546) target = $region134
        $region133: #{melody_generator_forward.15} parent=129 // pred_region
          %s549 = sand.u32 %s121, 1
          %s550 = sand.u32 %s121, 1
          %s551 = smul.addr %s550, 8
          %s552 = scalar_lea.vmem [#allocation5], %s551
        $region134: #{melody_generator_forward.15} parent=129 // pred_fallthru
          _
      $region130: #{melody_generator_forward.15} parent=5 // pred_fallthru
        _
    $region6: #{melody_generator_forward.15} parent=1 // loop_footer
      %s13 = sadd.s32 1, %s9
    $region7: #{melody_generator_forward.15} parent=1 // loop_footer_branch
      %8 = sbr.rel target = $region3
    $region8: #{melody_generator_forward.15} parent=1 // loop_exit
      _

// kernel: melody_generator_forward.17
$region0: #{melody_generator_forward.17}
  #allocation0 [shape = 'u32[]', space=smem, size = 0x4, offset = 0x4, fixed_abs, tag = 'smem constant byte address 0x4 - core index']
  #allocation1 [shape = 'u32[72,128]{1,0:T(1,128)}', space=vmem, size = 0x9000, scoped, tag = 'internal scratch']
  #allocation2 [shape = 'f32[16,128]{1,0:T(8,128)}', space=vmem, size = 0x2000, scoped, tag = 'scratch operand']
  #allocation3 [shape = 'bf16[16,128]{1,0:T(8,128)(2,1)}', space=vmem, size = 0x1000, scoped, tag = 'scratch operand']
  %s0 = inlined_call_operand.vmem [shape: f32[16,128], index: 0, kind: input, shape index: {}]
  %s1 = inlined_call_operand.vmem [shape: f32[1,128], index: 1, kind: input, shape index: {}]
  %s2 = inlined_call_operand.hbm [shape: bf16[128,128], index: 2, kind: input, shape index: {}]
  %s3 = inlined_call_operand.vmem [shape: bf16[16,128], index: 3, kind: output, shape index: {}]
  %s4 = sld [smem:[#allocation0]]
  $region38: #{melody_generator_forward.17} parent=0
    _
  %s6 = ssub.s32 1, %s4
  %s7 = scalar_select 0, %s6, %s4
  $region1: #{melody_generator_forward.17} parent=0
    #allocation4 [shape = 'u8[32768]{0}', space=vmem, size = 0x8000, scoped, tag = 'input window, operand 2, single buffered']
    #allocation5 [shape = 's32[1]{0}', space=sflag, size = 0x4, scoped, tag = 'scoped memory for melody_generator_forward.17']
    %8 = vsyncpa [#allocation5], 0
    // Predicated region
    $region2: #{melody_generator_forward.17} parent=1 // pred_check
      _
    $region3: #{melody_generator_forward.17} parent=1 // pred_check_branch
      %10 = sbr.rel (0) target = $region5
    $region4: #{melody_generator_forward.17} parent=1 // pred_region
      _
    $region5: #{melody_generator_forward.17} parent=1 // pred_fallthru
      _
    // Predicated region
    $region6: #{melody_generator_forward.17} parent=1 // pred_check
      _
    $region7: #{melody_generator_forward.17} parent=1 // pred_check_branch
      %12 = sbr.rel (0) target = $region9
    $region8: #{melody_generator_forward.17} parent=1 // pred_region
      _
    $region9: #{melody_generator_forward.17} parent=1 // pred_fallthru
      _
    // Predicated region
    $region10: #{melody_generator_forward.17} parent=1 // pred_check
      _
    $region11: #{melody_generator_forward.17} parent=1 // pred_check_branch
      %14 = sbr.rel (0) target = $region13
    $region12: #{melody_generator_forward.17} parent=1 // pred_region
      %16 = vsyncadd [#allocation5], 0
      %s17 = sshll.u32 %s2, 4
      %s18 = int_to_ptr.hbm [resolvable:$true] %s17
      %s19 = sshll.u32 [#allocation4], 4
      %s20 = int_to_ptr.vmem [resolvable:$true] %s19
      %25 = dma.hbm_to_vmem [thread:$0]  %s18, 1024, %s20, [#allocation5], 64, 64, 4
    $region13: #{melody_generator_forward.17} parent=1 // pred_fallthru
      _
    // Predicated region
    $region14: #{melody_generator_forward.17} parent=1 // pred_check
      _
    $region15: #{melody_generator_forward.17} parent=1 // pred_check_branch
      %27 = sbr.rel (0) target = $region17
    $region16: #{melody_generator_forward.17} parent=1 // pred_region
      %29 = dma.done [#allocation5], 1024
    $region17: #{melody_generator_forward.17} parent=1 // pred_fallthru
      _
    %p30 = scmp.eq.s32.totalorder 0, 0
    // Predicated region
    $region18: #{melody_generator_forward.17} parent=1 // pred_check
      %p31 = pneg %p30
    $region19: #{melody_generator_forward.17} parent=1 // pred_check_branch
      %33 = sbr.rel (%p31) target = $region21
    $region20: #{melody_generator_forward.17} parent=1 // pred_region
      %34 = vst [vmem:[#allocation2] sm:$0xff] 0.0
      %35 = vst [vmem:[#allocation2 + $0x8] sm:$0xff] 0.0
    $region21: #{melody_generator_forward.17} parent=1 // pred_fallthru
      _
    %p36 = scmp.eq.s32.totalorder 0, 0
    // Predicated region
    $region22: #{melody_generator_forward.17} parent=1 // pred_check
      %p37 = pneg %p36
    $region23: #{melody_generator_forward.17} parent=1 // pred_check_branch
      %39 = sbr.rel (%p37) target = $region25
    $region24: #{melody_generator_forward.17} parent=1 // pred_region
      %v40 = vld [vmem:[%s0] sm:$0xff]
      %v41 = vld [vmem:[%s0 + $0x8] sm:$0xff]
      %v42 = vmul.f32 %v40, %v40
      %v43 = vmul.f32 %v41, %v41
      %44 = vadd.xlane.f32.xlu0 %v42
      %v45 = vpop.xlane.xlu0 %44
      %46 = vadd.xlane.f32.xlu0 %v43
      %v47 = vpop.xlane.xlu0 %46
      %v48 = vmul.f32 %v45, 0.0078125
      %v49 = vmul.f32 %v47, 0.0078125
      %v50 = vadd.f32 %v48, 1e-05
      %v51 = vadd.f32 %v49, 1e-05
      %v52 = vrsqrt.pop %v50
      %v53 = vmul.f32 %v52, %v50
      %v54 = vmul.f32 %v53, %v52
      %v55 = vmul.f32 0.5, %v54
      %v56 = vsub.f32 1.5, %v55
      %v57 = vmul.f32 %v52, %v56
      %vm58 = vweird.f32 %v50
      %vm59 = vweird.f32 %v52
      %vm60 = vmor %vm58, %vm59
      %v61 = vsel %vm60, %v52, %v57
      %v62 = vrsqrt.pop %v51
      %v63 = vmul.f32 %v62, %v51
      %v64 = vmul.f32 %v63, %v62
      %v65 = vmul.f32 0.5, %v64
      %v66 = vsub.f32 1.5, %v65
      %v67 = vmul.f32 %v62, %v66
      %vm68 = vweird.f32 %v51
      %vm69 = vweird.f32 %v62
      %vm70 = vmor %vm68, %vm69
      %v71 = vsel %vm70, %v62, %v67
      %v72 = vmul.f32 %v40, %v61
      %v73 = vmul.f32 %v41, %v71
      %v74 = vld [vmem:[%s1] sm:$0x1]
      %v76 = vperm.slane %v74, 0
      %v78 = vmul.f32 %v72, %v76
      %v79 = vmul.f32 %v73, %v76
      %v80 = vpack.c.bf16 %v78, %v78
      %v81 = vpack.c.bf16 %v79, %v79
      %82 = vst [vmem:[#allocation3] sm:$0xf] %v80
      %83 = vst [vmem:[#allocation3 + $0x4] sm:$0xf] %v81
    $region25: #{melody_generator_forward.17} parent=1 // pred_fallthru
      _
    %v84 = vld [vmem:[#allocation3] sm:$0xf]
    %v85 = vld [vmem:[#allocation3 + $0x4] sm:$0xf]
    %v86 = vld [vmem:[#allocation2] sm:$0xff]
    %v87 = vld [vmem:[#allocation2 + $0x8] sm:$0xff]
    %v88 = vld [vmem:[#allocation4] sm:$0xf]
    %v89 = vld [vmem:[#allocation4 + $0x4] sm:$0xf]
    %v90 = vld [vmem:[#allocation4 + $0x8] sm:$0xf]
    %v91 = vld [vmem:[#allocation4 + $0xc] sm:$0xf]
    %v92 = vld [vmem:[#allocation4 + $0x10] sm:$0xf]
    %v93 = vld [vmem:[#allocation4 + $0x14] sm:$0xf]
    %v94 = vld [vmem:[#allocation4 + $0x18] sm:$0xf]
    %v95 = vld [vmem:[#allocation4 + $0x1c] sm:$0xf]
    %v96 = vld [vmem:[#allocation4 + $0x20] sm:$0xf]
    %v97 = vld [vmem:[#allocation4 + $0x24] sm:$0xf]
    %v98 = vld [vmem:[#allocation4 + $0x28] sm:$0xf]
    %v99 = vld [vmem:[#allocation4 + $0x2c] sm:$0xf]
    %v100 = vld [vmem:[#allocation4 + $0x30] sm:$0xf]
    %v101 = vld [vmem:[#allocation4 + $0x34] sm:$0xf]
    %v102 = vld [vmem:[#allocation4 + $0x38] sm:$0xf]
    %v103 = vld [vmem:[#allocation4 + $0x3c] sm:$0xf]
    %v106 = vunpack.c.l.b16 %v84
    %v107 = vunpack.c.l.b16 %v85
    %v108 = vpack.c.b16 %v107, %v106
    %v126 = vunpack.c.l.b16 %v88
    %v127 = vunpack.c.l.b16 %v89
    %v128 = vunpack.c.l.b16 %v90
    %v129 = vunpack.c.l.b16 %v91
    %v130 = vunpack.c.l.b16 %v92
    %v131 = vunpack.c.l.b16 %v93
    %v132 = vunpack.c.l.b16 %v94
    %v133 = vunpack.c.l.b16 %v95
    %v134 = vunpack.c.l.b16 %v96
    %v135 = vunpack.c.l.b16 %v97
    %v136 = vunpack.c.l.b16 %v98
    %v137 = vunpack.c.l.b16 %v99
    %v138 = vunpack.c.l.b16 %v100
    %v139 = vunpack.c.l.b16 %v101
    %v140 = vunpack.c.l.b16 %v102
    %v141 = vunpack.c.l.b16 %v103
    %v142 = vpack.c.b16 %v127, %v126
    %v143 = vpack.c.b16 %v129, %v128
    %v144 = vpack.c.b16 %v131, %v130
    %v145 = vpack.c.b16 %v133, %v132
    %v146 = vpack.c.b16 %v135, %v134
    %v147 = vpack.c.b16 %v137, %v136
    %v148 = vpack.c.b16 %v139, %v138
    %v149 = vpack.c.b16 %v141, %v140
    %158 = vmatpush.bf16.msra.mxu0 %v149
    %159 = vmatpush.bf16.msra.mxu0 %v148
    %160 = vmatpush.bf16.msra.mxu0 %v147
    %161 = vmatpush.bf16.msra.mxu0 %v146
    %162 = vmatpush.bf16.msra.mxu0 %v145
    %163 = vmatpush.bf16.msra.mxu0 %v144
    %164 = vmatpush.bf16.msra.mxu0 %v143
    %165 = vmatpush.bf16.msra.mxu0 %v142
    %166 = vmatmul.bf16.gmra.mxu0 %v108
    %v167 = vpop.f32.mrf.mxu0
    %v168 = vadd.f32 0.0, %v167
    %v169 = vpop.f32.mrf.mxu0
    %v170 = vadd.f32 0.0, %v169
    %171 = vdwg.mxu0
    %v172 = vadd.f32 %v86, %v168
    %v173 = vadd.f32 %v87, %v170
    %174 = vst [vmem:[#allocation2] sm:$0xff] %v172
    %175 = vst [vmem:[#allocation2 + $0x8] sm:$0xff] %v173
    // Predicated region
    $region26: #{melody_generator_forward.17} parent=1 // pred_check
      %p176 = pneg %p30
    $region27: #{melody_generator_forward.17} parent=1 // pred_check_branch
      %178 = sbr.rel (%p176) target = $region29
    $region28: #{melody_generator_forward.17} parent=1 // pred_region
      %v179 = vld [vmem:[#allocation2] sm:$0xff]
      %v180 = vld [vmem:[#allocation2 + $0x8] sm:$0xff]
      %v181 = vpack.c.bf16 %v179, %v179
      %v182 = vpack.c.bf16 %v180, %v180
      %183 = vst [vmem:[%s3] sm:$0xf] %v181
      %184 = vst [vmem:[%s3 + $0x4] sm:$0xf] %v182
    $region29: #{melody_generator_forward.17} parent=1 // pred_fallthru
      _
    // Predicated region
    $region30: #{melody_generator_forward.17} parent=1 // pred_check
      _
    $region31: #{melody_generator_forward.17} parent=1 // pred_check_branch
      %186 = sbr.rel (0) target = $region33
    $region32: #{melody_generator_forward.17} parent=1 // pred_region
      _
    $region33: #{melody_generator_forward.17} parent=1 // pred_fallthru
      _
    // Predicated region
    $region34: #{melody_generator_forward.17} parent=1 // pred_check
      _
    $region35: #{melody_generator_forward.17} parent=1 // pred_check_branch
      %188 = sbr.rel (0) target = $region37
    $region36: #{melody_generator_forward.17} parent=1 // pred_region
      _
    $region37: #{melody_generator_forward.17} parent=1 // pred_fallthru
      _
    %189 = vsyncpa [#allocation5], 1

// kernel: melody_generator_forward.16
$region0: #{melody_generator_forward.16}
  #allocation0 [shape = 'u32[]', space=smem, size = 0x4, offset = 0x4, fixed_abs, tag = 'smem constant byte address 0x4 - core index']
  #allocation1 [shape = 'u32[72,128]{1,0:T(1,128)}', space=vmem, size = 0x9000, scoped, tag = 'internal scratch']
  #allocation2 [shape = 'bf16[8,128]{1,0:T(8,128)(2,1)}', space=vmem, size = 0x800, scoped, tag = 'scratch operand']
  %s0 = inlined_call_operand.vmem [shape: bf16[2,8,384], index: 0, kind: input, shape index: {}, may-alias: {0,1,2}]
  %s1 = inlined_call_operand.vmem [shape: bf16[2,8,384], index: 1, kind: input, shape index: {}, may-alias: {0,1,2}]
  %s2 = inlined_call_operand.vmem [shape: bf16[2,8,384], index: 2, kind: input, shape index: {}, may-alias: {0,1,2}]
  %s3 = inlined_call_operand.hbm [shape: bf16[128,128], index: 3, kind: input, shape index: {}]
  %s4 = inlined_call_operand.vmem [shape: f32[2,8,128], index: 4, kind: input, shape index: {}]
  %s5 = inlined_call_operand.vmem [shape: f32[2,8,128], index: 5, kind: output, shape index: {}]
  %s6 = sld [smem:[#allocation0]]
  $region57: #{melody_generator_forward.16} parent=0
    _
  %s8 = ssub.s32 1, %s6
  %s9 = scalar_select 0, %s8, %s6
  $region1: #{melody_generator_forward.16} parent=0
    #allocation3 [shape = 'u8[32768]{0}', space=vmem, size = 0x8000, scoped, tag = 'input window, operand 3, single buffered']
    #allocation4 [shape = 's32[2]{0}', space=sflag, size = 0x8, scoped, tag = 'scoped memory for melody_generator_forward.16']
    %10 = vsyncpa [#allocation4], 0
    loop: start=0, step=1, limit=4
    $region2: #{melody_generator_forward.16} parent=1 // loop_pre_header
      _
    $region3: #{melody_generator_forward.16} parent=1 // loop_header
      %s12 = sphi 0, %s16
      %p13 = scmp.ge.s32.totalorder %s12, 4
      %s19 = sphi 0, %s31
      %s20 = sphi 0, %s27
      %s21 = sphi 0, %s19
      %s22 = sphi 0, %s20
      %s23 = sphi 0, %s21
      %s24 = sphi 0, %s22
      %s36 = sphi 0, %s38
      %s39 = sphi 0, %s36
      %s40 = sphi 0, %s39
      %s56 = sphi 0, %s40
      %s62 = sphi 0, %s64
      %s65 = sphi 0, %s62
      %s66 = sphi 0, %s65
      %s82 = sphi 0, %s66
      %s88 = sphi 0, %s90
      %s91 = sphi 0, %s88
      %s92 = sphi 0, %s91
      %s108 = sphi 0, %s92
      %s112 = sphi 0, %s112
      %s114 = sphi 0, %s112
      %s115 = sphi 0, %s114
      %s129 = sphi 0, %s115
      %s137 = sphi 0, %s139
      %s140 = sphi 0, %s137
      %s141 = sphi 0, %s140
      %s157 = sphi 0, %s141
      %s165 = sphi 0, %s167
      %s168 = sphi 0, %s165
      %s169 = sphi 0, %s168
      %s185 = sphi 0, %s169
    $region4: #{melody_generator_forward.16} parent=1 // loop_header_branch
      %15 = sbr.rel (%p13) target = $region8
    $region5: #{melody_generator_forward.16} parent=1 // loop_body
      %s17 = ssub.s32 %s12, 1
      %s18 = ssub.s32 %s12, 2
      %s25 = sadd.s32 1, %s20
      %p26 = scmp.ge.s32.totalorder %s25, 1
      %s27 = scalar_select %p26, 0, %s25
      %s28 = sadd.s32 1, %s19
      %s29 = scalar_select %p26, %s28, %s19
      %p30 = scmp.ge.s32.totalorder %s29, 2
      %s31 = scalar_select %p30, 0, %s29
      %s32 = ssub.s32 %s19, %s31
      %s33 = ssub.s32 %s20, %s27
      %s34 = sor.u32 %s32, %s33
      %p35 = scmp.eq.s32.totalorder %s34, 0
      %s37 = sadd.s32 %s36, 1
      %s38 = scalar_select %p35, %s36, %s37
      %p41 = pneg %p35
      %p42 = scmp.eq.s32.totalorder %s12, 1
      %p43 = por %p41, %p42
      %p44 = scmp.ne.s32.totalorder %s36, %s39
      %p45 = scmp.eq.s32.totalorder %s12, 0
      %p46 = por %p44, %p45
      %p47 = scmp.ne.s32.totalorder %s36, %s39
      %p48 = scmp.eq.s32.totalorder %s17, 1
      %p49 = por %p47, %p48
      %p50 = scmp.ne.s32.totalorder %s39, %s40
      %p51 = scmp.eq.s32.totalorder %s17, 0
      %p52 = por %p50, %p51
      %p53 = scmp.ne.s32.totalorder %s39, %s40
      %p54 = scmp.eq.s32.totalorder %s18, 1
      %p55 = por %p53, %p54
      %p57 = scmp.ne.s32.totalorder %s40, %s56
      %p58 = scmp.eq.s32.totalorder %s18, 0
      %p59 = por %p57, %p58
      %s60 = ssub.s32 %s19, %s31
      %p61 = scmp.eq.s32.totalorder %s60, 0
      %s63 = sadd.s32 %s62, 1
      %s64 = scalar_select %p61, %s62, %s63
      %p67 = pneg %p61
      %p68 = scmp.eq.s32.totalorder %s12, 1
      %p69 = por %p67, %p68
      %p70 = scmp.ne.s32.totalorder %s62, %s65
      %p71 = scmp.eq.s32.totalorder %s12, 0
      %p72 = por %p70, %p71
      %p73 = scmp.ne.s32.totalorder %s62, %s65
      %p74 = scmp.eq.s32.totalorder %s17, 1
      %p75 = por %p73, %p74
      %p76 = scmp.ne.s32.totalorder %s65, %s66
      %p77 = scmp.eq.s32.totalorder %s17, 0
      %p78 = por %p76, %p77
      %p79 = scmp.ne.s32.totalorder %s65, %s66
      %p80 = scmp.eq.s32.totalorder %s18, 1
      %p81 = por %p79, %p80
      %p83 = scmp.ne.s32.totalorder %s66, %s82
      %p84 = scmp.eq.s32.totalorder %s18, 0
      %p85 = por %p83, %p84
      %s86 = ssub.s32 %s19, %s31
      %p87 = scmp.eq.s32.totalorder %s86, 0
      %s89 = sadd.s32 %s88, 1
      %s90 = scalar_select %p87, %s88, %s89
      %p93 = pneg %p87
      %p94 = scmp.eq.s32.totalorder %s12, 1
      %p95 = por %p93, %p94
      %p96 = scmp.ne.s32.totalorder %s88, %s91
      %p97 = scmp.eq.s32.totalorder %s12, 0
      %p98 = por %p96, %p97
      %p99 = scmp.ne.s32.totalorder %s88, %s91
      %p100 = scmp.eq.s32.totalorder %s17, 1
      %p101 = por %p99, %p100
      %p102 = scmp.ne.s32.totalorder %s91, %s92
      %p103 = scmp.eq.s32.totalorder %s17, 0
      %p104 = por %p102, %p103
      %p105 = scmp.ne.s32.totalorder %s91, %s92
      %p106 = scmp.eq.s32.totalorder %s18, 1
      %p107 = por %p105, %p106
      %p109 = scmp.ne.s32.totalorder %s92, %s108
      %p110 = scmp.eq.s32.totalorder %s18, 0
      %p111 = por %p109, %p110
      %s113 = sadd.s32 %s112, 1
      %p116 = scmp.eq.s32.totalorder %s12, 1
      %p117 = scmp.ne.s32.totalorder %s112, %s114
      %p118 = scmp.eq.s32.totalorder %s12, 0
      %p119 = por %p117, %p118
      %p120 = scmp.ne.s32.totalorder %s112, %s114
      %p121 = scmp.eq.s32.totalorder %s17, 1
      %p122 = por %p120, %p121
      %p123 = scmp.ne.s32.totalorder %s114, %s115
      %p124 = scmp.eq.s32.totalorder %s17, 0
      %p125 = por %p123, %p124
      %p126 = scmp.ne.s32.totalorder %s114, %s115
      %p127 = scmp.eq.s32.totalorder %s18, 1
      %p128 = por %p126, %p127
      %p130 = scmp.ne.s32.totalorder %s115, %s129
      %p131 = scmp.eq.s32.totalorder %s18, 0
      %p132 = por %p130, %p131
      %s133 = ssub.s32 %s19, %s31
      %s134 = ssub.s32 %s20, %s27
      %s135 = sor.u32 %s133, %s134
      %p136 = scmp.eq.s32.totalorder %s135, 0
      %s138 = sadd.s32 %s137, 1
      %s139 = scalar_select %p136, %s137, %s138
      %p142 = pneg %p136
      %p143 = scmp.eq.s32.totalorder %s12, 1
      %p144 = por %p142, %p143
      %p145 = scmp.ne.s32.totalorder %s137, %s140
      %p146 = scmp.eq.s32.totalorder %s12, 0
      %p147 = por %p145, %p146
      %p148 = scmp.ne.s32.totalorder %s137, %s140
      %p149 = scmp.eq.s32.totalorder %s17, 1
      %p150 = por %p148, %p149
      %p151 = scmp.ne.s32.totalorder %s140, %s141
      %p152 = scmp.eq.s32.totalorder %s17, 0
      %p153 = por %p151, %p152
      %p154 = scmp.ne.s32.totalorder %s140, %s141
      %p155 = scmp.eq.s32.totalorder %s18, 1
      %p156 = por %p154, %p155
      %p158 = scmp.ne.s32.totalorder %s141, %s157
      %p159 = scmp.eq.s32.totalorder %s18, 0
      %p160 = por %p158, %p159
      %s161 = ssub.s32 %s19, %s31
      %s162 = ssub.s32 %s20, %s27
      %s163 = sor.u32 %s161, %s162
      %p164 = scmp.eq.s32.totalorder %s163, 0
      %s166 = sadd.s32 %s165, 1
      %s167 = scalar_select %p164, %s165, %s166
      %p170 = pneg %p164
      %p171 = scmp.eq.s32.totalorder %s12, 1
      %p172 = por %p170, %p171
      %p173 = scmp.ne.s32.totalorder %s165, %s168
      %p174 = scmp.eq.s32.totalorder %s12, 0
      %p175 = por %p173, %p174
      %p176 = scmp.ne.s32.totalorder %s165, %s168
      %p177 = scmp.eq.s32.totalorder %s17, 1
      %p178 = por %p176, %p177
      %p179 = scmp.ne.s32.totalorder %s168, %s169
      %p180 = scmp.eq.s32.totalorder %s17, 0
      %p181 = por %p179, %p180
      %p182 = scmp.ne.s32.totalorder %s168, %s169
      %p183 = scmp.eq.s32.totalorder %s18, 1
      %p184 = por %p182, %p183
      %p186 = scmp.ne.s32.totalorder %s169, %s185
      %p187 = scmp.eq.s32.totalorder %s18, 0
      %p188 = por %p186, %p187
      %p189 = scmp.le.s32.totalorder 1, %s12
      %p190 = scmp.lt.s32.totalorder %s12, 3
      %p191 = pnand %p189, %p190
      %p192 = pneg %p191
      // Predicated region
      $region9: #{melody_generator_forward.16} parent=5 // pred_check
        _
      $region10: #{melody_generator_forward.16} parent=5 // pred_check_branch
        %194 = sbr.rel (%p191) target = $region12
      $region11: #{melody_generator_forward.16} parent=5 // pred_region
        %s195 = ssub.s32 %s12, 1
        // Predicated region
        $region13: #{melody_generator_forward.16} parent=11 // pred_check
          %p196 = pneg %p125
        $region14: #{melody_generator_forward.16} parent=11 // pred_check_branch
          %198 = sbr.rel (%p196) target = $region16
        $region15: #{melody_generator_forward.16} parent=11 // pred_region
          %200 = vsyncadd [#allocation4], 0
          %s201 = sshll.u32 %s3, 4
          %s202 = int_to_ptr.hbm [resolvable:$true] %s201
          %s203 = sshll.u32 [#allocation3], 4
          %s204 = int_to_ptr.vmem [resolvable:$true] %s203
          %209 = dma.hbm_to_vmem [thread:$0]  %s202, 1024, %s204, [#allocation4], 64, 64, 4
        $region16: #{melody_generator_forward.16} parent=11 // pred_fallthru
          _
      $region12: #{melody_generator_forward.16} parent=5 // pred_fallthru
        _
      %p210 = scmp.lt.s32.totalorder %s12, 2
      // Predicated region
      $region17: #{melody_generator_forward.16} parent=5 // pred_check
        %p211 = pneg %p210
      $region18: #{melody_generator_forward.16} parent=5 // pred_check_branch
        %213 = sbr.rel (%p211) target = $region20
      $region19: #{melody_generator_forward.16} parent=5 // pred_region
        // Predicated region
        $region21: #{melody_generator_forward.16} parent=19 // pred_check
          %p214 = pneg %p46
        $region22: #{melody_generator_forward.16} parent=19 // pred_check_branch
          %216 = sbr.rel (%p214) target = $region24
        $region23: #{melody_generator_forward.16} parent=19 // pred_region
          %p217 = scmp.lt.s32.totalorder %s19, 1
          %s218 = scalar_select %p217, %s19, 1
          %p219 = scmp.lt.s32.totalorder %s20, 0
          %s220 = scalar_select %p219, %s20, 0
          %s221 = smul.addr %s220, 3
          %s222 = smul.addr %s218, 3
          %s223 = sadd.s32 %s221, %s222
          %s224 = smul.addr %s223, 4
          %s225 = scalar_lea.vmem %s0, %s224
        $region24: #{melody_generator_forward.16} parent=19 // pred_fallthru
          _
        // Predicated region
        $region25: #{melody_generator_forward.16} parent=19 // pred_check
          %p226 = pneg %p72
        $region26: #{melody_generator_forward.16} parent=19 // pred_check_branch
          %228 = sbr.rel (%p226) target = $region28
        $region27: #{melody_generator_forward.16} parent=19 // pred_region
          %p229 = scmp.lt.s32.totalorder %s19, 1
          %s230 = scalar_select %p229, %s19, 1
          %s231 = smul.addr %s230, 3
          %s232 = sadd.s32 1, %s231
          %s233 = smul.addr %s232, 4
          %s234 = scalar_lea.vmem %s1, %s233
        $region28: #{melody_generator_forward.16} parent=19 // pred_fallthru
          _
        // Predicated region
        $region29: #{melody_generator_forward.16} parent=19 // pred_check
          %p235 = pneg %p98
        $region30: #{melody_generator_forward.16} parent=19 // pred_check_branch
          %237 = sbr.rel (%p235) target = $region32
        $region31: #{melody_generator_forward.16} parent=19 // pred_region
          %p238 = scmp.lt.s32.totalorder %s19, 1
          %s239 = scalar_select %p238, %s19, 1
          %s240 = smul.addr %s239, 3
          %s241 = sadd.s32 2, %s240
          %s242 = smul.addr %s241, 4
          %s243 = scalar_lea.vmem %s2, %s242
        $region32: #{melody_generator_forward.16} parent=19 // pred_fallthru
          _
        // Predicated region
        $region33: #{melody_generator_forward.16} parent=19 // pred_check
          %p244 = pneg %p147
        $region34: #{melody_generator_forward.16} parent=19 // pred_check_branch
          %246 = sbr.rel (%p244) target = $region36
        $region35: #{melody_generator_forward.16} parent=19 // pred_region
          %p247 = scmp.lt.s32.totalorder %s19, 1
          %s248 = scalar_select %p247, %s19, 1
          %p249 = scmp.lt.s32.totalorder %s20, 0
          %s250 = scalar_select %p249, %s20, 0
          %s251 = sadd.s32 %s250, %s248
          %s252 = smul.addr %s251, 8
          %s253 = scalar_lea.vmem %s4, %s252
        $region36: #{melody_generator_forward.16} parent=19 // pred_fallthru
          _
      $region20: #{melody_generator_forward.16} parent=5 // pred_fallthru
        _
      %p254 = scmp.le.s32.totalorder 1, %s12
      %p255 = scmp.lt.s32.totalorder %s12, 3
      %p256 = pnand %p254, %p255
      %p257 = pneg %p256
      // Predicated region
      $region37: #{melody_generator_forward.16} parent=5 // pred_check
        _
      $region38: #{melody_generator_forward.16} parent=5 // pred_check_branch
        %259 = sbr.rel (%p256) target = $region40
      $region39: #{melody_generator_forward.16} parent=5 // pred_region
        %s260 = ssub.s32 %s12, 1
        // Predicated region
        $region41: #{melody_generator_forward.16} parent=39 // pred_check
          %p261 = pneg %p125
        $region42: #{melody_generator_forward.16} parent=39 // pred_check_branch
          %263 = sbr.rel (%p261) target = $region44
        $region43: #{melody_generator_forward.16} parent=39 // pred_region
          %265 = dma.done [#allocation4], 1024
        $region44: #{melody_generator_forward.16} parent=39 // pred_fallthru
          _
        %p266 = scmp.lt.s32.totalorder %s21, 1
        %s267 = scalar_select %p266, %s21, 1
        %p268 = scmp.lt.s32.totalorder %s22, 0
        %s269 = scalar_select %p268, %s22, 0
        %s270 = smul.addr %s269, 3
        %s271 = smul.addr %s267, 3
        %s272 = sadd.s32 %s270, %s271
        %s273 = smul.addr %s272, 4
        %s274 = scalar_lea.vmem %s0, %s273
        %p275 = pneg %p52
        %p276 = pneg %p49
        %p277 = scmp.lt.s32.totalorder %s21, 1
        %s278 = scalar_select %p277, %s21, 1
        %s279 = smul.addr %s278, 3
        %s280 = sadd.s32 1, %s279
        %s281 = smul.addr %s280, 4
        %s282 = scalar_lea.vmem %s1, %s281
        %p283 = pneg %p78
        %p284 = pneg %p75
        %p285 = scmp.lt.s32.totalorder %s21, 1
        %s286 = scalar_select %p285, %s21, 1
        %s287 = smul.addr %s286, 3
        %s288 = sadd.s32 2, %s287
        %s289 = smul.addr %s288, 4
        %s290 = scalar_lea.vmem %s2, %s289
        %p291 = pneg %p104
        %p292 = pneg %p101
        %p293 = pneg %p125
        %p294 = pneg %p122
        %p295 = scmp.lt.s32.totalorder %s21, 1
        %s296 = scalar_select %p295, %s21, 1
        %p297 = scmp.lt.s32.totalorder %s22, 0
        %s298 = scalar_select %p297, %s22, 0
        %s299 = sadd.s32 %s298, %s296
        %s300 = smul.addr %s299, 8
        %s301 = scalar_lea.vmem %s4, %s300
        %p302 = pneg %p153
        %p303 = pneg %p150
        %p304 = pneg %p181
        %p305 = pneg %p178
        %p306 = scmp.lt.s32.totalorder %s21, 1
        %s307 = scalar_select %p306, %s21, 1
        %p308 = scmp.lt.s32.totalorder %s22, 0
        %s309 = scalar_select %p308, %s22, 0
        %s310 = sadd.s32 %s309, %s307
        %s311 = smul.addr %s310, 8
        %s312 = scalar_lea.vmem %s5, %s311
        %p313 = scmp.lt.s32.totalorder %s21, 1
        %s314 = scalar_select %p313, %s21, 1
        %p315 = scmp.lt.s32.totalorder %s22, 0
        %s316 = scalar_select %p315, %s22, 0
        %s317 = smul.addr %s316, 3
        %s318 = smul.addr %s314, 3
        %s319 = sadd.s32 %s317, %s318
        %s320 = smul.addr %s319, 4
        %s321 = scalar_lea.vmem %s0, %s320
        %p322 = scmp.lt.s32.totalorder %s21, 1
        %s323 = scalar_select %p322, %s21, 1
        %s324 = smul.addr %s323, 3
        %s325 = sadd.s32 1, %s324
        %s326 = smul.addr %s325, 4
        %s327 = scalar_lea.vmem %s1, %s326
        %p328 = scmp.lt.s32.totalorder %s21, 1
        %s329 = scalar_select %p328, %s21, 1
        %s330 = smul.addr %s329, 3
        %s331 = sadd.s32 2, %s330
        %s332 = smul.addr %s331, 4
        %s333 = scalar_lea.vmem %s2, %s332
        %p334 = scmp.lt.s32.totalorder %s21, 1
        %s335 = scalar_select %p334, %s21, 1
        %p336 = scmp.lt.s32.totalorder %s22, 0
        %s337 = scalar_select %p336, %s22, 0
        %s338 = sadd.s32 %s337, %s335
        %s339 = smul.addr %s338, 8
        %s340 = scalar_lea.vmem %s4, %s339
        %p341 = scmp.lt.s32.totalorder %s21, 1
        %s342 = scalar_select %p341, %s21, 1
        %p343 = scmp.lt.s32.totalorder %s22, 0
        %s344 = scalar_select %p343, %s22, 0
        %s345 = sadd.s32 %s344, %s342
        %s346 = smul.addr %s345, 8
        %s347 = scalar_lea.vmem %s5, %s346
        %s349 = smul.u32 %s22, 8
        %v350 = vlaneseq
        %v351 = vshrl.u32 %v350, 7
        %v352 = vstv %s349
        %v353 = vadd.s32 %v352, %v351
        %v354 = vlaneseq
        %v355 = vand.u32 %v354, 127
        %vm356 = vcmp.le.s32.totalorder %v355, %v353
        %v357 = vsel %vm356, 0.0, -1e+30
        %v358 = vld [vmem:[%s321] sm:$0xf]
        %v359 = vld [vmem:[%s327] sm:$0xf]
        %v360 = vld [vmem:[%s333] sm:$0xf]
        %vm361 = vcmask 261120
        %v363 = vsel %vm361, %v358, 0
        %v366 = vsel %vm361, %v359, 0
        %368 = vmatpush.bf16.xpose.msra.mxu0 0
        %369 = vmatpush.bf16.xpose.msra.mxu0 0
        %370 = vmatpush.bf16.xpose.msra.mxu0 0
        %371 = vmatpush.bf16.xpose.msra.mxu0 0
        %372 = vmatpush.bf16.xpose.msra.mxu0 0
        %373 = vmatpush.bf16.xpose.msra.mxu0 0
        %374 = vmatpush.bf16.xpose.msra.mxu0 0
        %375 = vmatpush.bf16.xpose.msra.mxu0 %v366
        %376 = vmatmul.bf16.gmra.mxu0 %v363
        %v377 = vpop.f32.mrf.mxu0
        %v378 = vadd.f32 0.0, %v377
        %v379 = vpop.f32.mrf.mxu0
        %380 = vdwg.mxu0
        %v381 = vmul.f32 %v378, 0.17677669
        %v382 = vadd.f32 %v381, %v357
        %vm383 = vcmask 64512
        %v384 = vsel %vm383, %v382, -inf
        %385 = vmax.xlane.f32.xlu0 %v384
        %v386 = vpop.xlane.xlu0 %385
        %v387 = vsub.f32 %v382, %v386
        %v388 = vmul.f32 %v387, 1.442695
        %v389 = vpow.pop %v388
        %v390 = vsel %vm383, %v389, 0.0
        %391 = vadd.xlane.f32.xlu0 %v390
        %v392 = vpop.xlane.xlu0 %391
        %v393 = vrcp.pop %v392
        %v394 = vmul.f32 %v389, %v393
        %v395 = vpack.c.bf16 %v394, %v394
        %v397 = vsel %vm383, %v395, 0
        %vm399 = vcmask 1043456
        %v401 = vsel %vm399, %v360, 0
        %403 = vmatpush.bf16.msra.mxu0 0
        %404 = vmatpush.bf16.msra.mxu0 0
        %405 = vmatpush.bf16.msra.mxu0 0
        %406 = vmatpush.bf16.msra.mxu0 0
        %407 = vmatpush.bf16.msra.mxu0 0
        %408 = vmatpush.bf16.msra.mxu0 0
        %409 = vmatpush.bf16.msra.mxu0 0
        %410 = vmatpush.bf16.msra.mxu0 %v401
        %411 = vmatmul.bf16.gmra.mxu0 %v397
        %v412 = vpop.f32.mrf.mxu0
        %v413 = vadd.f32 0.0, %v412
        %v414 = vpop.f32.mrf.mxu0
        %415 = vdwg.mxu0
        %v416 = vpack.c.bf16 %v413, %v413
        %vm417 = vcmask 257024
        %418 = vst.msk [vmem:[#allocation2] sm:$0xf] %vm417, %v416
        %v419 = vld [vmem:[%s321] sm:$0xf]
        %v420 = vld [vmem:[%s327] sm:$0xf]
        %v421 = vld [vmem:[%s333] sm:$0xf]
        %v423 = vunpack.c.l.b16 %v419
        %v424 = vpack.c.b16 %v423, %v423
        %425 = vrot.lane.b32.xlu0 %v424, 96
        %v426 = vpop.permute.xlu0 %425
        %v428 = vunpack.c.l.b16 %v420
        %v429 = vpack.c.b16 %v428, %v428
        %430 = vrot.lane.b32.xlu0 %v429, 96
        %v431 = vpop.permute.xlu0 %430
        %v433 = vsel %vm361, %v426, 0
        %v436 = vsel %vm361, %v431, 0
        %438 = vmatpush.bf16.xpose.msra.mxu0 0
        %439 = vmatpush.bf16.xpose.msra.mxu0 0
        %440 = vmatpush.bf16.xpose.msra.mxu0 0
        %441 = vmatpush.bf16.xpose.msra.mxu0 0
        %442 = vmatpush.bf16.xpose.msra.mxu0 0
        %443 = vmatpush.bf16.xpose.msra.mxu0 0
        %444 = vmatpush.bf16.xpose.msra.mxu0 0
        %445 = vmatpush.bf16.xpose.msra.mxu0 %v436
        %446 = vmatmul.bf16.gmra.mxu0 %v433
        %v447 = vpop.f32.mrf.mxu0
        %v448 = vadd.f32 0.0, %v447
        %v449 = vpop.f32.mrf.mxu0
        %450 = vdwg.mxu0
        %v451 = vmul.f32 %v448, 0.17677669
        %v452 = vadd.f32 %v451, %v357
        %v453 = vsel %vm383, %v452, -inf
        %454 = vmax.xlane.f32.xlu0 %v453
        %v455 = vpop.xlane.xlu0 %454
        %v456 = vsub.f32 %v452, %v455
        %v457 = vmul.f32 %v456, 1.442695
        %v458 = vpow.pop %v457
        %v459 = vsel %vm383, %v458, 0.0
        %460 = vadd.xlane.f32.xlu0 %v459
        %v461 = vpop.xlane.xlu0 %460
        %v462 = vrcp.pop %v461
        %v463 = vmul.f32 %v458, %v462
        %v464 = vpack.c.bf16 %v463, %v463
        %v466 = vunpack.c.l.b16 %v421
        %v467 = vpack.c.b16 %v466, %v466
        %468 = vrot.lane.b32.xlu0 %v467, 96
        %v469 = vpop.permute.xlu0 %468
        %v471 = vsel %vm383, %v464, 0
        %v474 = vsel %vm399, %v469, 0
        %476 = vmatpush.bf16.msra.mxu0 0
        %477 = vmatpush.bf16.msra.mxu0 0
        %478 = vmatpush.bf16.msra.mxu0 0
        %479 = vmatpush.bf16.msra.mxu0 0
        %480 = vmatpush.bf16.msra.mxu0 0
        %481 = vmatpush.bf16.msra.mxu0 0
        %482 = vmatpush.bf16.msra.mxu0 0
        %483 = vmatpush.bf16.msra.mxu0 %v474
        %484 = vmatmul.bf16.gmra.mxu0 %v471
        %v485 = vpop.f32.mrf.mxu0
        %v486 = vadd.f32 0.0, %v485
        %v487 = vpop.f32.mrf.mxu0
        %488 = vdwg.mxu0
        %v489 = vpack.c.bf16 %v486, %v486
        %491 = vrot.lane.b32.xlu0 %v489, 32
        %v492 = vpop.permute.xlu0 %491
        %vm494 = vcmask 519424
        %495 = vst.msk [vmem:[#allocation2] sm:$0xf] %vm494, %v492
        %v496 = vld [vmem:[%s321] sm:$0xf]
        %v497 = vld [vmem:[%s327] sm:$0xf]
        %v498 = vld [vmem:[%s333] sm:$0xf]
        %v500 = vunpack.c.l.b16 %v496
        %v501 = vpack.c.b16 %v500, %v500
        %502 = vrot.lane.b32.xlu0 %v501, 64
        %v503 = vpop.permute.xlu0 %502
        %v505 = vunpack.c.l.b16 %v497
        %v506 = vpack.c.b16 %v505, %v505
        %507 = vrot.lane.b32.xlu0 %v506, 64
        %v508 = vpop.permute.xlu0 %507
        %v510 = vsel %vm361, %v503, 0
        %v513 = vsel %vm361, %v508, 0
        %515 = vmatpush.bf16.xpose.msra.mxu0 0
        %516 = vmatpush.bf16.xpose.msra.mxu0 0
        %517 = vmatpush.bf16.xpose.msra.mxu0 0
        %518 = vmatpush.bf16.xpose.msra.mxu0 0
        %519 = vmatpush.bf16.xpose.msra.mxu0 0
        %520 = vmatpush.bf16.xpose.msra.mxu0 0
        %521 = vmatpush.bf16.xpose.msra.mxu0 0
        %522 = vmatpush.bf16.xpose.msra.mxu0 %v513
        %523 = vmatmul.bf16.gmra.mxu0 %v510
        %v524 = vpop.f32.mrf.mxu0
        %v525 = vadd.f32 0.0, %v524
        %v526 = vpop.f32.mrf.mxu0
        %527 = vdwg.mxu0
        %v528 = vmul.f32 %v525, 0.17677669
        %v529 = vadd.f32 %v528, %v357
        %v530 = vsel %vm383, %v529, -inf
        %531 = vmax.xlane.f32.xlu0 %v530
        %v532 = vpop.xlane.xlu0 %531
        %v533 = vsub.f32 %v529, %v532
        %v534 = vmul.f32 %v533, 1.442695
        %v535 = vpow.pop %v534
        %v536 = vsel %vm383, %v535, 0.0
        %537 = vadd.xlane.f32.xlu0 %v536
        %v538 = vpop.xlane.xlu0 %537
        %v539 = vrcp.pop %v538
        %v540 = vmul.f32 %v535, %v539
        %v541 = vpack.c.bf16 %v540, %v540
        %v543 = vunpack.c.l.b16 %v498
        %v544 = vpack.c.b16 %v543, %v543
        %545 = vrot.lane.b32.xlu0 %v544, 64
        %v546 = vpop.permute.xlu0 %545
        %v548 = vsel %vm383, %v541, 0
        %v551 = vsel %vm399, %v546, 0
        %553 = vmatpush.bf16.msra.mxu0 0
        %554 = vmatpush.bf16.msra.mxu0 0
        %555 = vmatpush.bf16.msra.mxu0 0
        %556 = vmatpush.bf16.msra.mxu0 0
        %557 = vmatpush.bf16.msra.mxu0 0
        %558 = vmatpush.bf16.msra.mxu0 0
        %559 = vmatpush.bf16.msra.mxu0 0
        %560 = vmatpush.bf16.msra.mxu0 %v551
        %561 = vmatmul.bf16.gmra.mxu0 %v548
        %v562 = vpop.f32.mrf.mxu0
        %v563 = vadd.f32 0.0, %v562
        %v564 = vpop.f32.mrf.mxu0
        %565 = vdwg.mxu0
        %v566 = vpack.c.bf16 %v563, %v563
        %568 = vrot.lane.b32.xlu0 %v566, 64
        %v569 = vpop.permute.xlu0 %568
        %vm571 = vcmask 781824
        %572 = vst.msk [vmem:[#allocation2] sm:$0xf] %vm571, %v569
        %v573 = vld [vmem:[%s321] sm:$0xf]
        %v574 = vld [vmem:[%s327] sm:$0xf]
        %v575 = vld [vmem:[%s333] sm:$0xf]
        %v577 = vunpack.c.l.b16 %v573
        %v578 = vpack.c.b16 %v577, %v577
        %579 = vrot.lane.b32.xlu0 %v578, 32
        %v580 = vpop.permute.xlu0 %579
        %v582 = vunpack.c.l.b16 %v574
        %v583 = vpack.c.b16 %v582, %v582
        %584 = vrot.lane.b32.xlu0 %v583, 32
        %v585 = vpop.permute.xlu0 %584
        %v587 = vsel %vm361, %v580, 0
        %v590 = vsel %vm361, %v585, 0
        %592 = vmatpush.bf16.xpose.msra.mxu0 0
        %593 = vmatpush.bf16.xpose.msra.mxu0 0
        %594 = vmatpush.bf16.xpose.msra.mxu0 0
        %595 = vmatpush.bf16.xpose.msra.mxu0 0
        %596 = vmatpush.bf16.xpose.msra.mxu0 0
        %597 = vmatpush.bf16.xpose.msra.mxu0 0
        %598 = vmatpush.bf16.xpose.msra.mxu0 0
        %599 = vmatpush.bf16.xpose.msra.mxu0 %v590
        %600 = vmatmul.bf16.gmra.mxu0 %v587
        %v601 = vpop.f32.mrf.mxu0
        %v602 = vadd.f32 0.0, %v601
        %v603 = vpop.f32.mrf.mxu0
        %604 = vdwg.mxu0
        %v605 = vmul.f32 %v602, 0.17677669
        %v606 = vadd.f32 %v605, %v357
        %v607 = vsel %vm383, %v606, -inf
        %608 = vmax.xlane.f32.xlu0 %v607
        %v609 = vpop.xlane.xlu0 %608
        %v610 = vsub.f32 %v606, %v609
        %v611 = vmul.f32 %v610, 1.442695
        %v612 = vpow.pop %v611
        %v613 = vsel %vm383, %v612, 0.0
        %614 = vadd.xlane.f32.xlu0 %v613
        %v615 = vpop.xlane.xlu0 %614
        %v616 = vrcp.pop %v615
        %v617 = vmul.f32 %v612, %v616
        %v618 = vpack.c.bf16 %v617, %v617
        %v620 = vunpack.c.l.b16 %v575
        %v621 = vpack.c.b16 %v620, %v620
        %622 = vrot.lane.b32.xlu0 %v621, 32
        %v623 = vpop.permute.xlu0 %622
        %v625 = vsel %vm383, %v618, 0
        %v628 = vsel %vm399, %v623, 0
        %630 = vmatpush.bf16.msra.mxu0 0
        %631 = vmatpush.bf16.msra.mxu0 0
        %632 = vmatpush.bf16.msra.mxu0 0
        %633 = vmatpush.bf16.msra.mxu0 0
        %634 = vmatpush.bf16.msra.mxu0 0
        %635 = vmatpush.bf16.msra.mxu0 0
        %636 = vmatpush.bf16.msra.mxu0 0
        %637 = vmatpush.bf16.msra.mxu0 %v628
        %638 = vmatmul.bf16.gmra.mxu0 %v625
        %v639 = vpop.f32.mrf.mxu0
        %v640 = vadd.f32 0.0, %v639
        %v641 = vpop.f32.mrf.mxu0
        %642 = vdwg.mxu0
        %v643 = vpack.c.bf16 %v640, %v640
        %645 = vrot.lane.b32.xlu0 %v643, 96
        %v646 = vpop.permute.xlu0 %645
        %vm648 = vcmask 1044224
        %649 = vst.msk [vmem:[#allocation2] sm:$0xf] %vm648, %v646
        %v650 = vld [vmem:[%s340] sm:$0xff]
        %v651 = vld [vmem:[#allocation2] sm:$0xf]
        %v652 = vld [vmem:[#allocation3] sm:$0xf]
        %v653 = vld [vmem:[#allocation3 + $0x4] sm:$0xf]
        %v654 = vld [vmem:[#allocation3 + $0x8] sm:$0xf]
        %v655 = vld [vmem:[#allocation3 + $0xc] sm:$0xf]
        %v656 = vld [vmem:[#allocation3 + $0x10] sm:$0xf]
        %v657 = vld [vmem:[#allocation3 + $0x14] sm:$0xf]
        %v658 = vld [vmem:[#allocation3 + $0x18] sm:$0xf]
        %v659 = vld [vmem:[#allocation3 + $0x1c] sm:$0xf]
        %v660 = vld [vmem:[#allocation3 + $0x20] sm:$0xf]
        %v661 = vld [vmem:[#allocation3 + $0x24] sm:$0xf]
        %v662 = vld [vmem:[#allocation3 + $0x28] sm:$0xf]
        %v663 = vld [vmem:[#allocation3 + $0x2c] sm:$0xf]
        %v664 = vld [vmem:[#allocation3 + $0x30] sm:$0xf]
        %v665 = vld [vmem:[#allocation3 + $0x34] sm:$0xf]
        %v666 = vld [vmem:[#allocation3 + $0x38] sm:$0xf]
        %v667 = vld [vmem:[#allocation3 + $0x3c] sm:$0xf]
        %v684 = vunpack.c.l.b16 %v652
        %v685 = vunpack.c.l.b16 %v653
        %v686 = vunpack.c.l.b16 %v654
        %v687 = vunpack.c.l.b16 %v655
        %v688 = vunpack.c.l.b16 %v656
        %v689 = vunpack.c.l.b16 %v657
        %v690 = vunpack.c.l.b16 %v658
        %v691 = vunpack.c.l.b16 %v659
        %v692 = vunpack.c.l.b16 %v660
        %v693 = vunpack.c.l.b16 %v661
        %v694 = vunpack.c.l.b16 %v662
        %v695 = vunpack.c.l.b16 %v663
        %v696 = vunpack.c.l.b16 %v664
        %v697 = vunpack.c.l.b16 %v665
        %v698 = vunpack.c.l.b16 %v666
        %v699 = vunpack.c.l.b16 %v667
        %v700 = vpack.c.b16 %v685, %v684
        %v701 = vpack.c.b16 %v687, %v686
        %v702 = vpack.c.b16 %v689, %v688
        %v703 = vpack.c.b16 %v691, %v690
        %v704 = vpack.c.b16 %v693, %v692
        %v705 = vpack.c.b16 %v695, %v694
        %v706 = vpack.c.b16 %v697, %v696
        %v707 = vpack.c.b16 %v699, %v698
        %716 = vmatpush.bf16.msra.mxu0 %v707
        %717 = vmatpush.bf16.msra.mxu0 %v706
        %718 = vmatpush.bf16.msra.mxu0 %v705
        %719 = vmatpush.bf16.msra.mxu0 %v704
        %720 = vmatpush.bf16.msra.mxu0 %v703
        %721 = vmatpush.bf16.msra.mxu0 %v702
        %722 = vmatpush.bf16.msra.mxu0 %v701
        %723 = vmatpush.bf16.msra.mxu0 %v700
        %724 = vmatmul.bf16.gmra.mxu0 %v651
        %v725 = vpop.f32.mrf.mxu0
        %v726 = vadd.f32 0.0, %v725
        %v727 = vpop.f32.mrf.mxu0
        %728 = vdwg.mxu0
        %v729 = vadd.f32 %v650, %v726
        %730 = vst [vmem:[%s347] sm:$0xff] %v729
        %p731 = scmp.lt.s32.totalorder %s21, 1
        %s732 = scalar_select %p731, %s21, 1
        %p733 = scmp.lt.s32.totalorder %s22, 0
        %s734 = scalar_select %p733, %s22, 0
        %s735 = sadd.s32 %s734, %s732
        %s736 = smul.addr %s735, 8
        %s737 = scalar_lea.vmem %s5, %s736
        // Predicated region
        $region45: #{melody_generator_forward.16} parent=39 // pred_check
          %p738 = pneg %p178
        $region46: #{melody_generator_forward.16} parent=39 // pred_check_branch
          %740 = sbr.rel (%p738) target = $region48
        $region47: #{melody_generator_forward.16} parent=39 // pred_region
          _
        $region48: #{melody_generator_forward.16} parent=39 // pred_fallthru
          _
      $region40: #{melody_generator_forward.16} parent=5 // pred_fallthru
        _
      %p741 = scmp.le.s32.totalorder 2, %s12
      // Predicated region
      $region49: #{melody_generator_forward.16} parent=5 // pred_check
        %p742 = pneg %p741
      $region50: #{melody_generator_forward.16} parent=5 // pred_check_branch
        %744 = sbr.rel (%p742) target = $region52
      $region51: #{melody_generator_forward.16} parent=5 // pred_region
        %s745 = ssub.s32 %s12, 2
        // Predicated region
        $region53: #{melody_generator_forward.16} parent=51 // pred_check
          %p746 = pneg %p184
        $region54: #{melody_generator_forward.16} parent=51 // pred_check_branch
          %748 = sbr.rel (%p746) target = $region56
        $region55: #{melody_generator_forward.16} parent=51 // pred_region
          %p749 = scmp.lt.s32.totalorder %s23, 1
          %s750 = scalar_select %p749, %s23, 1
          %p751 = scmp.lt.s32.totalorder %s24, 0
          %s752 = scalar_select %p751, %s24, 0
          %s753 = sadd.s32 %s752, %s750
          %s754 = smul.addr %s753, 8
          %s755 = scalar_lea.vmem %s5, %s754
        $region56: #{melody_generator_forward.16} parent=51 // pred_fallthru
          _
      $region52: #{melody_generator_forward.16} parent=5 // pred_fallthru
        _
    $region6: #{melody_generator_forward.16} parent=1 // loop_footer
      %s16 = sadd.s32 1, %s12
    $region7: #{melody_generator_forward.16} parent=1 // loop_footer_branch
      %11 = sbr.rel target = $region3
    $region8: #{melody_generator_forward.16} parent=1 // loop_exit
      _
    %756 = vsyncpa [#allocation4], 1
    %s757 = scalar_lea.sflag [#allocation4], 1
    %758 = vsyncpa %s757, 1

// kernel: melody_generator_forward.21
$region0: #{melody_generator_forward.21}
  #allocation0 [shape = 'u32[]', space=smem, size = 0x4, offset = 0x4, fixed_abs, tag = 'smem constant byte address 0x4 - core index']
  #allocation1 [shape = 'u32[72,128]{1,0:T(1,128)}', space=vmem, size = 0x9000, scoped, tag = 'internal scratch']
  #allocation2 [shape = 'f32[16,128]{1,0:T(8,128)}', space=vmem, size = 0x2000, scoped, tag = 'scratch operand']
  %s0 = inlined_call_operand.vmem [shape: bf16[16,256], index: 0, kind: input, shape index: {}]
  %s1 = inlined_call_operand.hbm [shape: bf16[256,128], index: 1, kind: input, shape index: {}]
  %s2 = inlined_call_operand.vmem [shape: f32[1,128], index: 2, kind: input, shape index: {}]
  %s3 = inlined_call_operand.vmem [shape: f32[16,128], index: 3, kind: input, shape index: {}]
  %s4 = inlined_call_operand.vmem [shape: f32[16,128], index: 4, kind: output, shape index: {}]
  %s5 = sld [smem:[#allocation0]]
  $region38: #{melody_generator_forward.21} parent=0
    _
  %s7 = ssub.s32 1, %s5
  %s8 = scalar_select 0, %s7, %s5
  $region1: #{melody_generator_forward.21} parent=0
    #allocation3 [shape = 'u8[65536]{0}', space=vmem, size = 0x10000, scoped, tag = 'input window, operand 1, single buffered']
    #allocation4 [shape = 's32[1]{0}', space=sflag, size = 0x4, scoped, tag = 'scoped memory for melody_generator_forward.21']
    %9 = vsyncpa [#allocation4], 0
    // Predicated region
    $region2: #{melody_generator_forward.21} parent=1 // pred_check
      _
    $region3: #{melody_generator_forward.21} parent=1 // pred_check_branch
      %11 = sbr.rel (0) target = $region5
    $region4: #{melody_generator_forward.21} parent=1 // pred_region
      _
    $region5: #{melody_generator_forward.21} parent=1 // pred_fallthru
      _
    // Predicated region
    $region6: #{melody_generator_forward.21} parent=1 // pred_check
      _
    $region7: #{melody_generator_forward.21} parent=1 // pred_check_branch
      %13 = sbr.rel (0) target = $region9
    $region8: #{melody_generator_forward.21} parent=1 // pred_region
      %15 = vsyncadd [#allocation4], 0
      %s16 = sshll.u32 %s1, 4
      %s17 = int_to_ptr.hbm [resolvable:$true] %s16
      %s18 = sshll.u32 [#allocation3], 4
      %s19 = int_to_ptr.vmem [resolvable:$true] %s18
      %24 = dma.hbm_to_vmem [thread:$0]  %s17, 2048, %s19, [#allocation4], 64, 64, 4
    $region9: #{melody_generator_forward.21} parent=1 // pred_fallthru
      _
    // Predicated region
    $region10: #{melody_generator_forward.21} parent=1 // pred_check
      _
    $region11: #{melody_generator_forward.21} parent=1 // pred_check_branch
      %26 = sbr.rel (0) target = $region13
    $region12: #{melody_generator_forward.21} parent=1 // pred_region
      _
    $region13: #{melody_generator_forward.21} parent=1 // pred_fallthru
      _
    // Predicated region
    $region14: #{melody_generator_forward.21} parent=1 // pred_check
      _
    $region15: #{melody_generator_forward.21} parent=1 // pred_check_branch
      %28 = sbr.rel (0) target = $region17
    $region16: #{melody_generator_forward.21} parent=1 // pred_region
      _
    $region17: #{melody_generator_forward.21} parent=1 // pred_fallthru
      _
    // Predicated region
    $region18: #{melody_generator_forward.21} parent=1 // pred_check
      _
    $region19: #{melody_generator_forward.21} parent=1 // pred_check_branch
      %30 = sbr.rel (0) target = $region21
    $region20: #{melody_generator_forward.21} parent=1 // pred_region
      %32 = dma.done [#allocation4], 2048
    $region21: #{melody_generator_forward.21} parent=1 // pred_fallthru
      _
    %p33 = scmp.eq.s32.totalorder 0, 0
    // Predicated region
    $region22: #{melody_generator_forward.21} parent=1 // pred_check
      %p34 = pneg %p33
    $region23: #{melody_generator_forward.21} parent=1 // pred_check_branch
      %36 = sbr.rel (%p34) target = $region25
    $region24: #{melody_generator_forward.21} parent=1 // pred_region
      %37 = vst [vmem:[#allocation2] sm:$0xff] 0.0
      %38 = vst [vmem:[#allocation2 + $0x8] sm:$0xff] 0.0
    $region25: #{melody_generator_forward.21} parent=1 // pred_fallthru
      _
    %v39 = vld [vmem:[%s0] sm:$0xff]
    %v40 = vld [vmem:[%s0 + $0x8] sm:$0xff]
    %v41 = vld [vmem:[#allocation2] sm:$0xff]
    %v42 = vld [vmem:[#allocation2 + $0x8] sm:$0xff]
    %v43 = vld [vmem:[#allocation3] sm:$0xf]
    %v44 = vld [vmem:[#allocation3 + $0x4] sm:$0xf]
    %v45 = vld [vmem:[#allocation3 + $0x8] sm:$0xf]
    %v46 = vld [vmem:[#allocation3 + $0xc] sm:$0xf]
    %v47 = vld [vmem:[#allocation3 + $0x10] sm:$0xf]
    %v48 = vld [vmem:[#allocation3 + $0x14] sm:$0xf]
    %v49 = vld [vmem:[#allocation3 + $0x18] sm:$0xf]
    %v50 = vld [vmem:[#allocation3 + $0x1c] sm:$0xf]
    %v51 = vld [vmem:[#allocation3 + $0x20] sm:$0xf]
    %v52 = vld [vmem:[#allocation3 + $0x24] sm:$0xf]
    %v53 = vld [vmem:[#allocation3 + $0x28] sm:$0xf]
    %v54 = vld [vmem:[#allocation3 + $0x2c] sm:$0xf]
    %v55 = vld [vmem:[#allocation3 + $0x30] sm:$0xf]
    %v56 = vld [vmem:[#allocation3 + $0x34] sm:$0xf]
    %v57 = vld [vmem:[#allocation3 + $0x38] sm:$0xf]
    %v58 = vld [vmem:[#allocation3 + $0x3c] sm:$0xf]
    %v59 = vld [vmem:[#allocation3 + $0x40] sm:$0xf]
    %v60 = vld [vmem:[#allocation3 + $0x44] sm:$0xf]
    %v61 = vld [vmem:[#allocation3 + $0x48] sm:$0xf]
    %v62 = vld [vmem:[#allocation3 + $0x4c] sm:$0xf]
    %v63 = vld [vmem:[#allocation3 + $0x50] sm:$0xf]
    %v64 = vld [vmem:[#allocation3 + $0x54] sm:$0xf]
    %v65 = vld [vmem:[#allocation3 + $0x58] sm:$0xf]
    %v66 = vld [vmem:[#allocation3 + $0x5c] sm:$0xf]
    %v67 = vld [vmem:[#allocation3 + $0x60] sm:$0xf]
    %v68 = vld [vmem:[#allocation3 + $0x64] sm:$0xf]
    %v69 = vld [vmem:[#allocation3 + $0x68] sm:$0xf]
    %v70 = vld [vmem:[#allocation3 + $0x6c] sm:$0xf]
    %v71 = vld [vmem:[#allocation3 + $0x70] sm:$0xf]
    %v72 = vld [vmem:[#allocation3 + $0x74] sm:$0xf]
    %v73 = vld [vmem:[#allocation3 + $0x78] sm:$0xf]
    %v74 = vld [vmem:[#allocation3 + $0x7c] sm:$0xf]
    %v77 = vunpack.c.l.b16 %v39
    %v78 = vunpack.c.h.b16 %v39
    %v79 = vunpack.c.l.b16 %v40
    %v80 = vunpack.c.h.b16 %v40
    %v81 = vpack.c.b16 %v79, %v77
    %v82 = vpack.c.b16 %v80, %v78
    %v117 = vunpack.c.l.b16 %v43
    %v118 = vunpack.c.l.b16 %v44
    %v119 = vunpack.c.l.b16 %v45
    %v120 = vunpack.c.l.b16 %v46
    %v121 = vunpack.c.l.b16 %v47
    %v122 = vunpack.c.l.b16 %v48
    %v123 = vunpack.c.l.b16 %v49
    %v124 = vunpack.c.l.b16 %v50
    %v125 = vunpack.c.l.b16 %v51
    %v126 = vunpack.c.l.b16 %v52
    %v127 = vunpack.c.l.b16 %v53
    %v128 = vunpack.c.l.b16 %v54
    %v129 = vunpack.c.l.b16 %v55
    %v130 = vunpack.c.l.b16 %v56
    %v131 = vunpack.c.l.b16 %v57
    %v132 = vunpack.c.l.b16 %v58
    %v133 = vunpack.c.l.b16 %v59
    %v134 = vunpack.c.l.b16 %v60
    %v135 = vunpack.c.l.b16 %v61
    %v136 = vunpack.c.l.b16 %v62
    %v137 = vunpack.c.l.b16 %v63
    %v138 = vunpack.c.l.b16 %v64
    %v139 = vunpack.c.l.b16 %v65
    %v140 = vunpack.c.l.b16 %v66
    %v141 = vunpack.c.l.b16 %v67
    %v142 = vunpack.c.l.b16 %v68
    %v143 = vunpack.c.l.b16 %v69
    %v144 = vunpack.c.l.b16 %v70
    %v145 = vunpack.c.l.b16 %v71
    %v146 = vunpack.c.l.b16 %v72
    %v147 = vunpack.c.l.b16 %v73
    %v148 = vunpack.c.l.b16 %v74
    %v149 = vpack.c.b16 %v118, %v117
    %v150 = vpack.c.b16 %v120, %v119
    %v151 = vpack.c.b16 %v122, %v121
    %v152 = vpack.c.b16 %v124, %v123
    %v153 = vpack.c.b16 %v126, %v125
    %v154 = vpack.c.b16 %v128, %v127
    %v155 = vpack.c.b16 %v130, %v129
    %v156 = vpack.c.b16 %v132, %v131
    %v157 = vpack.c.b16 %v134, %v133
    %v158 = vpack.c.b16 %v136, %v135
    %v159 = vpack.c.b16 %v138, %v137
    %v160 = vpack.c.b16 %v140, %v139
    %v161 = vpack.c.b16 %v142, %v141
    %v162 = vpack.c.b16 %v144, %v143
    %v163 = vpack.c.b16 %v146, %v145
    %v164 = vpack.c.b16 %v148, %v147
    %181 = vmatpush.bf16.msra.mxu0 %v156
    %182 = vmatpush.bf16.msra.mxu0 %v155
    %183 = vmatpush.bf16.msra.mxu0 %v154
    %184 = vmatpush.bf16.msra.mxu0 %v153
    %185 = vmatpush.bf16.msra.mxu0 %v152
    %186 = vmatpush.bf16.msra.mxu0 %v151
    %187 = vmatpush.bf16.msra.mxu0 %v150
    %188 = vmatpush.bf16.msra.mxu0 %v149
    %189 = vmatmul.bf16.gmra.mxu0 %v81
    %v190 = vpop.f32.mrf.mxu0
    %v191 = vadd.f32 0.0, %v190
    %v192 = vpop.f32.mrf.mxu0
    %v193 = vadd.f32 0.0, %v192
    %194 = vdwg.mxu0
    %195 = vmatpush.bf16.msra.mxu0 %v164
    %196 = vmatpush.bf16.msra.mxu0 %v163
    %197 = vmatpush.bf16.msra.mxu0 %v162
    %198 = vmatpush.bf16.msra.mxu0 %v161
    %199 = vmatpush.bf16.msra.mxu0 %v160
    %200 = vmatpush.bf16.msra.mxu0 %v159
    %201 = vmatpush.bf16.msra.mxu0 %v158
    %202 = vmatpush.bf16.msra.mxu0 %v157
    %203 = vmatmul.bf16.gmra.mxu0 %v82
    %v204 = vpop.f32.mrf.mxu0
    %v205 = vadd.f32 %v191, %v204
    %v206 = vpop.f32.mrf.mxu0
    %v207 = vadd.f32 %v193, %v206
    %208 = vdwg.mxu0
    %v209 = vadd.f32 %v41, %v205
    %v210 = vadd.f32 %v42, %v207
    %211 = vst [vmem:[#allocation2] sm:$0xff] %v209
    %212 = vst [vmem:[#allocation2 + $0x8] sm:$0xff] %v210
    // Predicated region
    $region26: #{melody_generator_forward.21} parent=1 // pred_check
      %p213 = pneg %p33
    $region27: #{melody_generator_forward.21} parent=1 // pred_check_branch
      %215 = sbr.rel (%p213) target = $region29
    $region28: #{melody_generator_forward.21} parent=1 // pred_region
      %v216 = vld [vmem:[#allocation2] sm:$0xff]
      %v217 = vld [vmem:[#allocation2 + $0x8] sm:$0xff]
      %v218 = vld [vmem:[%s2] sm:$0x1]
      %v220 = vperm.slane %v218, 0
      %v222 = vadd.f32 %v216, %v220
      %v223 = vadd.f32 %v217, %v220
      %v224 = vld [vmem:[%s3] sm:$0xff]
      %v225 = vld [vmem:[%s3 + $0x8] sm:$0xff]
      %v226 = vadd.f32 %v222, %v224
      %v227 = vadd.f32 %v223, %v225
      %228 = vst [vmem:[%s4] sm:$0xff] %v226
      %229 = vst [vmem:[%s4 + $0x8] sm:$0xff] %v227
    $region29: #{melody_generator_forward.21} parent=1 // pred_fallthru
      _
    // Predicated region
    $region30: #{melody_generator_forward.21} parent=1 // pred_check
      _
    $region31: #{melody_generator_forward.21} parent=1 // pred_check_branch
      %231 = sbr.rel (0) target = $region33
    $region32: #{melody_generator_forward.21} parent=1 // pred_region
      _
    $region33: #{melody_generator_forward.21} parent=1 // pred_fallthru
      _
    // Predicated region
    $region34: #{melody_generator_forward.21} parent=1 // pred_check
      _
    $region35: #{melody_generator_forward.21} parent=1 // pred_check_branch
      %233 = sbr.rel (0) target = $region37
    $region36: #{melody_generator_forward.21} parent=1 // pred_region
      _
    $region37: #{melody_generator_forward.21} parent=1 // pred_fallthru
      _
    %234 = vsyncpa [#allocation4], 1

// kernel: melody_generator_forward.19
$region0: #{melody_generator_forward.19}
  #allocation0 [shape = 'u32[]', space=smem, size = 0x4, offset = 0x4, fixed_abs, tag = 'smem constant byte address 0x4 - core index']
  #allocation1 [shape = 'u32[72,128]{1,0:T(1,128)}', space=vmem, size = 0x9000, scoped, tag = 'internal scratch']
  #allocation2 [shape = 'bf16[8,128]{1,0:T(8,128)(2,1)}', space=vmem, size = 0x800, scoped, tag = 'scratch operand']
  %s0 = inlined_call_operand.vmem [shape: bf16[2,8,128], index: 0, kind: input, shape index: {}]
  %s1 = inlined_call_operand.vmem [shape: bf16[2,8,256], index: 1, kind: input, shape index: {}, may-alias: {1,2}]
  %s2 = inlined_call_operand.vmem [shape: bf16[2,8,256], index: 2, kind: input, shape index: {}, may-alias: {1,2}]
  %s3 = inlined_call_operand.hbm [shape: bf16[128,128], index: 3, kind: input, shape index: {}]
  %s4 = inlined_call_operand.vmem [shape: f32[2,8,128], index: 4, kind: input, shape index: {}]
  %s5 = inlined_call_operand.vmem [shape: f32[2,8,128], index: 5, kind: output, shape index: {}]
  %s6 = sld [smem:[#allocation0]]
  $region57: #{melody_generator_forward.19} parent=0
    _
  %s8 = ssub.s32 1, %s6
  %s9 = scalar_select 0, %s8, %s6
  $region1: #{melody_generator_forward.19} parent=0
    #allocation3 [shape = 'u8[32768]{0}', space=vmem, size = 0x8000, scoped, tag = 'input window, operand 3, single buffered']
    #allocation4 [shape = 's32[2]{0}', space=sflag, size = 0x8, scoped, tag = 'scoped memory for melody_generator_forward.19']
    %10 = vsyncpa [#allocation4], 0
    loop: start=0, step=1, limit=4
    $region2: #{melody_generator_forward.19} parent=1 // loop_pre_header
      _
    $region3: #{melody_generator_forward.19} parent=1 // loop_header
      %s12 = sphi 0, %s16
      %p13 = scmp.ge.s32.totalorder %s12, 4
      %s19 = sphi 0, %s31
      %s20 = sphi 0, %s27
      %s21 = sphi 0, %s19
      %s22 = sphi 0, %s20
      %s23 = sphi 0, %s21
      %s24 = sphi 0, %s22
      %s36 = sphi 0, %s38
      %s39 = sphi 0, %s36
      %s40 = sphi 0, %s39
      %s56 = sphi 0, %s40
      %s62 = sphi 0, %s64
      %s65 = sphi 0, %s62
      %s66 = sphi 0, %s65
      %s82 = sphi 0, %s66
      %s88 = sphi 0, %s90
      %s91 = sphi 0, %s88
      %s92 = sphi 0, %s91
      %s108 = sphi 0, %s92
      %s112 = sphi 0, %s112
      %s114 = sphi 0, %s112
      %s115 = sphi 0, %s114
      %s129 = sphi 0, %s115
      %s137 = sphi 0, %s139
      %s140 = sphi 0, %s137
      %s141 = sphi 0, %s140
      %s157 = sphi 0, %s141
      %s165 = sphi 0, %s167
      %s168 = sphi 0, %s165
      %s169 = sphi 0, %s168
      %s185 = sphi 0, %s169
    $region4: #{melody_generator_forward.19} parent=1 // loop_header_branch
      %15 = sbr.rel (%p13) target = $region8
    $region5: #{melody_generator_forward.19} parent=1 // loop_body
      %s17 = ssub.s32 %s12, 1
      %s18 = ssub.s32 %s12, 2
      %s25 = sadd.s32 1, %s20
      %p26 = scmp.ge.s32.totalorder %s25, 1
      %s27 = scalar_select %p26, 0, %s25
      %s28 = sadd.s32 1, %s19
      %s29 = scalar_select %p26, %s28, %s19
      %p30 = scmp.ge.s32.totalorder %s29, 2
      %s31 = scalar_select %p30, 0, %s29
      %s32 = ssub.s32 %s19, %s31
      %s33 = ssub.s32 %s20, %s27
      %s34 = sor.u32 %s32, %s33
      %p35 = scmp.eq.s32.totalorder %s34, 0
      %s37 = sadd.s32 %s36, 1
      %s38 = scalar_select %p35, %s36, %s37
      %p41 = pneg %p35
      %p42 = scmp.eq.s32.totalorder %s12, 1
      %p43 = por %p41, %p42
      %p44 = scmp.ne.s32.totalorder %s36, %s39
      %p45 = scmp.eq.s32.totalorder %s12, 0
      %p46 = por %p44, %p45
      %p47 = scmp.ne.s32.totalorder %s36, %s39
      %p48 = scmp.eq.s32.totalorder %s17, 1
      %p49 = por %p47, %p48
      %p50 = scmp.ne.s32.totalorder %s39, %s40
      %p51 = scmp.eq.s32.totalorder %s17, 0
      %p52 = por %p50, %p51
      %p53 = scmp.ne.s32.totalorder %s39, %s40
      %p54 = scmp.eq.s32.totalorder %s18, 1
      %p55 = por %p53, %p54
      %p57 = scmp.ne.s32.totalorder %s40, %s56
      %p58 = scmp.eq.s32.totalorder %s18, 0
      %p59 = por %p57, %p58
      %s60 = ssub.s32 %s19, %s31
      %p61 = scmp.eq.s32.totalorder %s60, 0
      %s63 = sadd.s32 %s62, 1
      %s64 = scalar_select %p61, %s62, %s63
      %p67 = pneg %p61
      %p68 = scmp.eq.s32.totalorder %s12, 1
      %p69 = por %p67, %p68
      %p70 = scmp.ne.s32.totalorder %s62, %s65
      %p71 = scmp.eq.s32.totalorder %s12, 0
      %p72 = por %p70, %p71
      %p73 = scmp.ne.s32.totalorder %s62, %s65
      %p74 = scmp.eq.s32.totalorder %s17, 1
      %p75 = por %p73, %p74
      %p76 = scmp.ne.s32.totalorder %s65, %s66
      %p77 = scmp.eq.s32.totalorder %s17, 0
      %p78 = por %p76, %p77
      %p79 = scmp.ne.s32.totalorder %s65, %s66
      %p80 = scmp.eq.s32.totalorder %s18, 1
      %p81 = por %p79, %p80
      %p83 = scmp.ne.s32.totalorder %s66, %s82
      %p84 = scmp.eq.s32.totalorder %s18, 0
      %p85 = por %p83, %p84
      %s86 = ssub.s32 %s19, %s31
      %p87 = scmp.eq.s32.totalorder %s86, 0
      %s89 = sadd.s32 %s88, 1
      %s90 = scalar_select %p87, %s88, %s89
      %p93 = pneg %p87
      %p94 = scmp.eq.s32.totalorder %s12, 1
      %p95 = por %p93, %p94
      %p96 = scmp.ne.s32.totalorder %s88, %s91
      %p97 = scmp.eq.s32.totalorder %s12, 0
      %p98 = por %p96, %p97
      %p99 = scmp.ne.s32.totalorder %s88, %s91
      %p100 = scmp.eq.s32.totalorder %s17, 1
      %p101 = por %p99, %p100
      %p102 = scmp.ne.s32.totalorder %s91, %s92
      %p103 = scmp.eq.s32.totalorder %s17, 0
      %p104 = por %p102, %p103
      %p105 = scmp.ne.s32.totalorder %s91, %s92
      %p106 = scmp.eq.s32.totalorder %s18, 1
      %p107 = por %p105, %p106
      %p109 = scmp.ne.s32.totalorder %s92, %s108
      %p110 = scmp.eq.s32.totalorder %s18, 0
      %p111 = por %p109, %p110
      %s113 = sadd.s32 %s112, 1
      %p116 = scmp.eq.s32.totalorder %s12, 1
      %p117 = scmp.ne.s32.totalorder %s112, %s114
      %p118 = scmp.eq.s32.totalorder %s12, 0
      %p119 = por %p117, %p118
      %p120 = scmp.ne.s32.totalorder %s112, %s114
      %p121 = scmp.eq.s32.totalorder %s17, 1
      %p122 = por %p120, %p121
      %p123 = scmp.ne.s32.totalorder %s114, %s115
      %p124 = scmp.eq.s32.totalorder %s17, 0
      %p125 = por %p123, %p124
      %p126 = scmp.ne.s32.totalorder %s114, %s115
      %p127 = scmp.eq.s32.totalorder %s18, 1
      %p128 = por %p126, %p127
      %p130 = scmp.ne.s32.totalorder %s115, %s129
      %p131 = scmp.eq.s32.totalorder %s18, 0
      %p132 = por %p130, %p131
      %s133 = ssub.s32 %s19, %s31
      %s134 = ssub.s32 %s20, %s27
      %s135 = sor.u32 %s133, %s134
      %p136 = scmp.eq.s32.totalorder %s135, 0
      %s138 = sadd.s32 %s137, 1
      %s139 = scalar_select %p136, %s137, %s138
      %p142 = pneg %p136
      %p143 = scmp.eq.s32.totalorder %s12, 1
      %p144 = por %p142, %p143
      %p145 = scmp.ne.s32.totalorder %s137, %s140
      %p146 = scmp.eq.s32.totalorder %s12, 0
      %p147 = por %p145, %p146
      %p148 = scmp.ne.s32.totalorder %s137, %s140
      %p149 = scmp.eq.s32.totalorder %s17, 1
      %p150 = por %p148, %p149
      %p151 = scmp.ne.s32.totalorder %s140, %s141
      %p152 = scmp.eq.s32.totalorder %s17, 0
      %p153 = por %p151, %p152
      %p154 = scmp.ne.s32.totalorder %s140, %s141
      %p155 = scmp.eq.s32.totalorder %s18, 1
      %p156 = por %p154, %p155
      %p158 = scmp.ne.s32.totalorder %s141, %s157
      %p159 = scmp.eq.s32.totalorder %s18, 0
      %p160 = por %p158, %p159
      %s161 = ssub.s32 %s19, %s31
      %s162 = ssub.s32 %s20, %s27
      %s163 = sor.u32 %s161, %s162
      %p164 = scmp.eq.s32.totalorder %s163, 0
      %s166 = sadd.s32 %s165, 1
      %s167 = scalar_select %p164, %s165, %s166
      %p170 = pneg %p164
      %p171 = scmp.eq.s32.totalorder %s12, 1
      %p172 = por %p170, %p171
      %p173 = scmp.ne.s32.totalorder %s165, %s168
      %p174 = scmp.eq.s32.totalorder %s12, 0
      %p175 = por %p173, %p174
      %p176 = scmp.ne.s32.totalorder %s165, %s168
      %p177 = scmp.eq.s32.totalorder %s17, 1
      %p178 = por %p176, %p177
      %p179 = scmp.ne.s32.totalorder %s168, %s169
      %p180 = scmp.eq.s32.totalorder %s17, 0
      %p181 = por %p179, %p180
      %p182 = scmp.ne.s32.totalorder %s168, %s169
      %p183 = scmp.eq.s32.totalorder %s18, 1
      %p184 = por %p182, %p183
      %p186 = scmp.ne.s32.totalorder %s169, %s185
      %p187 = scmp.eq.s32.totalorder %s18, 0
      %p188 = por %p186, %p187
      %p189 = scmp.le.s32.totalorder 1, %s12
      %p190 = scmp.lt.s32.totalorder %s12, 3
      %p191 = pnand %p189, %p190
      %p192 = pneg %p191
      // Predicated region
      $region9: #{melody_generator_forward.19} parent=5 // pred_check
        _
      $region10: #{melody_generator_forward.19} parent=5 // pred_check_branch
        %194 = sbr.rel (%p191) target = $region12
      $region11: #{melody_generator_forward.19} parent=5 // pred_region
        %s195 = ssub.s32 %s12, 1
        // Predicated region
        $region13: #{melody_generator_forward.19} parent=11 // pred_check
          %p196 = pneg %p125
        $region14: #{melody_generator_forward.19} parent=11 // pred_check_branch
          %198 = sbr.rel (%p196) target = $region16
        $region15: #{melody_generator_forward.19} parent=11 // pred_region
          %200 = vsyncadd [#allocation4], 0
          %s201 = sshll.u32 %s3, 4
          %s202 = int_to_ptr.hbm [resolvable:$true] %s201
          %s203 = sshll.u32 [#allocation3], 4
          %s204 = int_to_ptr.vmem [resolvable:$true] %s203
          %209 = dma.hbm_to_vmem [thread:$0]  %s202, 1024, %s204, [#allocation4], 64, 64, 4
        $region16: #{melody_generator_forward.19} parent=11 // pred_fallthru
          _
      $region12: #{melody_generator_forward.19} parent=5 // pred_fallthru
        _
      %p210 = scmp.lt.s32.totalorder %s12, 2
      // Predicated region
      $region17: #{melody_generator_forward.19} parent=5 // pred_check
        %p211 = pneg %p210
      $region18: #{melody_generator_forward.19} parent=5 // pred_check_branch
        %213 = sbr.rel (%p211) target = $region20
      $region19: #{melody_generator_forward.19} parent=5 // pred_region
        // Predicated region
        $region21: #{melody_generator_forward.19} parent=19 // pred_check
          %p214 = pneg %p46
        $region22: #{melody_generator_forward.19} parent=19 // pred_check_branch
          %216 = sbr.rel (%p214) target = $region24
        $region23: #{melody_generator_forward.19} parent=19 // pred_region
          %p217 = scmp.lt.s32.totalorder %s19, 1
          %s218 = scalar_select %p217, %s19, 1
          %p219 = scmp.lt.s32.totalorder %s20, 0
          %s220 = scalar_select %p219, %s20, 0
          %s221 = sadd.s32 %s220, %s218
          %s222 = smul.addr %s221, 4
          %s223 = scalar_lea.vmem %s0, %s222
        $region24: #{melody_generator_forward.19} parent=19 // pred_fallthru
          _
        // Predicated region
        $region25: #{melody_generator_forward.19} parent=19 // pred_check
          %p224 = pneg %p72
        $region26: #{melody_generator_forward.19} parent=19 // pred_check_branch
          %226 = sbr.rel (%p224) target = $region28
        $region27: #{melody_generator_forward.19} parent=19 // pred_region
          %p227 = scmp.lt.s32.totalorder %s19, 1
          %s228 = scalar_select %p227, %s19, 1
          %s229 = smul.addr %s228, 2
          %s230 = smul.addr %s229, 4
          %s231 = scalar_lea.vmem %s1, %s230
        $region28: #{melody_generator_forward.19} parent=19 // pred_fallthru
          _
        // Predicated region
        $region29: #{melody_generator_forward.19} parent=19 // pred_check
          %p232 = pneg %p98
        $region30: #{melody_generator_forward.19} parent=19 // pred_check_branch
          %234 = sbr.rel (%p232) target = $region32
        $region31: #{melody_generator_forward.19} parent=19 // pred_region
          %p235 = scmp.lt.s32.totalorder %s19, 1
          %s236 = scalar_select %p235, %s19, 1
          %s237 = smul.addr %s236, 2
          %s238 = sadd.s32 1, %s237
          %s239 = smul.addr %s238, 4
          %s240 = scalar_lea.vmem %s2, %s239
        $region32: #{melody_generator_forward.19} parent=19 // pred_fallthru
          _
        // Predicated region
        $region33: #{melody_generator_forward.19} parent=19 // pred_check
          %p241 = pneg %p147
        $region34: #{melody_generator_forward.19} parent=19 // pred_check_branch
          %243 = sbr.rel (%p241) target = $region36
        $region35: #{melody_generator_forward.19} parent=19 // pred_region
          %p244 = scmp.lt.s32.totalorder %s19, 1
          %s245 = scalar_select %p244, %s19, 1
          %p246 = scmp.lt.s32.totalorder %s20, 0
          %s247 = scalar_select %p246, %s20, 0
          %s248 = sadd.s32 %s247, %s245
          %s249 = smul.addr %s248, 8
          %s250 = scalar_lea.vmem %s4, %s249
        $region36: #{melody_generator_forward.19} parent=19 // pred_fallthru
          _
      $region20: #{melody_generator_forward.19} parent=5 // pred_fallthru
        _
      %p251 = scmp.le.s32.totalorder 1, %s12
      %p252 = scmp.lt.s32.totalorder %s12, 3
      %p253 = pnand %p251, %p252
      %p254 = pneg %p253
      // Predicated region
      $region37: #{melody_generator_forward.19} parent=5 // pred_check
        _
      $region38: #{melody_generator_forward.19} parent=5 // pred_check_branch
        %256 = sbr.rel (%p253) target = $region40
      $region39: #{melody_generator_forward.19} parent=5 // pred_region
        %s257 = ssub.s32 %s12, 1
        // Predicated region
        $region41: #{melody_generator_forward.19} parent=39 // pred_check
          %p258 = pneg %p125
        $region42: #{melody_generator_forward.19} parent=39 // pred_check_branch
          %260 = sbr.rel (%p258) target = $region44
        $region43: #{melody_generator_forward.19} parent=39 // pred_region
          %262 = dma.done [#allocation4], 1024
        $region44: #{melody_generator_forward.19} parent=39 // pred_fallthru
          _
        %p263 = scmp.lt.s32.totalorder %s21, 1
        %s264 = scalar_select %p263, %s21, 1
        %p265 = scmp.lt.s32.totalorder %s22, 0
        %s266 = scalar_select %p265, %s22, 0
        %s267 = sadd.s32 %s266, %s264
        %s268 = smul.addr %s267, 4
        %s269 = scalar_lea.vmem %s0, %s268
        %p270 = pneg %p52
        %p271 = pneg %p49
        %p272 = scmp.lt.s32.totalorder %s21, 1
        %s273 = scalar_select %p272, %s21, 1
        %s274 = smul.addr %s273, 2
        %s275 = smul.addr %s274, 4
        %s276 = scalar_lea.vmem %s1, %s275
        %p277 = pneg %p78
        %p278 = pneg %p75
        %p279 = scmp.lt.s32.totalorder %s21, 1
        %s280 = scalar_select %p279, %s21, 1
        %s281 = smul.addr %s280, 2
        %s282 = sadd.s32 1, %s281
        %s283 = smul.addr %s282, 4
        %s284 = scalar_lea.vmem %s2, %s283
        %p285 = pneg %p104
        %p286 = pneg %p101
        %p287 = pneg %p125
        %p288 = pneg %p122
        %p289 = scmp.lt.s32.totalorder %s21, 1
        %s290 = scalar_select %p289, %s21, 1
        %p291 = scmp.lt.s32.totalorder %s22, 0
        %s292 = scalar_select %p291, %s22, 0
        %s293 = sadd.s32 %s292, %s290
        %s294 = smul.addr %s293, 8
        %s295 = scalar_lea.vmem %s4, %s294
        %p296 = pneg %p153
        %p297 = pneg %p150
        %p298 = pneg %p181
        %p299 = pneg %p178
        %p300 = scmp.lt.s32.totalorder %s21, 1
        %s301 = scalar_select %p300, %s21, 1
        %p302 = scmp.lt.s32.totalorder %s22, 0
        %s303 = scalar_select %p302, %s22, 0
        %s304 = sadd.s32 %s303, %s301
        %s305 = smul.addr %s304, 8
        %s306 = scalar_lea.vmem %s5, %s305
        %p307 = scmp.lt.s32.totalorder %s21, 1
        %s308 = scalar_select %p307, %s21, 1
        %p309 = scmp.lt.s32.totalorder %s22, 0
        %s310 = scalar_select %p309, %s22, 0
        %s311 = sadd.s32 %s310, %s308
        %s312 = smul.addr %s311, 4
        %s313 = scalar_lea.vmem %s0, %s312
        %p314 = scmp.lt.s32.totalorder %s21, 1
        %s315 = scalar_select %p314, %s21, 1
        %s316 = smul.addr %s315, 2
        %s317 = smul.addr %s316, 4
        %s318 = scalar_lea.vmem %s1, %s317
        %p319 = scmp.lt.s32.totalorder %s21, 1
        %s320 = scalar_select %p319, %s21, 1
        %s321 = smul.addr %s320, 2
        %s322 = sadd.s32 1, %s321
        %s323 = smul.addr %s322, 4
        %s324 = scalar_lea.vmem %s2, %s323
        %p325 = scmp.lt.s32.totalorder %s21, 1
        %s326 = scalar_select %p325, %s21, 1
        %p327 = scmp.lt.s32.totalorder %s22, 0
        %s328 = scalar_select %p327, %s22, 0
        %s329 = sadd.s32 %s328, %s326
        %s330 = smul.addr %s329, 8
        %s331 = scalar_lea.vmem %s4, %s330
        %p332 = scmp.lt.s32.totalorder %s21, 1
        %s333 = scalar_select %p332, %s21, 1
        %p334 = scmp.lt.s32.totalorder %s22, 0
        %s335 = scalar_select %p334, %s22, 0
        %s336 = sadd.s32 %s335, %s333
        %s337 = smul.addr %s336, 8
        %s338 = scalar_lea.vmem %s5, %s337
        %v340 = vld [vmem:[%s313] sm:$0xf]
        %v341 = vld [vmem:[%s318] sm:$0xf]
        %v342 = vld [vmem:[%s324] sm:$0xf]
        %vm343 = vcmask 261120
        %v345 = vsel %vm343, %v340, 0
        %v348 = vsel %vm343, %v341, 0
        %350 = vmatpush.bf16.xpose.msra.mxu0 0
        %351 = vmatpush.bf16.xpose.msra.mxu0 0
        %352 = vmatpush.bf16.xpose.msra.mxu0 0
        %353 = vmatpush.bf16.xpose.msra.mxu0 0
        %354 = vmatpush.bf16.xpose.msra.mxu0 0
        %355 = vmatpush.bf16.xpose.msra.mxu0 0
        %356 = vmatpush.bf16.xpose.msra.mxu0 0
        %357 = vmatpush.bf16.xpose.msra.mxu0 %v348
        %358 = vmatmul.bf16.gmra.mxu0 %v345
        %v359 = vpop.f32.mrf.mxu0
        %v360 = vadd.f32 0.0, %v359
        %v361 = vpop.f32.mrf.mxu0
        %362 = vdwg.mxu0
        %v363 = vmul.f32 %v360, 0.17677669
        %vm364 = vcmask 64512
        %v365 = vsel %vm364, %v363, -inf
        %366 = vmax.xlane.f32.xlu0 %v365
        %v367 = vpop.xlane.xlu0 %366
        %v368 = vsub.f32 %v363, %v367
        %v369 = vmul.f32 %v368, 1.442695
        %v370 = vpow.pop %v369
        %v371 = vsel %vm364, %v370, 0.0
        %372 = vadd.xlane.f32.xlu0 %v371
        %v373 = vpop.xlane.xlu0 %372
        %v374 = vrcp.pop %v373
        %v375 = vmul.f32 %v370, %v374
        %v376 = vpack.c.bf16 %v375, %v375
        %v378 = vsel %vm364, %v376, 0
        %vm380 = vcmask 1043456
        %v382 = vsel %vm380, %v342, 0
        %384 = vmatpush.bf16.msra.mxu0 0
        %385 = vmatpush.bf16.msra.mxu0 0
        %386 = vmatpush.bf16.msra.mxu0 0
        %387 = vmatpush.bf16.msra.mxu0 0
        %388 = vmatpush.bf16.msra.mxu0 0
        %389 = vmatpush.bf16.msra.mxu0 0
        %390 = vmatpush.bf16.msra.mxu0 0
        %391 = vmatpush.bf16.msra.mxu0 %v382
        %392 = vmatmul.bf16.gmra.mxu0 %v378
        %v393 = vpop.f32.mrf.mxu0
        %v394 = vadd.f32 0.0, %v393
        %v395 = vpop.f32.mrf.mxu0
        %396 = vdwg.mxu0
        %v397 = vpack.c.bf16 %v394, %v394
        %vm398 = vcmask 257024
        %399 = vst.msk [vmem:[#allocation2] sm:$0xf] %vm398, %v397
        %v400 = vld [vmem:[%s313] sm:$0xf]
        %v401 = vld [vmem:[%s318] sm:$0xf]
        %v402 = vld [vmem:[%s324] sm:$0xf]
        %v404 = vunpack.c.l.b16 %v400
        %v405 = vpack.c.b16 %v404, %v404
        %406 = vrot.lane.b32.xlu0 %v405, 96
        %v407 = vpop.permute.xlu0 %406
        %v409 = vunpack.c.l.b16 %v401
        %v410 = vpack.c.b16 %v409, %v409
        %411 = vrot.lane.b32.xlu0 %v410, 96
        %v412 = vpop.permute.xlu0 %411
        %v414 = vsel %vm343, %v407, 0
        %v417 = vsel %vm343, %v412, 0
        %419 = vmatpush.bf16.xpose.msra.mxu0 0
        %420 = vmatpush.bf16.xpose.msra.mxu0 0
        %421 = vmatpush.bf16.xpose.msra.mxu0 0
        %422 = vmatpush.bf16.xpose.msra.mxu0 0
        %423 = vmatpush.bf16.xpose.msra.mxu0 0
        %424 = vmatpush.bf16.xpose.msra.mxu0 0
        %425 = vmatpush.bf16.xpose.msra.mxu0 0
        %426 = vmatpush.bf16.xpose.msra.mxu0 %v417
        %427 = vmatmul.bf16.gmra.mxu0 %v414
        %v428 = vpop.f32.mrf.mxu0
        %v429 = vadd.f32 0.0, %v428
        %v430 = vpop.f32.mrf.mxu0
        %431 = vdwg.mxu0
        %v432 = vmul.f32 %v429, 0.17677669
        %v433 = vsel %vm364, %v432, -inf
        %434 = vmax.xlane.f32.xlu0 %v433
        %v435 = vpop.xlane.xlu0 %434
        %v436 = vsub.f32 %v432, %v435
        %v437 = vmul.f32 %v436, 1.442695
        %v438 = vpow.pop %v437
        %v439 = vsel %vm364, %v438, 0.0
        %440 = vadd.xlane.f32.xlu0 %v439
        %v441 = vpop.xlane.xlu0 %440
        %v442 = vrcp.pop %v441
        %v443 = vmul.f32 %v438, %v442
        %v444 = vpack.c.bf16 %v443, %v443
        %v446 = vunpack.c.l.b16 %v402
        %v447 = vpack.c.b16 %v446, %v446
        %448 = vrot.lane.b32.xlu0 %v447, 96
        %v449 = vpop.permute.xlu0 %448
        %v451 = vsel %vm364, %v444, 0
        %v454 = vsel %vm380, %v449, 0
        %456 = vmatpush.bf16.msra.mxu0 0
        %457 = vmatpush.bf16.msra.mxu0 0
        %458 = vmatpush.bf16.msra.mxu0 0
        %459 = vmatpush.bf16.msra.mxu0 0
        %460 = vmatpush.bf16.msra.mxu0 0
        %461 = vmatpush.bf16.msra.mxu0 0
        %462 = vmatpush.bf16.msra.mxu0 0
        %463 = vmatpush.bf16.msra.mxu0 %v454
        %464 = vmatmul.bf16.gmra.mxu0 %v451
        %v465 = vpop.f32.mrf.mxu0
        %v466 = vadd.f32 0.0, %v465
        %v467 = vpop.f32.mrf.mxu0
        %468 = vdwg.mxu0
        %v469 = vpack.c.bf16 %v466, %v466
        %471 = vrot.lane.b32.xlu0 %v469, 32
        %v472 = vpop.permute.xlu0 %471
        %vm474 = vcmask 519424
        %475 = vst.msk [vmem:[#allocation2] sm:$0xf] %vm474, %v472
        %v476 = vld [vmem:[%s313] sm:$0xf]
        %v477 = vld [vmem:[%s318] sm:$0xf]
        %v478 = vld [vmem:[%s324] sm:$0xf]
        %v480 = vunpack.c.l.b16 %v476
        %v481 = vpack.c.b16 %v480, %v480
        %482 = vrot.lane.b32.xlu0 %v481, 64
        %v483 = vpop.permute.xlu0 %482
        %v485 = vunpack.c.l.b16 %v477
        %v486 = vpack.c.b16 %v485, %v485
        %487 = vrot.lane.b32.xlu0 %v486, 64
        %v488 = vpop.permute.xlu0 %487
        %v490 = vsel %vm343, %v483, 0
        %v493 = vsel %vm343, %v488, 0
        %495 = vmatpush.bf16.xpose.msra.mxu0 0
        %496 = vmatpush.bf16.xpose.msra.mxu0 0
        %497 = vmatpush.bf16.xpose.msra.mxu0 0
        %498 = vmatpush.bf16.xpose.msra.mxu0 0
        %499 = vmatpush.bf16.xpose.msra.mxu0 0
        %500 = vmatpush.bf16.xpose.msra.mxu0 0
        %501 = vmatpush.bf16.xpose.msra.mxu0 0
        %502 = vmatpush.bf16.xpose.msra.mxu0 %v493
        %503 = vmatmul.bf16.gmra.mxu0 %v490
        %v504 = vpop.f32.mrf.mxu0
        %v505 = vadd.f32 0.0, %v504
        %v506 = vpop.f32.mrf.mxu0
        %507 = vdwg.mxu0
        %v508 = vmul.f32 %v505, 0.17677669
        %v509 = vsel %vm364, %v508, -inf
        %510 = vmax.xlane.f32.xlu0 %v509
        %v511 = vpop.xlane.xlu0 %510
        %v512 = vsub.f32 %v508, %v511
        %v513 = vmul.f32 %v512, 1.442695
        %v514 = vpow.pop %v513
        %v515 = vsel %vm364, %v514, 0.0
        %516 = vadd.xlane.f32.xlu0 %v515
        %v517 = vpop.xlane.xlu0 %516
        %v518 = vrcp.pop %v517
        %v519 = vmul.f32 %v514, %v518
        %v520 = vpack.c.bf16 %v519, %v519
        %v522 = vunpack.c.l.b16 %v478
        %v523 = vpack.c.b16 %v522, %v522
        %524 = vrot.lane.b32.xlu0 %v523, 64
        %v525 = vpop.permute.xlu0 %524
        %v527 = vsel %vm364, %v520, 0
        %v530 = vsel %vm380, %v525, 0
        %532 = vmatpush.bf16.msra.mxu0 0
        %533 = vmatpush.bf16.msra.mxu0 0
        %534 = vmatpush.bf16.msra.mxu0 0
        %535 = vmatpush.bf16.msra.mxu0 0
        %536 = vmatpush.bf16.msra.mxu0 0
        %537 = vmatpush.bf16.msra.mxu0 0
        %538 = vmatpush.bf16.msra.mxu0 0
        %539 = vmatpush.bf16.msra.mxu0 %v530
        %540 = vmatmul.bf16.gmra.mxu0 %v527
        %v541 = vpop.f32.mrf.mxu0
        %v542 = vadd.f32 0.0, %v541
        %v543 = vpop.f32.mrf.mxu0
        %544 = vdwg.mxu0
        %v545 = vpack.c.bf16 %v542, %v542
        %547 = vrot.lane.b32.xlu0 %v545, 64
        %v548 = vpop.permute.xlu0 %547
        %vm550 = vcmask 781824
        %551 = vst.msk [vmem:[#allocation2] sm:$0xf] %vm550, %v548
        %v552 = vld [vmem:[%s313] sm:$0xf]
        %v553 = vld [vmem:[%s318] sm:$0xf]
        %v554 = vld [vmem:[%s324] sm:$0xf]
        %v556 = vunpack.c.l.b16 %v552
        %v557 = vpack.c.b16 %v556, %v556
        %558 = vrot.lane.b32.xlu0 %v557, 32
        %v559 = vpop.permute.xlu0 %558
        %v561 = vunpack.c.l.b16 %v553
        %v562 = vpack.c.b16 %v561, %v561
        %563 = vrot.lane.b32.xlu0 %v562, 32
        %v564 = vpop.permute.xlu0 %563
        %v566 = vsel %vm343, %v559, 0
        %v569 = vsel %vm343, %v564, 0
        %571 = vmatpush.bf16.xpose.msra.mxu0 0
        %572 = vmatpush.bf16.xpose.msra.mxu0 0
        %573 = vmatpush.bf16.xpose.msra.mxu0 0
        %574 = vmatpush.bf16.xpose.msra.mxu0 0
        %575 = vmatpush.bf16.xpose.msra.mxu0 0
        %576 = vmatpush.bf16.xpose.msra.mxu0 0
        %577 = vmatpush.bf16.xpose.msra.mxu0 0
        %578 = vmatpush.bf16.xpose.msra.mxu0 %v569
        %579 = vmatmul.bf16.gmra.mxu0 %v566
        %v580 = vpop.f32.mrf.mxu0
        %v581 = vadd.f32 0.0, %v580
        %v582 = vpop.f32.mrf.mxu0
        %583 = vdwg.mxu0
        %v584 = vmul.f32 %v581, 0.17677669
        %v585 = vsel %vm364, %v584, -inf
        %586 = vmax.xlane.f32.xlu0 %v585
        %v587 = vpop.xlane.xlu0 %586
        %v588 = vsub.f32 %v584, %v587
        %v589 = vmul.f32 %v588, 1.442695
        %v590 = vpow.pop %v589
        %v591 = vsel %vm364, %v590, 0.0
        %592 = vadd.xlane.f32.xlu0 %v591
        %v593 = vpop.xlane.xlu0 %592
        %v594 = vrcp.pop %v593
        %v595 = vmul.f32 %v590, %v594
        %v596 = vpack.c.bf16 %v595, %v595
        %v598 = vunpack.c.l.b16 %v554
        %v599 = vpack.c.b16 %v598, %v598
        %600 = vrot.lane.b32.xlu0 %v599, 32
        %v601 = vpop.permute.xlu0 %600
        %v603 = vsel %vm364, %v596, 0
        %v606 = vsel %vm380, %v601, 0
        %608 = vmatpush.bf16.msra.mxu0 0
        %609 = vmatpush.bf16.msra.mxu0 0
        %610 = vmatpush.bf16.msra.mxu0 0
        %611 = vmatpush.bf16.msra.mxu0 0
        %612 = vmatpush.bf16.msra.mxu0 0
        %613 = vmatpush.bf16.msra.mxu0 0
        %614 = vmatpush.bf16.msra.mxu0 0
        %615 = vmatpush.bf16.msra.mxu0 %v606
        %616 = vmatmul.bf16.gmra.mxu0 %v603
        %v617 = vpop.f32.mrf.mxu0
        %v618 = vadd.f32 0.0, %v617
        %v619 = vpop.f32.mrf.mxu0
        %620 = vdwg.mxu0
        %v621 = vpack.c.bf16 %v618, %v618
        %623 = vrot.lane.b32.xlu0 %v621, 96
        %v624 = vpop.permute.xlu0 %623
        %vm626 = vcmask 1044224
        %627 = vst.msk [vmem:[#allocation2] sm:$0xf] %vm626, %v624
        %v628 = vld [vmem:[%s331] sm:$0xff]
        %v629 = vld [vmem:[#allocation2] sm:$0xf]
        %v630 = vld [vmem:[#allocation3] sm:$0xf]
        %v631 = vld [vmem:[#allocation3 + $0x4] sm:$0xf]
        %v632 = vld [vmem:[#allocation3 + $0x8] sm:$0xf]
        %v633 = vld [vmem:[#allocation3 + $0xc] sm:$0xf]
        %v634 = vld [vmem:[#allocation3 + $0x10] sm:$0xf]
        %v635 = vld [vmem:[#allocation3 + $0x14] sm:$0xf]
        %v636 = vld [vmem:[#allocation3 + $0x18] sm:$0xf]
        %v637 = vld [vmem:[#allocation3 + $0x1c] sm:$0xf]
        %v638 = vld [vmem:[#allocation3 + $0x20] sm:$0xf]
        %v639 = vld [vmem:[#allocation3 + $0x24] sm:$0xf]
        %v640 = vld [vmem:[#allocation3 + $0x28] sm:$0xf]
        %v641 = vld [vmem:[#allocation3 + $0x2c] sm:$0xf]
        %v642 = vld [vmem:[#allocation3 + $0x30] sm:$0xf]
        %v643 = vld [vmem:[#allocation3 + $0x34] sm:$0xf]
        %v644 = vld [vmem:[#allocation3 + $0x38] sm:$0xf]
        %v645 = vld [vmem:[#allocation3 + $0x3c] sm:$0xf]
        %v662 = vunpack.c.l.b16 %v630
        %v663 = vunpack.c.l.b16 %v631
        %v664 = vunpack.c.l.b16 %v632
        %v665 = vunpack.c.l.b16 %v633
        %v666 = vunpack.c.l.b16 %v634
        %v667 = vunpack.c.l.b16 %v635
        %v668 = vunpack.c.l.b16 %v636
        %v669 = vunpack.c.l.b16 %v637
        %v670 = vunpack.c.l.b16 %v638
        %v671 = vunpack.c.l.b16 %v639
        %v672 = vunpack.c.l.b16 %v640
        %v673 = vunpack.c.l.b16 %v641
        %v674 = vunpack.c.l.b16 %v642
        %v675 = vunpack.c.l.b16 %v643
        %v676 = vunpack.c.l.b16 %v644
        %v677 = vunpack.c.l.b16 %v645
        %v678 = vpack.c.b16 %v663, %v662
        %v679 = vpack.c.b16 %v665, %v664
        %v680 = vpack.c.b16 %v667, %v666
        %v681 = vpack.c.b16 %v669, %v668
        %v682 = vpack.c.b16 %v671, %v670
        %v683 = vpack.c.b16 %v673, %v672
        %v684 = vpack.c.b16 %v675, %v674
        %v685 = vpack.c.b16 %v677, %v676
        %694 = vmatpush.bf16.msra.mxu0 %v685
        %695 = vmatpush.bf16.msra.mxu0 %v684
        %696 = vmatpush.bf16.msra.mxu0 %v683
        %697 = vmatpush.bf16.msra.mxu0 %v682
        %698 = vmatpush.bf16.msra.mxu0 %v681
        %699 = vmatpush.bf16.msra.mxu0 %v680
        %700 = vmatpush.bf16.msra.mxu0 %v679
        %701 = vmatpush.bf16.msra.mxu0 %v678
        %702 = vmatmul.bf16.gmra.mxu0 %v629
        %v703 = vpop.f32.mrf.mxu0
        %v704 = vadd.f32 0.0, %v703
        %v705 = vpop.f32.mrf.mxu0
        %706 = vdwg.mxu0
        %v707 = vadd.f32 %v628, %v704
        %708 = vst [vmem:[%s338] sm:$0xff] %v707
        %p709 = scmp.lt.s32.totalorder %s21, 1
        %s710 = scalar_select %p709, %s21, 1
        %p711 = scmp.lt.s32.totalorder %s22, 0
        %s712 = scalar_select %p711, %s22, 0
        %s713 = sadd.s32 %s712, %s710
        %s714 = smul.addr %s713, 8
        %s715 = scalar_lea.vmem %s5, %s714
        // Predicated region
        $region45: #{melody_generator_forward.19} parent=39 // pred_check
          %p716 = pneg %p178
        $region46: #{melody_generator_forward.19} parent=39 // pred_check_branch
          %718 = sbr.rel (%p716) target = $region48
        $region47: #{melody_generator_forward.19} parent=39 // pred_region
          _
        $region48: #{melody_generator_forward.19} parent=39 // pred_fallthru
          _
      $region40: #{melody_generator_forward.19} parent=5 // pred_fallthru
        _
      %p719 = scmp.le.s32.totalorder 2, %s12
      // Predicated region
      $region49: #{melody_generator_forward.19} parent=5 // pred_check
        %p720 = pneg %p719
      $region50: #{melody_generator_forward.19} parent=5 // pred_check_branch
        %722 = sbr.rel (%p720) target = $region52
      $region51: #{melody_generator_forward.19} parent=5 // pred_region
        %s723 = ssub.s32 %s12, 2
        // Predicated region
        $region53: #{melody_generator_forward.19} parent=51 // pred_check
          %p724 = pneg %p184
        $region54: #{melody_generator_forward.19} parent=51 // pred_check_branch
          %726 = sbr.rel (%p724) target = $region56
        $region55: #{melody_generator_forward.19} parent=51 // pred_region
          %p727 = scmp.lt.s32.totalorder %s23, 1
          %s728 = scalar_select %p727, %s23, 1
          %p729 = scmp.lt.s32.totalorder %s24, 0
          %s730 = scalar_select %p729, %s24, 0
          %s731 = sadd.s32 %s730, %s728
          %s732 = smul.addr %s731, 8
          %s733 = scalar_lea.vmem %s5, %s732
        $region56: #{melody_generator_forward.19} parent=51 // pred_fallthru
          _
      $region52: #{melody_generator_forward.19} parent=5 // pred_fallthru
        _
    $region6: #{melody_generator_forward.19} parent=1 // loop_footer
      %s16 = sadd.s32 1, %s12
    $region7: #{melody_generator_forward.19} parent=1 // loop_footer_branch
      %11 = sbr.rel target = $region3
    $region8: #{melody_generator_forward.19} parent=1 // loop_exit
      _
    %734 = vsyncpa [#allocation4], 1
    %s735 = scalar_lea.sflag [#allocation4], 1
    %736 = vsyncpa %s735, 1

// kernel: melody_generator_forward.20
$region0: #{melody_generator_forward.20}
  #allocation0 [shape = 'u32[]', space=smem, size = 0x4, offset = 0x4, fixed_abs, tag = 'smem constant byte address 0x4 - core index']
  #allocation1 [shape = 'u32[72,128]{1,0:T(1,128)}', space=vmem, size = 0x9000, scoped, tag = 'internal scratch']
  #allocation2 [shape = 'f32[16,256]{1,0:T(8,128)}', space=vmem, size = 0x4000, scoped, tag = 'scratch operand']
  #allocation3 [shape = 'bf16[16,128]{1,0:T(8,128)(2,1)}', space=vmem, size = 0x1000, scoped, tag = 'scratch operand']
  %s0 = inlined_call_operand.vmem [shape: f32[16,128], index: 0, kind: input, shape index: {}]
  %s1 = inlined_call_operand.vmem [shape: f32[1,128], index: 1, kind: input, shape index: {}]
  %s2 = inlined_call_operand.hbm [shape: bf16[128,256], index: 2, kind: input, shape index: {}]
  %s3 = inlined_call_operand.vmem [shape: f32[1,256], index: 3, kind: input, shape index: {}]
  %s4 = inlined_call_operand.vmem [shape: bf16[16,256], index: 4, kind: output, shape index: {}]
  %s5 = sld [smem:[#allocation0]]
  $region42: #{melody_generator_forward.20} parent=0
    _
  %s7 = ssub.s32 1, %s5
  %s8 = scalar_select 0, %s7, %s5
  $region1: #{melody_generator_forward.20} parent=0
    #allocation4 [shape = 'u8[65536]{0}', space=vmem, size = 0x10000, scoped, tag = 'input window, operand 2, single buffered']
    #allocation5 [shape = 's32[1]{0}', space=sflag, size = 0x4, scoped, tag = 'scoped memory for melody_generator_forward.20']
    %9 = vsyncpa [#allocation5], 0
    // Predicated region
    $region2: #{melody_generator_forward.20} parent=1 // pred_check
      _
    $region3: #{melody_generator_forward.20} parent=1 // pred_check_branch
      %11 = sbr.rel (0) target = $region5
    $region4: #{melody_generator_forward.20} parent=1 // pred_region
      _
    $region5: #{melody_generator_forward.20} parent=1 // pred_fallthru
      _
    // Predicated region
    $region6: #{melody_generator_forward.20} parent=1 // pred_check
      _
    $region7: #{melody_generator_forward.20} parent=1 // pred_check_branch
      %13 = sbr.rel (0) target = $region9
    $region8: #{melody_generator_forward.20} parent=1 // pred_region
      _
    $region9: #{melody_generator_forward.20} parent=1 // pred_fallthru
      _
    // Predicated region
    $region10: #{melody_generator_forward.20} parent=1 // pred_check
      _
    $region11: #{melody_generator_forward.20} parent=1 // pred_check_branch
      %15 = sbr.rel (0) target = $region13
    $region12: #{melody_generator_forward.20} parent=1 // pred_region
      %17 = vsyncadd [#allocation5], 0
      %s18 = sshll.u32 %s2, 4
      %s19 = int_to_ptr.hbm [resolvable:$true] %s18
      %s20 = sshll.u32 [#allocation4], 4
      %s21 = int_to_ptr.vmem [resolvable:$true] %s20
      %26 = dma.hbm_to_vmem [thread:$0]  %s19, 2048, %s21, [#allocation5], 128, 128, 8
    $region13: #{melody_generator_forward.20} parent=1 // pred_fallthru
      _
    // Predicated region
    $region14: #{melody_generator_forward.20} parent=1 // pred_check
      _
    $region15: #{melody_generator_forward.20} parent=1 // pred_check_branch
      %28 = sbr.rel (0) target = $region17
    $region16: #{melody_generator_forward.20} parent=1 // pred_region
      _
    $region17: #{melody_generator_forward.20} parent=1 // pred_fallthru
      _
    // Predicated region
    $region18: #{melody_generator_forward.20} parent=1 // pred_check
      _
    $region19: #{melody_generator_forward.20} parent=1 // pred_check_branch
      %30 = sbr.rel (0) target = $region21
    $region20: #{melody_generator_forward.20} parent=1 // pred_region
      %32 = dma.done [#allocation5], 2048
    $region21: #{melody_generator_forward.20} parent=1 // pred_fallthru
      _
    %p33 = scmp.eq.s32.totalorder 0, 0
    // Predicated region
    $region22: #{melody_generator_forward.20} parent=1 // pred_check
      %p34 = pneg %p33
    $region23: #{melody_generator_forward.20} parent=1 // pred_check_branch
      %36 = sbr.rel (%p34) target = $region25
    $region24: #{melody_generator_forward.20} parent=1 // pred_region
      %37 = vst [vmem:[#allocation2] sm:$0xff] 0.0
      %38 = vst [vmem:[#allocation2 + $0x8] sm:$0xff] 0.0
      %39 = vst [vmem:[#allocation2 + $0x10] sm:$0xff] 0.0
      %40 = vst [vmem:[#allocation2 + $0x18] sm:$0xff] 0.0
    $region25: #{melody_generator_forward.20} parent=1 // pred_fallthru
      _
    %p41 = scmp.eq.s32.totalorder 0, 0
    // Predicated region
    $region26: #{melody_generator_forward.20} parent=1 // pred_check
      %p42 = pneg %p41
    $region27: #{melody_generator_forward.20} parent=1 // pred_check_branch
      %44 = sbr.rel (%p42) target = $region29
    $region28: #{melody_generator_forward.20} parent=1 // pred_region
      %v45 = vld [vmem:[%s0] sm:$0xff]
      %v46 = vld [vmem:[%s0 + $0x8] sm:$0xff]
      %v47 = vmul.f32 %v45, %v45
      %v48 = vmul.f32 %v46, %v46
      %49 = vadd.xlane.f32.xlu0 %v47
      %v50 = vpop.xlane.xlu0 %49
      %51 = vadd.xlane.f32.xlu0 %v48
      %v52 = vpop.xlane.xlu0 %51
      %v53 = vmul.f32 %v50, 0.0078125
      %v54 = vmul.f32 %v52, 0.0078125
      %v55 = vadd.f32 %v53, 1e-05
      %v56 = vadd.f32 %v54, 1e-05
      %v57 = vrsqrt.pop %v55
      %v58 = vmul.f32 %v57, %v55
      %v59 = vmul.f32 %v58, %v57
      %v60 = vmul.f32 0.5, %v59
      %v61 = vsub.f32 1.5, %v60
      %v62 = vmul.f32 %v57, %v61
      %vm63 = vweird.f32 %v55
      %vm64 = vweird.f32 %v57
      %vm65 = vmor %vm63, %vm64
      %v66 = vsel %vm65, %v57, %v62
      %v67 = vrsqrt.pop %v56
      %v68 = vmul.f32 %v67, %v56
      %v69 = vmul.f32 %v68, %v67
      %v70 = vmul.f32 0.5, %v69
      %v71 = vsub.f32 1.5, %v70
      %v72 = vmul.f32 %v67, %v71
      %vm73 = vweird.f32 %v56
      %vm74 = vweird.f32 %v67
      %vm75 = vmor %vm73, %vm74
      %v76 = vsel %vm75, %v67, %v72
      %v77 = vmul.f32 %v45, %v66
      %v78 = vmul.f32 %v46, %v76
      %v79 = vld [vmem:[%s1] sm:$0x1]
      %v81 = vperm.slane %v79, 0
      %v83 = vmul.f32 %v77, %v81
      %v84 = vmul.f32 %v78, %v81
      %v85 = vpack.c.bf16 %v83, %v83
      %v86 = vpack.c.bf16 %v84, %v84
      %87 = vst [vmem:[#allocation3] sm:$0xf] %v85
      %88 = vst [vmem:[#allocation3 + $0x4] sm:$0xf] %v86
    $region29: #{melody_generator_forward.20} parent=1 // pred_fallthru
      _
    %v89 = vld [vmem:[#allocation3] sm:$0xf]
    %v90 = vld [vmem:[#allocation3 + $0x4] sm:$0xf]
    %v91 = vld [vmem:[#allocation2] sm:$0xff]
    %v92 = vld [vmem:[#allocation2 + $0x8] sm:$0xff]
    %v93 = vld [vmem:[#allocation2 + $0x10] sm:$0xff]
    %v94 = vld [vmem:[#allocation2 + $0x18] sm:$0xff]
    %v95 = vld [vmem:[#allocation4] sm:$0xff]
    %v96 = vld [vmem:[#allocation4 + $0x8] sm:$0xff]
    %v97 = vld [vmem:[#allocation4 + $0x10] sm:$0xff]
    %v98 = vld [vmem:[#allocation4 + $0x18] sm:$0xff]
    %v99 = vld [vmem:[#allocation4 + $0x20] sm:$0xff]
    %v100 = vld [vmem:[#allocation4 + $0x28] sm:$0xff]
    %v101 = vld [vmem:[#allocation4 + $0x30] sm:$0xff]
    %v102 = vld [vmem:[#allocation4 + $0x38] sm:$0xff]
    %v103 = vld [vmem:[#allocation4 + $0x40] sm:$0xff]
    %v104 = vld [vmem:[#allocation4 + $0x48] sm:$0xff]
    %v105 = vld [vmem:[#allocation4 + $0x50] sm:$0xff]
    %v106 = vld [vmem:[#allocation4 + $0x58] sm:$0xff]
    %v107 = vld [vmem:[#allocation4 + $0x60] sm:$0xff]
    %v108 = vld [vmem:[#allocation4 + $0x68] sm:$0xff]
    %v109 = vld [vmem:[#allocation4 + $0x70] sm:$0xff]
    %v110 = vld [vmem:[#allocation4 + $0x78] sm:$0xff]
    %v113 = vunpack.c.l.b16 %v89
    %v114 = vunpack.c.l.b16 %v90
    %v115 = vpack.c.b16 %v114, %v113
    %v133 = vunpack.c.l.b16 %v95
    %v134 = vunpack.c.h.b16 %v95
    %v135 = vunpack.c.l.b16 %v96
    %v136 = vunpack.c.h.b16 %v96
    %v137 = vunpack.c.l.b16 %v97
    %v138 = vunpack.c.h.b16 %v97
    %v139 = vunpack.c.l.b16 %v98
    %v140 = vunpack.c.h.b16 %v98
    %v141 = vunpack.c.l.b16 %v99
    %v142 = vunpack.c.h.b16 %v99
    %v143 = vunpack.c.l.b16 %v100
    %v144 = vunpack.c.h.b16 %v100
    %v145 = vunpack.c.l.b16 %v101
    %v146 = vunpack.c.h.b16 %v101
    %v147 = vunpack.c.l.b16 %v102
    %v148 = vunpack.c.h.b16 %v102
    %v149 = vunpack.c.l.b16 %v103
    %v150 = vunpack.c.h.b16 %v103
    %v151 = vunpack.c.l.b16 %v104
    %v152 = vunpack.c.h.b16 %v104
    %v153 = vunpack.c.l.b16 %v105
    %v154 = vunpack.c.h.b16 %v105
    %v155 = vunpack.c.l.b16 %v106
    %v156 = vunpack.c.h.b16 %v106
    %v157 = vunpack.c.l.b16 %v107
    %v158 = vunpack.c.h.b16 %v107
    %v159 = vunpack.c.l.b16 %v108
    %v160 = vunpack.c.h.b16 %v108
    %v161 = vunpack.c.l.b16 %v109
    %v162 = vunpack.c.h.b16 %v109
    %v163 = vunpack.c.l.b16 %v110
    %v164 = vunpack.c.h.b16 %v110
    %v165 = vpack.c.b16 %v135, %v133
    %v166 = vpack.c.b16 %v136, %v134
    %v167 = vpack.c.b16 %v139, %v137
    %v168 = vpack.c.b16 %v140, %v138
    %v169 = vpack.c.b16 %v143, %v141
    %v170 = vpack.c.b16 %v144, %v142
    %v171 = vpack.c.b16 %v147, %v145
    %v172 = vpack.c.b16 %v148, %v146
    %v173 = vpack.c.b16 %v151, %v149
    %v174 = vpack.c.b16 %v152, %v150
    %v175 = vpack.c.b16 %v155, %v153
    %v176 = vpack.c.b16 %v156, %v154
    %v177 = vpack.c.b16 %v159, %v157
    %v178 = vpack.c.b16 %v160, %v158
    %v179 = vpack.c.b16 %v163, %v161
    %v180 = vpack.c.b16 %v164, %v162
    %197 = vmatpush.bf16.msra.mxu0 %v179
    %198 = vmatpush.bf16.msra.mxu0 %v177
    %199 = vmatpush.bf16.msra.mxu0 %v175
    %200 = vmatpush.bf16.msra.mxu0 %v173
    %201 = vmatpush.bf16.msra.mxu0 %v171
    %202 = vmatpush.bf16.msra.mxu0 %v169
    %203 = vmatpush.bf16.msra.mxu0 %v167
    %204 = vmatpush.bf16.msra.mxu0 %v165
    %205 = vmatmul.bf16.gmra.mxu0 %v115
    %v206 = vpop.f32.mrf.mxu0
    %v207 = vadd.f32 0.0, %v206
    %v208 = vpop.f32.mrf.mxu0
    %v209 = vadd.f32 0.0, %v208
    %210 = vdwg.mxu0
    %211 = vmatpush.bf16.msra.mxu0 %v180
    %212 = vmatpush.bf16.msra.mxu0 %v178
    %213 = vmatpush.bf16.msra.mxu0 %v176
    %214 = vmatpush.bf16.msra.mxu0 %v174
    %215 = vmatpush.bf16.msra.mxu0 %v172
    %216 = vmatpush.bf16.msra.mxu0 %v170
    %217 = vmatpush.bf16.msra.mxu0 %v168
    %218 = vmatpush.bf16.msra.mxu0 %v166
    %219 = vmatmul.bf16.gmra.mxu0 %v115
    %v220 = vpop.f32.mrf.mxu0
    %v221 = vadd.f32 0.0, %v220
    %v222 = vpop.f32.mrf.mxu0
    %v223 = vadd.f32 0.0, %v222
    %224 = vdwg.mxu0
    %v225 = vadd.f32 %v91, %v207
    %v226 = vadd.f32 %v92, %v221
    %v227 = vadd.f32 %v93, %v209
    %v228 = vadd.f32 %v94, %v223
    %229 = vst [vmem:[#allocation2] sm:$0xff] %v225
    %230 = vst [vmem:[#allocation2 + $0x8] sm:$0xff] %v226
    %231 = vst [vmem:[#allocation2 + $0x10] sm:$0xff] %v227
    %232 = vst [vmem:[#allocation2 + $0x18] sm:$0xff] %v228
    // Predicated region
    $region30: #{melody_generator_forward.20} parent=1 // pred_check
      %p233 = pneg %p33
    $region31: #{melody_generator_forward.20} parent=1 // pred_check_branch
      %235 = sbr.rel (%p233) target = $region33
    $region32: #{melody_generator_forward.20} parent=1 // pred_region
      %v236 = vld [vmem:[#allocation2] sm:$0xff]
      %v237 = vld [vmem:[#allocation2 + $0x8] sm:$0xff]
      %v238 = vld [vmem:[#allocation2 + $0x10] sm:$0xff]
      %v239 = vld [vmem:[#allocation2 + $0x18] sm:$0xff]
      %v240 = vld [vmem:[%s3] sm:$0x3]
      %v242 = vperm.slane %v240, 0
      %v243 = vperm.slane %v240, 1
      %v246 = vadd.f32 %v236, %v242
      %v247 = vadd.f32 %v237, %v243
      %v248 = vadd.f32 %v238, %v242
      %v249 = vadd.f32 %v239, %v243
      %v250 = vmul.f32 %v246, %v246
      %v251 = vmul.f32 %v247, %v247
      %v252 = vmul.f32 %v248, %v248
      %v253 = vmul.f32 %v249, %v249
      %v254 = vmul.f32 %v246, %v250
      %v255 = vmul.f32 %v247, %v251
      %v256 = vmul.f32 %v248, %v252
      %v257 = vmul.f32 %v249, %v253
      %v258 = vmul.f32 %v254, 0.044715
      %v259 = vmul.f32 %v255, 0.044715
      %v260 = vmul.f32 %v256, 0.044715
      %v261 = vmul.f32 %v257, 0.044715
      %v262 = vadd.f32 %v246, %v258
      %v263 = vadd.f32 %v247, %v259
      %v264 = vadd.f32 %v248, %v260
      %v265 = vadd.f32 %v249, %v261
      %v266 = vmul.f32 %v262, 0.7978846
      %v267 = vmul.f32 %v263, 0.7978846
      %v268 = vmul.f32 %v264, 0.7978846
      %v269 = vmul.f32 %v265, 0.7978846
      %v270 = vtanh.pop %v266
      %v271 = vtanh.pop %v267
      %v272 = vtanh.pop %v268
      %v273 = vtanh.pop %v269
      %v274 = vadd.f32 %v270, 1.0
      %v275 = vadd.f32 %v271, 1.0
      %v276 = vadd.f32 %v272, 1.0
      %v277 = vadd.f32 %v273, 1.0
      %v278 = vmul.f32 %v274, 0.5
      %v279 = vmul.f32 %v275, 0.5
      %v280 = vmul.f32 %v276, 0.5
      %v281 = vmul.f32 %v277, 0.5
      %v282 = vmul.f32 %v246, %v278
      %v283 = vmul.f32 %v247, %v279
      %v284 = vmul.f32 %v248, %v280
      %v285 = vmul.f32 %v249, %v281
      %v286 = vpack.c.bf16 %v283, %v282
      %v287 = vpack.c.bf16 %v285, %v284
      %288 = vst [vmem:[%s4] sm:$0xff] %v286
      %289 = vst [vmem:[%s4 + $0x8] sm:$0xff] %v287
    $region33: #{melody_generator_forward.20} parent=1 // pred_fallthru
      _
    // Predicated region
    $region34: #{melody_generator_forward.20} parent=1 // pred_check
      _
    $region35: #{melody_generator_forward.20} parent=1 // pred_check_branch
      %291 = sbr.rel (0) target = $region37
    $region36: #{melody_generator_forward.20} parent=1 // pred_region
      _
    $region37: #{melody_generator_forward.20} parent=1 // pred_fallthru
      _
    // Predicated region
    $region38: #{melody_generator_forward.20} parent=1 // pred_check
      _
    $region39: #{melody_generator_forward.20} parent=1 // pred_check_branch
      %293 = sbr.rel (0) target = $region41
    $region40: #{melody_generator_forward.20} parent=1 // pred_region
      _
    $region41: #{melody_generator_forward.20} parent=1 // pred_fallthru
      _
    %294 = vsyncpa [#allocation5], 1

// kernel: melody_generator_forward.29
$region0: #{melody_generator_forward.29}
  #allocation0 [shape = 'u32[]', space=smem, size = 0x4, offset = 0x4, fixed_abs, tag = 'smem constant byte address 0x4 - core index']
  #allocation1 [shape = 'u32[72,128]{1,0:T(1,128)}', space=vmem, size = 0x9000, scoped, tag = 'internal scratch']
  #allocation2 [shape = 'f32[16,128]{1,0:T(8,128)}', space=vmem, size = 0x2000, scoped, tag = 'scratch operand']
  #allocation3 [shape = 'bf16[16,128]{1,0:T(8,128)(2,1)}', space=vmem, size = 0x1000, scoped, tag = 'scratch operand']
  %s0 = inlined_call_operand.vmem [shape: f32[16,128], index: 0, kind: input, shape index: {}]
  %s1 = inlined_call_operand.vmem [shape: f32[1,128], index: 1, kind: input, shape index: {}]
  %s2 = inlined_call_operand.vmem [shape: bf16[128,128], index: 2, kind: input, shape index: {}]
  %s3 = inlined_call_operand.vmem [shape: f32[1,128], index: 3, kind: input, shape index: {}]
  %s4 = inlined_call_operand.vmem [shape: f32[16,128], index: 4, kind: output, shape index: {}]
  %s5 = sld [smem:[#allocation0]]
  $region38: #{melody_generator_forward.29} parent=0
    _
  %s7 = ssub.s32 1, %s5
  %s8 = scalar_select 0, %s7, %s5
  // Predicated region
  $region2: #{melody_generator_forward.29} parent=0 // pred_check
    _
  $region3: #{melody_generator_forward.29} parent=0 // pred_check_branch
    %10 = sbr.rel (0) target = $region5
  $region4: #{melody_generator_forward.29} parent=0 // pred_region
    _
  $region5: #{melody_generator_forward.29} parent=0 // pred_fallthru
    _
  // Predicated region
  $region6: #{melody_generator_forward.29} parent=0 // pred_check
    _
  $region7: #{melody_generator_forward.29} parent=0 // pred_check_branch
    %12 = sbr.rel (0) target = $region9
  $region8: #{melody_generator_forward.29} parent=0 // pred_region
    _
  $region9: #{melody_generator_forward.29} parent=0 // pred_fallthru
    _
  // Predicated region
  $region10: #{melody_generator_forward.29} parent=0 // pred_check
    _
  $region11: #{melody_generator_forward.29} parent=0 // pred_check_branch
    %14 = sbr.rel (0) target = $region13
  $region12: #{melody_generator_forward.29} parent=0 // pred_region
    _
  $region13: #{melody_generator_forward.29} parent=0 // pred_fallthru
    _
  // Predicated region
  $region14: #{melody_generator_forward.29} parent=0 // pred_check
    _
  $region15: #{melody_generator_forward.29} parent=0 // pred_check_branch
    %16 = sbr.rel (0) target = $region17
  $region16: #{melody_generator_forward.29} parent=0 // pred_region
    _
  $region17: #{melody_generator_forward.29} parent=0 // pred_fallthru
    _
  %p17 = scmp.eq.s32.totalorder 0, 0
  // Predicated region
  $region18: #{melody_generator_forward.29} parent=0 // pred_check
    %p18 = pneg %p17
  $region19: #{melody_generator_forward.29} parent=0 // pred_check_branch
    %20 = sbr.rel (%p18) target = $region21
  $region20: #{melody_generator_forward.29} parent=0 // pred_region
    %21 = vst [vmem:[#allocation2] sm:$0xff] 0.0
    %22 = vst [vmem:[#allocation2 + $0x8] sm:$0xff] 0.0
  $region21: #{melody_generator_forward.29} parent=0 // pred_fallthru
    _
  %p23 = scmp.eq.s32.totalorder 0, 0
  // Predicated region
  $region22: #{melody_generator_forward.29} parent=0 // pred_check
    %p24 = pneg %p23
  $region23: #{melody_generator_forward.29} parent=0 // pred_check_branch
    %26 = sbr.rel (%p24) target = $region25
  $region24: #{melody_generator_forward.29} parent=0 // pred_region
    %v27 = vld [vmem:[%s0] sm:$0xff]
    %v28 = vld [vmem:[%s0 + $0x8] sm:$0xff]
    %v29 = vmul.f32 %v27, %v27
    %v30 = vmul.f32 %v28, %v28
    %31 = vadd.xlane.f32.xlu0 %v29
    %v32 = vpop.xlane.xlu0 %31
    %33 = vadd.xlane.f32.xlu0 %v30
    %v34 = vpop.xlane.xlu0 %33
    %v35 = vmul.f32 %v32, 0.0078125
    %v36 = vmul.f32 %v34, 0.0078125
    %v37 = vadd.f32 %v35, 1e-05
    %v38 = vadd.f32 %v36, 1e-05
    %v39 = vrsqrt.pop %v37
    %v40 = vmul.f32 %v39, %v37
    %v41 = vmul.f32 %v40, %v39
    %v42 = vmul.f32 0.5, %v41
    %v43 = vsub.f32 1.5, %v42
    %v44 = vmul.f32 %v39, %v43
    %vm45 = vweird.f32 %v37
    %vm46 = vweird.f32 %v39
    %vm47 = vmor %vm45, %vm46
    %v48 = vsel %vm47, %v39, %v44
    %v49 = vrsqrt.pop %v38
    %v50 = vmul.f32 %v49, %v38
    %v51 = vmul.f32 %v50, %v49
    %v52 = vmul.f32 0.5, %v51
    %v53 = vsub.f32 1.5, %v52
    %v54 = vmul.f32 %v49, %v53
    %vm55 = vweird.f32 %v38
    %vm56 = vweird.f32 %v49
    %vm57 = vmor %vm55, %vm56
    %v58 = vsel %vm57, %v49, %v54
    %v59 = vmul.f32 %v27, %v48
    %v60 = vmul.f32 %v28, %v58
    %v61 = vld [vmem:[%s1] sm:$0x1]
    %v63 = vperm.slane %v61, 0
    %v65 = vmul.f32 %v59, %v63
    %v66 = vmul.f32 %v60, %v63
    %v67 = vpack.c.bf16 %v65, %v65
    %v68 = vpack.c.bf16 %v66, %v66
    %69 = vst [vmem:[#allocation3] sm:$0xf] %v67
    %70 = vst [vmem:[#allocation3 + $0x4] sm:$0xf] %v68
  $region25: #{melody_generator_forward.29} parent=0 // pred_fallthru
    _
  %v71 = vld [vmem:[#allocation3] sm:$0xf]
  %v72 = vld [vmem:[#allocation3 + $0x4] sm:$0xf]
  %v73 = vld [vmem:[#allocation2] sm:$0xff]
  %v74 = vld [vmem:[#allocation2 + $0x8] sm:$0xff]
  %v75 = vld [vmem:[%s2] sm:$0xf]
  %v76 = vld [vmem:[%s2 + $0x4] sm:$0xf]
  %v77 = vld [vmem:[%s2 + $0x8] sm:$0xf]
  %v78 = vld [vmem:[%s2 + $0xc] sm:$0xf]
  %v79 = vld [vmem:[%s2 + $0x10] sm:$0xf]
  %v80 = vld [vmem:[%s2 + $0x14] sm:$0xf]
  %v81 = vld [vmem:[%s2 + $0x18] sm:$0xf]
  %v82 = vld [vmem:[%s2 + $0x1c] sm:$0xf]
  %v83 = vld [vmem:[%s2 + $0x20] sm:$0xf]
  %v84 = vld [vmem:[%s2 + $0x24] sm:$0xf]
  %v85 = vld [vmem:[%s2 + $0x28] sm:$0xf]
  %v86 = vld [vmem:[%s2 + $0x2c] sm:$0xf]
  %v87 = vld [vmem:[%s2 + $0x30] sm:$0xf]
  %v88 = vld [vmem:[%s2 + $0x34] sm:$0xf]
  %v89 = vld [vmem:[%s2 + $0x38] sm:$0xf]
  %v90 = vld [vmem:[%s2 + $0x3c] sm:$0xf]
  %v93 = vunpack.c.l.b16 %v71
  %v94 = vunpack.c.l.b16 %v72
  %v95 = vpack.c.b16 %v94, %v93
  %v113 = vunpack.c.l.b16 %v75
  %v114 = vunpack.c.l.b16 %v76
  %v115 = vunpack.c.l.b16 %v77
  %v116 = vunpack.c.l.b16 %v78
  %v117 = vunpack.c.l.b16 %v79
  %v118 = vunpack.c.l.b16 %v80
  %v119 = vunpack.c.l.b16 %v81
  %v120 = vunpack.c.l.b16 %v82
  %v121 = vunpack.c.l.b16 %v83
  %v122 = vunpack.c.l.b16 %v84
  %v123 = vunpack.c.l.b16 %v85
  %v124 = vunpack.c.l.b16 %v86
  %v125 = vunpack.c.l.b16 %v87
  %v126 = vunpack.c.l.b16 %v88
  %v127 = vunpack.c.l.b16 %v89
  %v128 = vunpack.c.l.b16 %v90
  %v129 = vpack.c.b16 %v114, %v113
  %v130 = vpack.c.b16 %v116, %v115
  %v131 = vpack.c.b16 %v118, %v117
  %v132 = vpack.c.b16 %v120, %v119
  %v133 = vpack.c.b16 %v122, %v121
  %v134 = vpack.c.b16 %v124, %v123
  %v135 = vpack.c.b16 %v126, %v125
  %v136 = vpack.c.b16 %v128, %v127
  %145 = vmatpush.bf16.msra.mxu0 %v136
  %146 = vmatpush.bf16.msra.mxu0 %v135
  %147 = vmatpush.bf16.msra.mxu0 %v134
  %148 = vmatpush.bf16.msra.mxu0 %v133
  %149 = vmatpush.bf16.msra.mxu0 %v132
  %150 = vmatpush.bf16.msra.mxu0 %v131
  %151 = vmatpush.bf16.msra.mxu0 %v130
  %152 = vmatpush.bf16.msra.mxu0 %v129
  %153 = vmatmul.bf16.gmra.mxu0 %v95
  %v154 = vpop.f32.mrf.mxu0
  %v155 = vadd.f32 0.0, %v154
  %v156 = vpop.f32.mrf.mxu0
  %v157 = vadd.f32 0.0, %v156
  %158 = vdwg.mxu0
  %v159 = vadd.f32 %v73, %v155
  %v160 = vadd.f32 %v74, %v157
  %161 = vst [vmem:[#allocation2] sm:$0xff] %v159
  %162 = vst [vmem:[#allocation2 + $0x8] sm:$0xff] %v160
  // Predicated region
  $region26: #{melody_generator_forward.29} parent=0 // pred_check
    %p163 = pneg %p17
  $region27: #{melody_generator_forward.29} parent=0 // pred_check_branch
    %165 = sbr.rel (%p163) target = $region29
  $region28: #{melody_generator_forward.29} parent=0 // pred_region
    %v166 = vld [vmem:[#allocation2] sm:$0xff]
    %v167 = vld [vmem:[#allocation2 + $0x8] sm:$0xff]
    %v168 = vld [vmem:[%s3] sm:$0x1]
    %v170 = vperm.slane %v168, 0
    %v172 = vadd.f32 %v166, %v170
    %v173 = vadd.f32 %v167, %v170
    %174 = vst [vmem:[%s4] sm:$0xff] %v172
    %175 = vst [vmem:[%s4 + $0x8] sm:$0xff] %v173
  $region29: #{melody_generator_forward.29} parent=0 // pred_fallthru
    _
  // Predicated region
  $region30: #{melody_generator_forward.29} parent=0 // pred_check
    _
  $region31: #{melody_generator_forward.29} parent=0 // pred_check_branch
    %177 = sbr.rel (0) target = $region33
  $region32: #{melody_generator_forward.29} parent=0 // pred_region
    _
  $region33: #{melody_generator_forward.29} parent=0 // pred_fallthru
    _
  // Predicated region
  $region34: #{melody_generator_forward.29} parent=0 // pred_check
    _
  $region35: #{melody_generator_forward.29} parent=0 // pred_check_branch
    %179 = sbr.rel (0) target = $region37
  $region36: #{melody_generator_forward.29} parent=0 // pred_region
    _
  $region37: #{melody_generator_forward.29} parent=0 // pred_fallthru
    _

</llo_original>
